<compile_context>
chip_gen: v7x
topology: tpu7x:2x2x1
jax: 0.10.0
libtpu: 0.0.40
codegen_flags: <defaults>
</compile_context>

<pallas_src>
import numpy as np
import jax
import jax.numpy as jnp
from jax import lax
from jax.experimental import pallas as pl
from jax.experimental.pallas import tpu as pltpu

MATMUL_DTYPE = jnp.bfloat16   # MXU operand dtype (f32 accumulation everywhere)
C = 64                        # conv channel width (fixed by the module)
_BN_EPS = 1e-5


def _pad8(n):
    return ((n + 7) // 8) * 8


# ----------------------------------------------------------------------------- forward builder
def make_forward(params, H, W):
    """Build a jitted forward(x: (B,1,H,W) f32) -> (B, d) f32 (eval mode)."""
    assert H % 8 == 0 and W % 8 == 0, "n_mels and T must be divisible by 8"
    mm = MATMUL_DTYPE
    Fp, Tq = H // 8, W // 8
    d = params["fc"][1].shape[0]

    sizes = [(H, W), (H // 2, W // 2), (H // 4, W // 4)]
    wps = [_pad8(w + 2) for _, w in sizes]                    # padded frame row stride
    fs = [(h + 2) * wp for (h, _), wp in zip(sizes, wps)]     # frame rows per layer
    wp1, wp2, wp3 = wps
    f1, f2, f3 = fs
    Hp1 = H + 2
    R2 = f2 + 2 * wp2            # extended (halo) rows of staged layer-2 frame
    R3 = f3 + 2 * wp3
    KST = 4 * C                  # staged K: 3 dx groups + zero pad -> 256

    # ---------------- constants: computed once, closed over ------------------
    def _folded(i):
        w, b, gamma, beta, mean, var = params[f"conv{i}"]
        scale = gamma / jnp.sqrt(var + _BN_EPS)
        return w * scale[:, None, None, None], (b - mean) * scale + beta

    w0, b0 = _folded(0)          # conv1: 1 input channel -> single K=16 matmul
    w1t = jnp.zeros((16, C), jnp.float32).at[:9, :].set(
        jnp.transpose(w0[:, 0, :, :], (1, 2, 0)).reshape(9, C)).astype(mm)

    taps, biases = [], [b0.reshape(1, C).astype(jnp.float32)]
    for i in (1, 2):
        w_eff, b_eff = _folded(i)
        t = jnp.transpose(w_eff, (2, 3, 1, 0)).reshape(3, 3 * C, C)  # (dy, dx*cin, cout)
        t = jnp.pad(t, ((0, 0), (0, KST - 3 * C), (0, 0)))           # zero rows -> K=256
        taps.append(t.astype(mm))
        biases.append(b_eff.reshape(1, C).astype(jnp.float32))
    bias_stack = jnp.stack(biases, axis=0)                           # (3, 1, 64) f32

    dcols = []                    # picks the odd frame columns of one row band
    for (hv, wv), wp in zip(sizes, wps):
        sel = np.zeros((wv // 2, wp), np.float32)
        for j in range(wv // 2):
            sel[j, 2 * j + 1] = 1.0
        dcols.append(jnp.asarray(sel, dtype=mm))

    fw1, fb1, fw2, fb2 = params["fc"]
    fw1 = fw1.astype(mm)
    fw2 = fw2.astype(mm)
    fb1 = fb1.reshape(1, d).astype(jnp.float32)
    fb2 = fb2.reshape(1, d).astype(jnp.float32)

    # ------------------------------ fused kernel -----------------------------
    def kernel(x1_ref, w1t_ref, t2_ref, t3_ref, bias_ref,
               d1_ref, d2_ref, d3_ref, fw1_ref, fb1_ref, fw2_ref, fb2_ref,
               o_ref, st2_ref, st3_ref):

        def pool(y, wp, hv, f, dcol_ref, emit):
            # y: (f, 64) f32 conv+ReLU output in frame-row layout (row stride wp).
            yw = jnp.maximum(y[:f - 1, :], y[1:, :])           # max over +1 (time)
            for i in range(hv // 2):                           # one 2x2-pool row band
                base = (2 * i + 1) * wp                        # multiple of 8
                bm = jnp.maximum(yw[base:base + wp, :],
                                 yw[base + wp:base + 2 * wp, :])
                vals = jnp.dot(dcol_ref[...], bm.astype(dcol_ref.dtype),
                               preferred_element_type=jnp.float32)  # (wv//2, 64)
                emit(i, vals)

        def emit_staged(st_ref, wp_next):
            # Scatter pooled row i into the next layer's staged frame.  The three
            # 64-lane groups hold the dx=-1/0/+1 shifted copies so the next conv
            # only reads sublane-aligned slices with K=256.
            e_next = wp_next
            def emit(i, vals):
                r0 = e_next + (i + 1) * wp_next + 1
                n = vals.shape[0]
                st_ref[r0 + 1:r0 + 1 + n, 0:C] = vals           # dx = -1 group
                st_ref[r0:r0 + n, C:2 * C] = vals               # dx =  0 group
                st_ref[r0 - 1:r0 - 1 + n, 2 * C:3 * C] = vals   # dx = +1 group
            return emit

        def conv_staged(st_ref, taps_ref, bias, wp, f):
            e = wp
            acc = None
            for dy in range(3):                 # 3 aligned K=256 MXU matmuls
                off = e + (dy - 1) * wp         # multiple of 8
                t = jnp.dot(st_ref[off:off + f, :].astype(mm), taps_ref[dy],
                            preferred_element_type=jnp.float32)
                acc = t if acc is None else acc + t
            return jnp.maximum(acc + bias, 0.0)

        # staged frames must be exactly zero outside the rows written below
        st2_ref[...] = jnp.zeros(st2_ref.shape, st2_ref.dtype)
        st3_ref[...] = jnp.zeros(st3_ref.shape, st3_ref.dtype)

        # ---- layer 1: conv(1->64)+BN+ReLU as ONE matmul over wrapper im2col --
        y1 = jnp.maximum(jnp.dot(x1_ref[0], w1t_ref[...],
                                 preferred_element_type=jnp.float32)
                         + bias_ref[0], 0.0)                         # (f1, 64)
        pool(y1, wp1, H, f1, d1_ref, emit_staged(st2_ref, wp2))

        # ---- layer 2 ----------------------------------------------------------
        y2 = conv_staged(st2_ref, t2_ref, bias_ref[1], wp2, f2)
        pool(y2, wp2, H // 2, f2, d2_ref, emit_staged(st3_ref, wp3))

        # ---- layer 3, pooled rows fused straight into the first FC matmul ----
        y3 = conv_staged(st3_ref, t3_ref, bias_ref[2], wp3, f3)
        hacc = [None]
        def emit_fc(i, vals):                    # vals: (Tq, 64) for freq band i
            t = jnp.dot(vals.astype(mm), fw1_ref[i * C:(i + 1) * C, :],
                        preferred_element_type=jnp.float32)
            hacc[0] = t if hacc[0] is None else hacc[0] + t
        pool(y3, wp3, H // 4, f3, d3_ref, emit_fc)

        # ---- FC head: Linear+ReLU+(Dropout=id)+Linear+ReLU, then max+mean(T) -
        # TODO(synk): Dropout(p=0.3) is identity in eval mode; training-mode dropout not implemented.
        h = jnp.maximum(hacc[0] + fb1_ref[...], 0.0)                 # (Tq, d)
        h2 = jnp.dot(h.astype(mm), fw2_ref[...],
                     preferred_element_type=jnp.float32) + fb2_ref[...]
        h2 = jnp.maximum(h2, 0.0)
        o_ref[0] = (jnp.max(h2, axis=0, keepdims=True)
                    + jnp.mean(h2, axis=0, keepdims=True))

    def _const(a):
        nd = a.ndim
        return pl.BlockSpec(a.shape, lambda b: (0,) * nd)

    # ------------------------------ jitted wrapper ---------------------------
    @jax.jit
    def forward(x):
        B = x.shape[0]
        xb = x[:, 0].astype(jnp.float32)
        # zero-padded image with a 2-pixel halo; columns padded so the frame
        # row stride wp1 is a multiple of 8
        pad2 = jnp.zeros((B, Hp1 + 2, wp1 + 2), jnp.float32)
        pad2 = pad2.at[:, 2:H + 2, 2:W + 2].set(xb)
        cols = [pad2[:, dy:dy + Hp1, dx:dx + wp1]
                for dy in range(3) for dx in range(3)]
        x1 = jnp.stack(cols, axis=-1).reshape(B, f1, 9)          # conv1 im2col
        x1 = jnp.concatenate(
            [x1, jnp.zeros((B, f1, 7), jnp.float32)], axis=-1).astype(mm)

        out = pl.pallas_call(
            kernel,
            out_shape=jax.ShapeDtypeStruct((B, 1, d), jnp.float32),
            grid=(B,),
            in_specs=[
                pl.BlockSpec((1, f1, 16), lambda b: (b, 0, 0)),
                _const(w1t), _const(taps[0]), _const(taps[1]), _const(bias_stack),
                _const(dcols[0]), _const(dcols[1]), _const(dcols[2]),
                _const(fw1), _const(fb1), _const(fw2), _const(fb2),
            ],
            out_specs=pl.BlockSpec((1, 1, d), lambda b: (b, 0, 0)),
            scratch_shapes=[pltpu.VMEM((R2, KST), jnp.float32),
                            pltpu.VMEM((R3, KST), jnp.float32)],
            compiler_params=pltpu.CompilerParams(
                dimension_semantics=("parallel",)),
        )(x1, w1t, taps[0], taps[1], bias_stack,
          dcols[0], dcols[1], dcols[2], fw1, fb1, fw2, fb2)
        return out[:, 0, :]

    return forward


# ----------------------------------------------------------------------------- params / reference
def init_params(key, n_mels=16, d=64):
    keys = jax.random.split(key, 8)
    params = {}
    chans = [(1, C), (C, C), (C, C)]
    for i, (cin, cout) in enumerate(chans):
        fan_in = cin * 9
        w = jax.random.normal(keys[i], (cout, cin, 3, 3), jnp.float32) * jnp.sqrt(2.0 / fan_in)
        idx = jnp.arange(cout, dtype=jnp.float32)
        b = 0.01 * jnp.sin(idx + i)
        gamma = 1.0 + 0.05 * jnp.cos(idx)
        beta = 0.02 * jnp.sin(idx)
        mean = 0.01 * jnp.sin(0.5 * idx)
        var = 1.0 + 0.1 * jnp.abs(jnp.sin(idx))
        params[f"conv{i}"] = (w, b, gamma, beta, mean, var)
    fin = C * (n_mels // 8)
    w1 = jax.random.normal(keys[3], (fin, d), jnp.float32) * jnp.sqrt(2.0 / fin)
    b1 = 0.01 * jnp.cos(jnp.arange(d, dtype=jnp.float32))
    w2 = jax.random.normal(keys[4], (d, d), jnp.float32) * jnp.sqrt(2.0 / d)
    b2 = 0.01 * jnp.sin(jnp.arange(d, dtype=jnp.float32))
    params["fc"] = (w1, b1, w2, b2)
    return params


def reference_forward(x, params):
    """Pure-JAX reference matching the PyTorch module semantics (eval mode)."""
    prec = lax.Precision.HIGHEST
    y = x.astype(jnp.float32)
    for i in range(3):
        w, b, gamma, beta, mean, var = params[f"conv{i}"]
        y = lax.conv_general_dilated(
            y, w, window_strides=(1, 1), padding="SAME",
            dimension_numbers=("NCHW", "OIHW", "NCHW"), precision=prec)
        y = y + b[None, :, None, None]
        y = (y - mean[None, :, None, None]) * (
            gamma[None, :, None, None]
            / jnp.sqrt(var[None, :, None, None] + _BN_EPS)) + beta[None, :, None, None]
        y = jnp.maximum(y, 0.0)
        Bb, Cc, Hh, Ww = y.shape
        y = y.reshape(Bb, Cc, Hh // 2, 2, Ww // 2, 2).max(axis=(3, 5))
    y = jnp.transpose(y, (0, 3, 2, 1))           # x.permute(0, 3, 2, 1)
    Bb, Tt, Dq, Cc = y.shape
    y = y.reshape(Bb, Tt, Dq * Cc)
    w1, b1, w2, b2 = params["fc"]
    h = jnp.maximum(jnp.dot(y, w1, precision=prec) + b1, 0.0)
    h = jnp.maximum(jnp.dot(h, w2, precision=prec) + b2, 0.0)
    return jnp.max(h, axis=1) + jnp.mean(h, axis=1)


# ----------------------------------------------------------------------------- main
if __name__ == "__main__":
    B, n_mels, T, d = 2, 16, 16, 64          # B kept even so v7x megacore balances
    key = jax.random.PRNGKey(0)
    pkey, xkey = jax.random.split(key)
    params = init_params(pkey, n_mels=n_mels, d=d)
    x = jax.random.normal(xkey, (B, 1, n_mels, T), jnp.float32)

    forward = make_forward(params, n_mels, T)
    out = jax.block_until_ready(forward(x))
    assert out.ndim == 2 and out.shape == (B, d), out.shape

    ref = jax.block_until_ready(reference_forward(x, params))
    err = float(jnp.max(jnp.abs(out - ref)))
    scale = float(jnp.max(jnp.abs(ref)))
    assert err <= 5e-2 * max(1.0, scale), (
        f"mismatch vs reference: max abs err={err}, ref scale={scale}")
    print("KERNEL_OK")
</pallas_src>

<mosaic_0001>
module attributes {stable_mosaic.version = 11 : i64} {
  func.func @kernel(%arg0: i32, %arg1: memref<1x432x16xbf16, #tpu.memory_space<vmem>>, %arg2: memref<16x64xbf16, #tpu.memory_space<vmem>>, %arg3: memref<3x256x64xbf16, #tpu.memory_space<vmem>>, %arg4: memref<3x256x64xbf16, #tpu.memory_space<vmem>>, %arg5: memref<3x1x64xf32, #tpu.memory_space<vmem>>, %arg6: memref<8x24xbf16, #tpu.memory_space<vmem>>, %arg7: memref<4x16xbf16, #tpu.memory_space<vmem>>, %arg8: memref<2x8xbf16, #tpu.memory_space<vmem>>, %arg9: memref<128x64xbf16, #tpu.memory_space<vmem>>, %arg10: memref<1x64xf32, #tpu.memory_space<vmem>>, %arg11: memref<64x64xbf16, #tpu.memory_space<vmem>>, %arg12: memref<1x64xf32, #tpu.memory_space<vmem>>, %arg13: memref<1x1x64xf32, #tpu.memory_space<vmem>>, %arg14: memref<192x256xf32, #tpu.memory_space<vmem>>, %arg15: memref<64x256xf32, #tpu.memory_space<vmem>>) attributes {dimension_semantics = [#tpu.dimension_semantics<parallel>], iteration_bounds = array<i64: 2>, scalar_prefetch = 0 : i64, scratch_operands = 2 : i64, tpu.core_type = #tpu.core_type<tc>, window_params = [{transform_indices = @transform_0, window_bounds = array<i64: 1, 432, 16>}, {pipeline_mode = #tpu.pipeline_mode<synchronous>, transform_indices = @transform_1, window_bounds = array<i64: 16, 64>}, {pipeline_mode = #tpu.pipeline_mode<synchronous>, transform_indices = @transform_2, window_bounds = array<i64: 3, 256, 64>}, {pipeline_mode = #tpu.pipeline_mode<synchronous>, transform_indices = @transform_3, window_bounds = array<i64: 3, 256, 64>}, {pipeline_mode = #tpu.pipeline_mode<synchronous>, transform_indices = @transform_4, window_bounds = array<i64: 3, 1, 64>}, {pipeline_mode = #tpu.pipeline_mode<synchronous>, transform_indices = @transform_5, window_bounds = array<i64: 8, 24>}, {pipeline_mode = #tpu.pipeline_mode<synchronous>, transform_indices = @transform_6, window_bounds = array<i64: 4, 16>}, {pipeline_mode = #tpu.pipeline_mode<synchronous>, transform_indices = @transform_7, window_bounds = array<i64: 2, 8>}, {pipeline_mode = #tpu.pipeline_mode<synchronous>, transform_indices = @transform_8, window_bounds = array<i64: 128, 64>}, {pipeline_mode = #tpu.pipeline_mode<synchronous>, transform_indices = @transform_9, window_bounds = array<i64: 1, 64>}, {pipeline_mode = #tpu.pipeline_mode<synchronous>, transform_indices = @transform_10, window_bounds = array<i64: 64, 64>}, {pipeline_mode = #tpu.pipeline_mode<synchronous>, transform_indices = @transform_11, window_bounds = array<i64: 1, 64>}, {transform_indices = @transform_12, window_bounds = array<i64: 1, 1, 64>}]} {
    %cst = arith.constant 0.000000e+00 : f32
    %0 = vector.broadcast %cst : f32 to vector<192x256xf32>
    %c0 = arith.constant 0 : index
    %c0_0 = arith.constant 0 : index
    %1 = vector.load %arg14[%c0, %c0_0] : memref<192x256xf32, #tpu.memory_space<vmem>>, vector<192x256xf32>
    tpu.vector_store %arg14[%c0, %c0_0], %0 {strides = array<i32>} : memref<192x256xf32, #tpu.memory_space<vmem>>, vector<192x256xf32>,
    %cst_1 = arith.constant 0.000000e+00 : f32
    %2 = vector.broadcast %cst_1 : f32 to vector<64x256xf32>
    %c0_2 = arith.constant 0 : index
    %c0_3 = arith.constant 0 : index
    %3 = vector.load %arg15[%c0_2, %c0_3] : memref<64x256xf32, #tpu.memory_space<vmem>>, vector<64x256xf32>
    tpu.vector_store %arg15[%c0_2, %c0_3], %2 {strides = array<i32>} : memref<64x256xf32, #tpu.memory_space<vmem>>, vector<64x256xf32>,
    %c0_4 = arith.constant 0 : index
    %c0_5 = arith.constant 0 : index
    %c0_6 = arith.constant 0 : index
    %4 = vector.load %arg1[%c0_4, %c0_5, %c0_6] : memref<1x432x16xbf16, #tpu.memory_space<vmem>>, vector<1x432x16xbf16>
    %5 = vector.shape_cast %4 : vector<1x432x16xbf16> to vector<432x16xbf16>
    %c0_7 = arith.constant 0 : index
    %c0_8 = arith.constant 0 : index
    %6 = vector.load %arg2[%c0_7, %c0_8] : memref<16x64xbf16, #tpu.memory_space<vmem>>, vector<16x64xbf16>
    %cst_9 = arith.constant dense<0.000000e+00> : vector<432x64xf32>
    %7 = tpu.matmul %5, %6, %cst_9 {dimension_numbers = #tpu.dot_dimension_numbers<[1], [0], [0], [1], [0, 0, 1, 1], [], []>} : vector<432x16xbf16>, vector<16x64xbf16>, vector<432x64xf32> -> vector<432x64xf32>
    %c0_10 = arith.constant 0 : index
    %c0_11 = arith.constant 0 : index
    %c0_12 = arith.constant 0 : index
    %8 = vector.load %arg5[%c0_10, %c0_11, %c0_12] : memref<3x1x64xf32, #tpu.memory_space<vmem>>, vector<1x1x64xf32>
    %9 = vector.shape_cast %8 : vector<1x1x64xf32> to vector<1x64xf32>
    %10 = vector.broadcast %9 : vector<1x64xf32> to vector<432x64xf32>
    %11 = arith.addf %7, %10 : vector<432x64xf32>
    %cst_13 = arith.constant 0.000000e+00 : f32
    %12 = vector.broadcast %cst_13 : f32 to vector<432x64xf32>
    %13 = arith.maximumf %11, %12 : vector<432x64xf32>
    %14 = vector.extract_strided_slice %13 {offsets = [0, 0], sizes = [431, 64], strides = [1, 1]} : vector<432x64xf32> to vector<431x64xf32>
    %15 = vector.extract_strided_slice %13 {offsets = [1, 0], sizes = [431, 64], strides = [1, 1]} : vector<432x64xf32> to vector<431x64xf32>
    %16 = arith.maximumf %14, %15 : vector<431x64xf32>
    %17 = vector.extract_strided_slice %16 {offsets = [24, 0], sizes = [24, 64], strides = [1, 1]} : vector<431x64xf32> to vector<24x64xf32>
    %18 = vector.extract_strided_slice %16 {offsets = [48, 0], sizes = [24, 64], strides = [1, 1]} : vector<431x64xf32> to vector<24x64xf32>
    %19 = arith.maximumf %17, %18 : vector<24x64xf32>
    %c0_14 = arith.constant 0 : index
    %c0_15 = arith.constant 0 : index
    %20 = vector.load %arg6[%c0_14, %c0_15] : memref<8x24xbf16, #tpu.memory_space<vmem>>, vector<8x24xbf16>
    %21 = arith.truncf %19 : vector<24x64xf32> to vector<24x64xbf16>
    %cst_16 = arith.constant dense<0.000000e+00> : vector<8x64xf32>
    %22 = tpu.matmul %20, %21, %cst_16 {dimension_numbers = #tpu.dot_dimension_numbers<[1], [0], [0], [1], [0, 0, 1, 1], [], []>} : vector<8x24xbf16>, vector<24x64xbf16>, vector<8x64xf32> -> vector<8x64xf32>
    %c34 = arith.constant 34 : index
    %c0_17 = arith.constant 0 : index
    %23 = vector.load %arg14[%c34, %c0_17] : memref<192x256xf32, #tpu.memory_space<vmem>>, vector<8x64xf32>
    tpu.vector_store %arg14[%c34, %c0_17], %22 {strides = array<i32>} : memref<192x256xf32, #tpu.memory_space<vmem>>, vector<8x64xf32>,
    %c33 = arith.constant 33 : index
    %c64 = arith.constant 64 : index
    %24 = vector.load %arg14[%c33, %c64] : memref<192x256xf32, #tpu.memory_space<vmem>>, vector<8x64xf32>
    tpu.vector_store %arg14[%c33, %c64], %22 {strides = array<i32>} : memref<192x256xf32, #tpu.memory_space<vmem>>, vector<8x64xf32>,
    %c32 = arith.constant 32 : index
    %c128 = arith.constant 128 : index
    %25 = vector.load %arg14[%c32, %c128] : memref<192x256xf32, #tpu.memory_space<vmem>>, vector<8x64xf32>
    tpu.vector_store %arg14[%c32, %c128], %22 {strides = array<i32>} : memref<192x256xf32, #tpu.memory_space<vmem>>, vector<8x64xf32>,
    %26 = vector.extract_strided_slice %16 {offsets = [72, 0], sizes = [24, 64], strides = [1, 1]} : vector<431x64xf32> to vector<24x64xf32>
    %27 = vector.extract_strided_slice %16 {offsets = [96, 0], sizes = [24, 64], strides = [1, 1]} : vector<431x64xf32> to vector<24x64xf32>
    %28 = arith.maximumf %26, %27 : vector<24x64xf32>
    %c0_18 = arith.constant 0 : index
    %c0_19 = arith.constant 0 : index
    %29 = vector.load %arg6[%c0_18, %c0_19] : memref<8x24xbf16, #tpu.memory_space<vmem>>, vector<8x24xbf16>
    %30 = arith.truncf %28 : vector<24x64xf32> to vector<24x64xbf16>
    %cst_20 = arith.constant dense<0.000000e+00> : vector<8x64xf32>
    %31 = tpu.matmul %29, %30, %cst_20 {dimension_numbers = #tpu.dot_dimension_numbers<[1], [0], [0], [1], [0, 0, 1, 1], [], []>} : vector<8x24xbf16>, vector<24x64xbf16>, vector<8x64xf32> -> vector<8x64xf32>
    %c50 = arith.constant 50 : index
    %c0_21 = arith.constant 0 : index
    %32 = vector.load %arg14[%c50, %c0_21] : memref<192x256xf32, #tpu.memory_space<vmem>>, vector<8x64xf32>
    tpu.vector_store %arg14[%c50, %c0_21], %31 {strides = array<i32>} : memref<192x256xf32, #tpu.memory_space<vmem>>, vector<8x64xf32>,
    %c49 = arith.constant 49 : index
    %c64_22 = arith.constant 64 : index
    %33 = vector.load %arg14[%c49, %c64_22] : memref<192x256xf32, #tpu.memory_space<vmem>>, vector<8x64xf32>
    tpu.vector_store %arg14[%c49, %c64_22], %31 {strides = array<i32>} : memref<192x256xf32, #tpu.memory_space<vmem>>, vector<8x64xf32>,
    %c48 = arith.constant 48 : index
    %c128_23 = arith.constant 128 : index
    %34 = vector.load %arg14[%c48, %c128_23] : memref<192x256xf32, #tpu.memory_space<vmem>>, vector<8x64xf32>
    tpu.vector_store %arg14[%c48, %c128_23], %31 {strides = array<i32>} : memref<192x256xf32, #tpu.memory_space<vmem>>, vector<8x64xf32>,
    %35 = vector.extract_strided_slice %16 {offsets = [120, 0], sizes = [24, 64], strides = [1, 1]} : vector<431x64xf32> to vector<24x64xf32>
    %36 = vector.extract_strided_slice %16 {offsets = [144, 0], sizes = [24, 64], strides = [1, 1]} : vector<431x64xf32> to vector<24x64xf32>
    %37 = arith.maximumf %35, %36 : vector<24x64xf32>
    %c0_24 = arith.constant 0 : index
    %c0_25 = arith.constant 0 : index
    %38 = vector.load %arg6[%c0_24, %c0_25] : memref<8x24xbf16, #tpu.memory_space<vmem>>, vector<8x24xbf16>
    %39 = arith.truncf %37 : vector<24x64xf32> to vector<24x64xbf16>
    %cst_26 = arith.constant dense<0.000000e+00> : vector<8x64xf32>
    %40 = tpu.matmul %38, %39, %cst_26 {dimension_numbers = #tpu.dot_dimension_numbers<[1], [0], [0], [1], [0, 0, 1, 1], [], []>} : vector<8x24xbf16>, vector<24x64xbf16>, vector<8x64xf32> -> vector<8x64xf32>
    %c66 = arith.constant 66 : index
    %c0_27 = arith.constant 0 : index
    %41 = vector.load %arg14[%c66, %c0_27] : memref<192x256xf32, #tpu.memory_space<vmem>>, vector<8x64xf32>
    tpu.vector_store %arg14[%c66, %c0_27], %40 {strides = array<i32>} : memref<192x256xf32, #tpu.memory_space<vmem>>, vector<8x64xf32>,
    %c65 = arith.constant 65 : index
    %c64_28 = arith.constant 64 : index
    %42 = vector.load %arg14[%c65, %c64_28] : memref<192x256xf32, #tpu.memory_space<vmem>>, vector<8x64xf32>
    tpu.vector_store %arg14[%c65, %c64_28], %40 {strides = array<i32>} : memref<192x256xf32, #tpu.memory_space<vmem>>, vector<8x64xf32>,
    %c64_29 = arith.constant 64 : index
    %c128_30 = arith.constant 128 : index
    %43 = vector.load %arg14[%c64_29, %c128_30] : memref<192x256xf32, #tpu.memory_space<vmem>>, vector<8x64xf32>
    tpu.vector_store %arg14[%c64_29, %c128_30], %40 {strides = array<i32>} : memref<192x256xf32, #tpu.memory_space<vmem>>, vector<8x64xf32>,
    %44 = vector.extract_strided_slice %16 {offsets = [168, 0], sizes = [24, 64], strides = [1, 1]} : vector<431x64xf32> to vector<24x64xf32>
    %45 = vector.extract_strided_slice %16 {offsets = [192, 0], sizes = [24, 64], strides = [1, 1]} : vector<431x64xf32> to vector<24x64xf32>
    %46 = arith.maximumf %44, %45 : vector<24x64xf32>
    %c0_31 = arith.constant 0 : index
    %c0_32 = arith.constant 0 : index
    %47 = vector.load %arg6[%c0_31, %c0_32] : memref<8x24xbf16, #tpu.memory_space<vmem>>, vector<8x24xbf16>
    %48 = arith.truncf %46 : vector<24x64xf32> to vector<24x64xbf16>
    %cst_33 = arith.constant dense<0.000000e+00> : vector<8x64xf32>
    %49 = tpu.matmul %47, %48, %cst_33 {dimension_numbers = #tpu.dot_dimension_numbers<[1], [0], [0], [1], [0, 0, 1, 1], [], []>} : vector<8x24xbf16>, vector<24x64xbf16>, vector<8x64xf32> -> vector<8x64xf32>
    %c82 = arith.constant 82 : index
    %c0_34 = arith.constant 0 : index
    %50 = vector.load %arg14[%c82, %c0_34] : memref<192x256xf32, #tpu.memory_space<vmem>>, vector<8x64xf32>
    tpu.vector_store %arg14[%c82, %c0_34], %49 {strides = array<i32>} : memref<192x256xf32, #tpu.memory_space<vmem>>, vector<8x64xf32>,
    %c81 = arith.constant 81 : index
    %c64_35 = arith.constant 64 : index
    %51 = vector.load %arg14[%c81, %c64_35] : memref<192x256xf32, #tpu.memory_space<vmem>>, vector<8x64xf32>
    tpu.vector_store %arg14[%c81, %c64_35], %49 {strides = array<i32>} : memref<192x256xf32, #tpu.memory_space<vmem>>, vector<8x64xf32>,
    %c80 = arith.constant 80 : index
    %c128_36 = arith.constant 128 : index
    %52 = vector.load %arg14[%c80, %c128_36] : memref<192x256xf32, #tpu.memory_space<vmem>>, vector<8x64xf32>
    tpu.vector_store %arg14[%c80, %c128_36], %49 {strides = array<i32>} : memref<192x256xf32, #tpu.memory_space<vmem>>, vector<8x64xf32>,
    %53 = vector.extract_strided_slice %16 {offsets = [216, 0], sizes = [24, 64], strides = [1, 1]} : vector<431x64xf32> to vector<24x64xf32>
    %54 = vector.extract_strided_slice %16 {offsets = [240, 0], sizes = [24, 64], strides = [1, 1]} : vector<431x64xf32> to vector<24x64xf32>
    %55 = arith.maximumf %53, %54 : vector<24x64xf32>
    %c0_37 = arith.constant 0 : index
    %c0_38 = arith.constant 0 : index
    %56 = vector.load %arg6[%c0_37, %c0_38] : memref<8x24xbf16, #tpu.memory_space<vmem>>, vector<8x24xbf16>
    %57 = arith.truncf %55 : vector<24x64xf32> to vector<24x64xbf16>
    %cst_39 = arith.constant dense<0.000000e+00> : vector<8x64xf32>
    %58 = tpu.matmul %56, %57, %cst_39 {dimension_numbers = #tpu.dot_dimension_numbers<[1], [0], [0], [1], [0, 0, 1, 1], [], []>} : vector<8x24xbf16>, vector<24x64xbf16>, vector<8x64xf32> -> vector<8x64xf32>
    %c98 = arith.constant 98 : index
    %c0_40 = arith.constant 0 : index
    %59 = vector.load %arg14[%c98, %c0_40] : memref<192x256xf32, #tpu.memory_space<vmem>>, vector<8x64xf32>
    tpu.vector_store %arg14[%c98, %c0_40], %58 {strides = array<i32>} : memref<192x256xf32, #tpu.memory_space<vmem>>, vector<8x64xf32>,
    %c97 = arith.constant 97 : index
    %c64_41 = arith.constant 64 : index
    %60 = vector.load %arg14[%c97, %c64_41] : memref<192x256xf32, #tpu.memory_space<vmem>>, vector<8x64xf32>
    tpu.vector_store %arg14[%c97, %c64_41], %58 {strides = array<i32>} : memref<192x256xf32, #tpu.memory_space<vmem>>, vector<8x64xf32>,
    %c96 = arith.constant 96 : index
    %c128_42 = arith.constant 128 : index
    %61 = vector.load %arg14[%c96, %c128_42] : memref<192x256xf32, #tpu.memory_space<vmem>>, vector<8x64xf32>
    tpu.vector_store %arg14[%c96, %c128_42], %58 {strides = array<i32>} : memref<192x256xf32, #tpu.memory_space<vmem>>, vector<8x64xf32>,
    %62 = vector.extract_strided_slice %16 {offsets = [264, 0], sizes = [24, 64], strides = [1, 1]} : vector<431x64xf32> to vector<24x64xf32>
    %63 = vector.extract_strided_slice %16 {offsets = [288, 0], sizes = [24, 64], strides = [1, 1]} : vector<431x64xf32> to vector<24x64xf32>
    %64 = arith.maximumf %62, %63 : vector<24x64xf32>
    %c0_43 = arith.constant 0 : index
    %c0_44 = arith.constant 0 : index
    %65 = vector.load %arg6[%c0_43, %c0_44] : memref<8x24xbf16, #tpu.memory_space<vmem>>, vector<8x24xbf16>
    %66 = arith.truncf %64 : vector<24x64xf32> to vector<24x64xbf16>
    %cst_45 = arith.constant dense<0.000000e+00> : vector<8x64xf32>
    %67 = tpu.matmul %65, %66, %cst_45 {dimension_numbers = #tpu.dot_dimension_numbers<[1], [0], [0], [1], [0, 0, 1, 1], [], []>} : vector<8x24xbf16>, vector<24x64xbf16>, vector<8x64xf32> -> vector<8x64xf32>
    %c114 = arith.constant 114 : index
    %c0_46 = arith.constant 0 : index
    %68 = vector.load %arg14[%c114, %c0_46] : memref<192x256xf32, #tpu.memory_space<vmem>>, vector<8x64xf32>
    tpu.vector_store %arg14[%c114, %c0_46], %67 {strides = array<i32>} : memref<192x256xf32, #tpu.memory_space<vmem>>, vector<8x64xf32>,
    %c113 = arith.constant 113 : index
    %c64_47 = arith.constant 64 : index
    %69 = vector.load %arg14[%c113, %c64_47] : memref<192x256xf32, #tpu.memory_space<vmem>>, vector<8x64xf32>
    tpu.vector_store %arg14[%c113, %c64_47], %67 {strides = array<i32>} : memref<192x256xf32, #tpu.memory_space<vmem>>, vector<8x64xf32>,
    %c112 = arith.constant 112 : index
    %c128_48 = arith.constant 128 : index
    %70 = vector.load %arg14[%c112, %c128_48] : memref<192x256xf32, #tpu.memory_space<vmem>>, vector<8x64xf32>
    tpu.vector_store %arg14[%c112, %c128_48], %67 {strides = array<i32>} : memref<192x256xf32, #tpu.memory_space<vmem>>, vector<8x64xf32>,
    %71 = vector.extract_strided_slice %16 {offsets = [312, 0], sizes = [24, 64], strides = [1, 1]} : vector<431x64xf32> to vector<24x64xf32>
    %72 = vector.extract_strided_slice %16 {offsets = [336, 0], sizes = [24, 64], strides = [1, 1]} : vector<431x64xf32> to vector<24x64xf32>
    %73 = arith.maximumf %71, %72 : vector<24x64xf32>
    %c0_49 = arith.constant 0 : index
    %c0_50 = arith.constant 0 : index
    %74 = vector.load %arg6[%c0_49, %c0_50] : memref<8x24xbf16, #tpu.memory_space<vmem>>, vector<8x24xbf16>
    %75 = arith.truncf %73 : vector<24x64xf32> to vector<24x64xbf16>
    %cst_51 = arith.constant dense<0.000000e+00> : vector<8x64xf32>
    %76 = tpu.matmul %74, %75, %cst_51 {dimension_numbers = #tpu.dot_dimension_numbers<[1], [0], [0], [1], [0, 0, 1, 1], [], []>} : vector<8x24xbf16>, vector<24x64xbf16>, vector<8x64xf32> -> vector<8x64xf32>
    %c130 = arith.constant 130 : index
    %c0_52 = arith.constant 0 : index
    %77 = vector.load %arg14[%c130, %c0_52] : memref<192x256xf32, #tpu.memory_space<vmem>>, vector<8x64xf32>
    tpu.vector_store %arg14[%c130, %c0_52], %76 {strides = array<i32>} : memref<192x256xf32, #tpu.memory_space<vmem>>, vector<8x64xf32>,
    %c129 = arith.constant 129 : index
    %c64_53 = arith.constant 64 : index
    %78 = vector.load %arg14[%c129, %c64_53] : memref<192x256xf32, #tpu.memory_space<vmem>>, vector<8x64xf32>
    tpu.vector_store %arg14[%c129, %c64_53], %76 {strides = array<i32>} : memref<192x256xf32, #tpu.memory_space<vmem>>, vector<8x64xf32>,
    %c128_54 = arith.constant 128 : index
    %c128_55 = arith.constant 128 : index
    %79 = vector.load %arg14[%c128_54, %c128_55] : memref<192x256xf32, #tpu.memory_space<vmem>>, vector<8x64xf32>
    tpu.vector_store %arg14[%c128_54, %c128_55], %76 {strides = array<i32>} : memref<192x256xf32, #tpu.memory_space<vmem>>, vector<8x64xf32>,
    %80 = vector.extract_strided_slice %16 {offsets = [360, 0], sizes = [24, 64], strides = [1, 1]} : vector<431x64xf32> to vector<24x64xf32>
    %81 = vector.extract_strided_slice %16 {offsets = [384, 0], sizes = [24, 64], strides = [1, 1]} : vector<431x64xf32> to vector<24x64xf32>
    %82 = arith.maximumf %80, %81 : vector<24x64xf32>
    %c0_56 = arith.constant 0 : index
    %c0_57 = arith.constant 0 : index
    %83 = vector.load %arg6[%c0_56, %c0_57] : memref<8x24xbf16, #tpu.memory_space<vmem>>, vector<8x24xbf16>
    %84 = arith.truncf %82 : vector<24x64xf32> to vector<24x64xbf16>
    %cst_58 = arith.constant dense<0.000000e+00> : vector<8x64xf32>
    %85 = tpu.matmul %83, %84, %cst_58 {dimension_numbers = #tpu.dot_dimension_numbers<[1], [0], [0], [1], [0, 0, 1, 1], [], []>} : vector<8x24xbf16>, vector<24x64xbf16>, vector<8x64xf32> -> vector<8x64xf32>
    %c146 = arith.constant 146 : index
    %c0_59 = arith.constant 0 : index
    %86 = vector.load %arg14[%c146, %c0_59] : memref<192x256xf32, #tpu.memory_space<vmem>>, vector<8x64xf32>
    tpu.vector_store %arg14[%c146, %c0_59], %85 {strides = array<i32>} : memref<192x256xf32, #tpu.memory_space<vmem>>, vector<8x64xf32>,
    %c145 = arith.constant 145 : index
    %c64_60 = arith.constant 64 : index
    %87 = vector.load %arg14[%c145, %c64_60] : memref<192x256xf32, #tpu.memory_space<vmem>>, vector<8x64xf32>
    tpu.vector_store %arg14[%c145, %c64_60], %85 {strides = array<i32>} : memref<192x256xf32, #tpu.memory_space<vmem>>, vector<8x64xf32>,
    %c144 = arith.constant 144 : index
    %c128_61 = arith.constant 128 : index
    %88 = vector.load %arg14[%c144, %c128_61] : memref<192x256xf32, #tpu.memory_space<vmem>>, vector<8x64xf32>
    tpu.vector_store %arg14[%c144, %c128_61], %85 {strides = array<i32>} : memref<192x256xf32, #tpu.memory_space<vmem>>, vector<8x64xf32>,
    %c1 = arith.constant 1 : index
    %c0_62 = arith.constant 0 : index
    %c0_63 = arith.constant 0 : index
    %89 = vector.load %arg5[%c1, %c0_62, %c0_63] : memref<3x1x64xf32, #tpu.memory_space<vmem>>, vector<1x1x64xf32>
    %90 = vector.shape_cast %89 : vector<1x1x64xf32> to vector<1x64xf32>
    %c0_64 = arith.constant 0 : index
    %c0_65 = arith.constant 0 : index
    %91 = vector.load %arg14[%c0_64, %c0_65] : memref<192x256xf32, #tpu.memory_space<vmem>>, vector<160x256xf32>
    %92 = arith.truncf %91 : vector<160x256xf32> to vector<160x256xbf16>
    %c0_66 = arith.constant 0 : index
    %c0_67 = arith.constant 0 : index
    %c0_68 = arith.constant 0 : index
    %93 = vector.load %arg3[%c0_66, %c0_67, %c0_68] : memref<3x256x64xbf16, #tpu.memory_space<vmem>>, vector<1x256x64xbf16>
    %94 = vector.shape_cast %93 : vector<1x256x64xbf16> to vector<256x64xbf16>
    %cst_69 = arith.constant dense<0.000000e+00> : vector<160x64xf32>
    %95 = tpu.matmul %92, %94, %cst_69 {dimension_numbers = #tpu.dot_dimension_numbers<[1], [0], [0], [1], [0, 0, 1, 1], [], []>} : vector<160x256xbf16>, vector<256x64xbf16>, vector<160x64xf32> -> vector<160x64xf32>
    %c16 = arith.constant 16 : index
    %c0_70 = arith.constant 0 : index
    %96 = vector.load %arg14[%c16, %c0_70] : memref<192x256xf32, #tpu.memory_space<vmem>>, vector<160x256xf32>
    %97 = arith.truncf %96 : vector<160x256xf32> to vector<160x256xbf16>
    %c1_71 = arith.constant 1 : index
    %c0_72 = arith.constant 0 : index
    %c0_73 = arith.constant 0 : index
    %98 = vector.load %arg3[%c1_71, %c0_72, %c0_73] : memref<3x256x64xbf16, #tpu.memory_space<vmem>>, vector<1x256x64xbf16>
    %99 = vector.shape_cast %98 : vector<1x256x64xbf16> to vector<256x64xbf16>
    %cst_74 = arith.constant dense<0.000000e+00> : vector<160x64xf32>
    %100 = tpu.matmul %97, %99, %cst_74 {dimension_numbers = #tpu.dot_dimension_numbers<[1], [0], [0], [1], [0, 0, 1, 1], [], []>} : vector<160x256xbf16>, vector<256x64xbf16>, vector<160x64xf32> -> vector<160x64xf32>
    %101 = arith.addf %95, %100 : vector<160x64xf32>
    %c32_75 = arith.constant 32 : index
    %c0_76 = arith.constant 0 : index
    %102 = vector.load %arg14[%c32_75, %c0_76] : memref<192x256xf32, #tpu.memory_space<vmem>>, vector<160x256xf32>
    %103 = arith.truncf %102 : vector<160x256xf32> to vector<160x256xbf16>
    %c2 = arith.constant 2 : index
    %c0_77 = arith.constant 0 : index
    %c0_78 = arith.constant 0 : index
    %104 = vector.load %arg3[%c2, %c0_77, %c0_78] : memref<3x256x64xbf16, #tpu.memory_space<vmem>>, vector<1x256x64xbf16>
    %105 = vector.shape_cast %104 : vector<1x256x64xbf16> to vector<256x64xbf16>
    %cst_79 = arith.constant dense<0.000000e+00> : vector<160x64xf32>
    %106 = tpu.matmul %103, %105, %cst_79 {dimension_numbers = #tpu.dot_dimension_numbers<[1], [0], [0], [1], [0, 0, 1, 1], [], []>} : vector<160x256xbf16>, vector<256x64xbf16>, vector<160x64xf32> -> vector<160x64xf32>
    %107 = arith.addf %101, %106 : vector<160x64xf32>
    %108 = vector.broadcast %90 : vector<1x64xf32> to vector<160x64xf32>
    %109 = arith.addf %107, %108 : vector<160x64xf32>
    %cst_80 = arith.constant 0.000000e+00 : f32
    %110 = vector.broadcast %cst_80 : f32 to vector<160x64xf32>
    %111 = arith.maximumf %109, %110 : vector<160x64xf32>
    %112 = vector.extract_strided_slice %111 {offsets = [0, 0], sizes = [159, 64], strides = [1, 1]} : vector<160x64xf32> to vector<159x64xf32>
    %113 = vector.extract_strided_slice %111 {offsets = [1, 0], sizes = [159, 64], strides = [1, 1]} : vector<160x64xf32> to vector<159x64xf32>
    %114 = arith.maximumf %112, %113 : vector<159x64xf32>
    %115 = vector.extract_strided_slice %114 {offsets = [16, 0], sizes = [16, 64], strides = [1, 1]} : vector<159x64xf32> to vector<16x64xf32>
    %116 = vector.extract_strided_slice %114 {offsets = [32, 0], sizes = [16, 64], strides = [1, 1]} : vector<159x64xf32> to vector<16x64xf32>
    %117 = arith.maximumf %115, %116 : vector<16x64xf32>
    %c0_81 = arith.constant 0 : index
    %c0_82 = arith.constant 0 : index
    %118 = vector.load %arg7[%c0_81, %c0_82] : memref<4x16xbf16, #tpu.memory_space<vmem>>, vector<4x16xbf16>
    %119 = arith.truncf %117 : vector<16x64xf32> to vector<16x64xbf16>
    %cst_83 = arith.constant dense<0.000000e+00> : vector<4x64xf32>
    %120 = tpu.matmul %118, %119, %cst_83 {dimension_numbers = #tpu.dot_dimension_numbers<[1], [0], [0], [1], [0, 0, 1, 1], [], []>} : vector<4x16xbf16>, vector<16x64xbf16>, vector<4x64xf32> -> vector<4x64xf32>
    %c18 = arith.constant 18 : index
    %c0_84 = arith.constant 0 : index
    %121 = vector.load %arg15[%c18, %c0_84] : memref<64x256xf32, #tpu.memory_space<vmem>>, vector<4x64xf32>
    tpu.vector_store %arg15[%c18, %c0_84], %120 {strides = array<i32>} : memref<64x256xf32, #tpu.memory_space<vmem>>, vector<4x64xf32>,
    %c17 = arith.constant 17 : index
    %c64_85 = arith.constant 64 : index
    %122 = vector.load %arg15[%c17, %c64_85] : memref<64x256xf32, #tpu.memory_space<vmem>>, vector<4x64xf32>
    tpu.vector_store %arg15[%c17, %c64_85], %120 {strides = array<i32>} : memref<64x256xf32, #tpu.memory_space<vmem>>, vector<4x64xf32>,
    %c16_86 = arith.constant 16 : index
    %c128_87 = arith.constant 128 : index
    %123 = vector.load %arg15[%c16_86, %c128_87] : memref<64x256xf32, #tpu.memory_space<vmem>>, vector<4x64xf32>
    tpu.vector_store %arg15[%c16_86, %c128_87], %120 {strides = array<i32>} : memref<64x256xf32, #tpu.memory_space<vmem>>, vector<4x64xf32>,
    %124 = vector.extract_strided_slice %114 {offsets = [48, 0], sizes = [16, 64], strides = [1, 1]} : vector<159x64xf32> to vector<16x64xf32>
    %125 = vector.extract_strided_slice %114 {offsets = [64, 0], sizes = [16, 64], strides = [1, 1]} : vector<159x64xf32> to vector<16x64xf32>
    %126 = arith.maximumf %124, %125 : vector<16x64xf32>
    %c0_88 = arith.constant 0 : index
    %c0_89 = arith.constant 0 : index
    %127 = vector.load %arg7[%c0_88, %c0_89] : memref<4x16xbf16, #tpu.memory_space<vmem>>, vector<4x16xbf16>
    %128 = arith.truncf %126 : vector<16x64xf32> to vector<16x64xbf16>
    %cst_90 = arith.constant dense<0.000000e+00> : vector<4x64xf32>
    %129 = tpu.matmul %127, %128, %cst_90 {dimension_numbers = #tpu.dot_dimension_numbers<[1], [0], [0], [1], [0, 0, 1, 1], [], []>} : vector<4x16xbf16>, vector<16x64xbf16>, vector<4x64xf32> -> vector<4x64xf32>
    %c26 = arith.constant 26 : index
    %c0_91 = arith.constant 0 : index
    %130 = vector.load %arg15[%c26, %c0_91] : memref<64x256xf32, #tpu.memory_space<vmem>>, vector<4x64xf32>
    tpu.vector_store %arg15[%c26, %c0_91], %129 {strides = array<i32>} : memref<64x256xf32, #tpu.memory_space<vmem>>, vector<4x64xf32>,
    %c25 = arith.constant 25 : index
    %c64_92 = arith.constant 64 : index
    %131 = vector.load %arg15[%c25, %c64_92] : memref<64x256xf32, #tpu.memory_space<vmem>>, vector<4x64xf32>
    tpu.vector_store %arg15[%c25, %c64_92], %129 {strides = array<i32>} : memref<64x256xf32, #tpu.memory_space<vmem>>, vector<4x64xf32>,
    %c24 = arith.constant 24 : index
    %c128_93 = arith.constant 128 : index
    %132 = vector.load %arg15[%c24, %c128_93] : memref<64x256xf32, #tpu.memory_space<vmem>>, vector<4x64xf32>
    tpu.vector_store %arg15[%c24, %c128_93], %129 {strides = array<i32>} : memref<64x256xf32, #tpu.memory_space<vmem>>, vector<4x64xf32>,
    %133 = vector.extract_strided_slice %114 {offsets = [80, 0], sizes = [16, 64], strides = [1, 1]} : vector<159x64xf32> to vector<16x64xf32>
    %134 = vector.extract_strided_slice %114 {offsets = [96, 0], sizes = [16, 64], strides = [1, 1]} : vector<159x64xf32> to vector<16x64xf32>
    %135 = arith.maximumf %133, %134 : vector<16x64xf32>
    %c0_94 = arith.constant 0 : index
    %c0_95 = arith.constant 0 : index
    %136 = vector.load %arg7[%c0_94, %c0_95] : memref<4x16xbf16, #tpu.memory_space<vmem>>, vector<4x16xbf16>
    %137 = arith.truncf %135 : vector<16x64xf32> to vector<16x64xbf16>
    %cst_96 = arith.constant dense<0.000000e+00> : vector<4x64xf32>
    %138 = tpu.matmul %136, %137, %cst_96 {dimension_numbers = #tpu.dot_dimension_numbers<[1], [0], [0], [1], [0, 0, 1, 1], [], []>} : vector<4x16xbf16>, vector<16x64xbf16>, vector<4x64xf32> -> vector<4x64xf32>
    %c34_97 = arith.constant 34 : index
    %c0_98 = arith.constant 0 : index
    %139 = vector.load %arg15[%c34_97, %c0_98] : memref<64x256xf32, #tpu.memory_space<vmem>>, vector<4x64xf32>
    tpu.vector_store %arg15[%c34_97, %c0_98], %138 {strides = array<i32>} : memref<64x256xf32, #tpu.memory_space<vmem>>, vector<4x64xf32>,
    %c33_99 = arith.constant 33 : index
    %c64_100 = arith.constant 64 : index
    %140 = vector.load %arg15[%c33_99, %c64_100] : memref<64x256xf32, #tpu.memory_space<vmem>>, vector<4x64xf32>
    tpu.vector_store %arg15[%c33_99, %c64_100], %138 {strides = array<i32>} : memref<64x256xf32, #tpu.memory_space<vmem>>, vector<4x64xf32>,
    %c32_101 = arith.constant 32 : index
    %c128_102 = arith.constant 128 : index
    %141 = vector.load %arg15[%c32_101, %c128_102] : memref<64x256xf32, #tpu.memory_space<vmem>>, vector<4x64xf32>
    tpu.vector_store %arg15[%c32_101, %c128_102], %138 {strides = array<i32>} : memref<64x256xf32, #tpu.memory_space<vmem>>, vector<4x64xf32>,
    %142 = vector.extract_strided_slice %114 {offsets = [112, 0], sizes = [16, 64], strides = [1, 1]} : vector<159x64xf32> to vector<16x64xf32>
    %143 = vector.extract_strided_slice %114 {offsets = [128, 0], sizes = [16, 64], strides = [1, 1]} : vector<159x64xf32> to vector<16x64xf32>
    %144 = arith.maximumf %142, %143 : vector<16x64xf32>
    %c0_103 = arith.constant 0 : index
    %c0_104 = arith.constant 0 : index
    %145 = vector.load %arg7[%c0_103, %c0_104] : memref<4x16xbf16, #tpu.memory_space<vmem>>, vector<4x16xbf16>
    %146 = arith.truncf %144 : vector<16x64xf32> to vector<16x64xbf16>
    %cst_105 = arith.constant dense<0.000000e+00> : vector<4x64xf32>
    %147 = tpu.matmul %145, %146, %cst_105 {dimension_numbers = #tpu.dot_dimension_numbers<[1], [0], [0], [1], [0, 0, 1, 1], [], []>} : vector<4x16xbf16>, vector<16x64xbf16>, vector<4x64xf32> -> vector<4x64xf32>
    %c42 = arith.constant 42 : index
    %c0_106 = arith.constant 0 : index
    %148 = vector.load %arg15[%c42, %c0_106] : memref<64x256xf32, #tpu.memory_space<vmem>>, vector<4x64xf32>
    tpu.vector_store %arg15[%c42, %c0_106], %147 {strides = array<i32>} : memref<64x256xf32, #tpu.memory_space<vmem>>, vector<4x64xf32>,
    %c41 = arith.constant 41 : index
    %c64_107 = arith.constant 64 : index
    %149 = vector.load %arg15[%c41, %c64_107] : memref<64x256xf32, #tpu.memory_space<vmem>>, vector<4x64xf32>
    tpu.vector_store %arg15[%c41, %c64_107], %147 {strides = array<i32>} : memref<64x256xf32, #tpu.memory_space<vmem>>, vector<4x64xf32>,
    %c40 = arith.constant 40 : index
    %c128_108 = arith.constant 128 : index
    %150 = vector.load %arg15[%c40, %c128_108] : memref<64x256xf32, #tpu.memory_space<vmem>>, vector<4x64xf32>
    tpu.vector_store %arg15[%c40, %c128_108], %147 {strides = array<i32>} : memref<64x256xf32, #tpu.memory_space<vmem>>, vector<4x64xf32>,
    %c2_109 = arith.constant 2 : index
    %c0_110 = arith.constant 0 : index
    %c0_111 = arith.constant 0 : index
    %151 = vector.load %arg5[%c2_109, %c0_110, %c0_111] : memref<3x1x64xf32, #tpu.memory_space<vmem>>, vector<1x1x64xf32>
    %152 = vector.shape_cast %151 : vector<1x1x64xf32> to vector<1x64xf32>
    %c0_112 = arith.constant 0 : index
    %c0_113 = arith.constant 0 : index
    %153 = vector.load %arg15[%c0_112, %c0_113] : memref<64x256xf32, #tpu.memory_space<vmem>>, vector<48x256xf32>
    %154 = arith.truncf %153 : vector<48x256xf32> to vector<48x256xbf16>
    %c0_114 = arith.constant 0 : index
    %c0_115 = arith.constant 0 : index
    %c0_116 = arith.constant 0 : index
    %155 = vector.load %arg4[%c0_114, %c0_115, %c0_116] : memref<3x256x64xbf16, #tpu.memory_space<vmem>>, vector<1x256x64xbf16>
    %156 = vector.shape_cast %155 : vector<1x256x64xbf16> to vector<256x64xbf16>
    %cst_117 = arith.constant dense<0.000000e+00> : vector<48x64xf32>
    %157 = tpu.matmul %154, %156, %cst_117 {dimension_numbers = #tpu.dot_dimension_numbers<[1], [0], [0], [1], [0, 0, 1, 1], [], []>} : vector<48x256xbf16>, vector<256x64xbf16>, vector<48x64xf32> -> vector<48x64xf32>
    %c8 = arith.constant 8 : index
    %c0_118 = arith.constant 0 : index
    %158 = vector.load %arg15[%c8, %c0_118] : memref<64x256xf32, #tpu.memory_space<vmem>>, vector<48x256xf32>
    %159 = arith.truncf %158 : vector<48x256xf32> to vector<48x256xbf16>
    %c1_119 = arith.constant 1 : index
    %c0_120 = arith.constant 0 : index
    %c0_121 = arith.constant 0 : index
    %160 = vector.load %arg4[%c1_119, %c0_120, %c0_121] : memref<3x256x64xbf16, #tpu.memory_space<vmem>>, vector<1x256x64xbf16>
    %161 = vector.shape_cast %160 : vector<1x256x64xbf16> to vector<256x64xbf16>
    %cst_122 = arith.constant dense<0.000000e+00> : vector<48x64xf32>
    %162 = tpu.matmul %159, %161, %cst_122 {dimension_numbers = #tpu.dot_dimension_numbers<[1], [0], [0], [1], [0, 0, 1, 1], [], []>} : vector<48x256xbf16>, vector<256x64xbf16>, vector<48x64xf32> -> vector<48x64xf32>
    %163 = arith.addf %157, %162 : vector<48x64xf32>
    %c16_123 = arith.constant 16 : index
    %c0_124 = arith.constant 0 : index
    %164 = vector.load %arg15[%c16_123, %c0_124] : memref<64x256xf32, #tpu.memory_space<vmem>>, vector<48x256xf32>
    %165 = arith.truncf %164 : vector<48x256xf32> to vector<48x256xbf16>
    %c2_125 = arith.constant 2 : index
    %c0_126 = arith.constant 0 : index
    %c0_127 = arith.constant 0 : index
    %166 = vector.load %arg4[%c2_125, %c0_126, %c0_127] : memref<3x256x64xbf16, #tpu.memory_space<vmem>>, vector<1x256x64xbf16>
    %167 = vector.shape_cast %166 : vector<1x256x64xbf16> to vector<256x64xbf16>
    %cst_128 = arith.constant dense<0.000000e+00> : vector<48x64xf32>
    %168 = tpu.matmul %165, %167, %cst_128 {dimension_numbers = #tpu.dot_dimension_numbers<[1], [0], [0], [1], [0, 0, 1, 1], [], []>} : vector<48x256xbf16>, vector<256x64xbf16>, vector<48x64xf32> -> vector<48x64xf32>
    %169 = arith.addf %163, %168 : vector<48x64xf32>
    %170 = vector.broadcast %152 : vector<1x64xf32> to vector<48x64xf32>
    %171 = arith.addf %169, %170 : vector<48x64xf32>
    %cst_129 = arith.constant 0.000000e+00 : f32
    %172 = vector.broadcast %cst_129 : f32 to vector<48x64xf32>
    %173 = arith.maximumf %171, %172 : vector<48x64xf32>
    %174 = vector.extract_strided_slice %173 {offsets = [0, 0], sizes = [47, 64], strides = [1, 1]} : vector<48x64xf32> to vector<47x64xf32>
    %175 = vector.extract_strided_slice %173 {offsets = [1, 0], sizes = [47, 64], strides = [1, 1]} : vector<48x64xf32> to vector<47x64xf32>
    %176 = arith.maximumf %174, %175 : vector<47x64xf32>
    %177 = vector.extract_strided_slice %176 {offsets = [8, 0], sizes = [8, 64], strides = [1, 1]} : vector<47x64xf32> to vector<8x64xf32>
    %178 = vector.extract_strided_slice %176 {offsets = [16, 0], sizes = [8, 64], strides = [1, 1]} : vector<47x64xf32> to vector<8x64xf32>
    %179 = arith.maximumf %177, %178 : vector<8x64xf32>
    %c0_130 = arith.constant 0 : index
    %c0_131 = arith.constant 0 : index
    %180 = vector.load %arg8[%c0_130, %c0_131] : memref<2x8xbf16, #tpu.memory_space<vmem>>, vector<2x8xbf16>
    %181 = arith.truncf %179 : vector<8x64xf32> to vector<8x64xbf16>
    %cst_132 = arith.constant dense<0.000000e+00> : vector<2x64xf32>
    %182 = tpu.matmul %180, %181, %cst_132 {dimension_numbers = #tpu.dot_dimension_numbers<[1], [0], [0], [1], [0, 0, 1, 1], [], []>} : vector<2x8xbf16>, vector<8x64xbf16>, vector<2x64xf32> -> vector<2x64xf32>
    %183 = arith.truncf %182 : vector<2x64xf32> to vector<2x64xbf16>
    %c0_133 = arith.constant 0 : index
    %c0_134 = arith.constant 0 : index
    %184 = vector.load %arg9[%c0_133, %c0_134] : memref<128x64xbf16, #tpu.memory_space<vmem>>, vector<64x64xbf16>
    %cst_135 = arith.constant dense<0.000000e+00> : vector<2x64xf32>
    %185 = tpu.matmul %183, %184, %cst_135 {dimension_numbers = #tpu.dot_dimension_numbers<[1], [0], [0], [1], [0, 0, 1, 1], [], []>} : vector<2x64xbf16>, vector<64x64xbf16>, vector<2x64xf32> -> vector<2x64xf32>
    %186 = vector.extract_strided_slice %176 {offsets = [24, 0], sizes = [8, 64], strides = [1, 1]} : vector<47x64xf32> to vector<8x64xf32>
    %187 = vector.extract_strided_slice %176 {offsets = [32, 0], sizes = [8, 64], strides = [1, 1]} : vector<47x64xf32> to vector<8x64xf32>
    %188 = arith.maximumf %186, %187 : vector<8x64xf32>
    %c0_136 = arith.constant 0 : index
    %c0_137 = arith.constant 0 : index
    %189 = vector.load %arg8[%c0_136, %c0_137] : memref<2x8xbf16, #tpu.memory_space<vmem>>, vector<2x8xbf16>
    %190 = arith.truncf %188 : vector<8x64xf32> to vector<8x64xbf16>
    %cst_138 = arith.constant dense<0.000000e+00> : vector<2x64xf32>
    %191 = tpu.matmul %189, %190, %cst_138 {dimension_numbers = #tpu.dot_dimension_numbers<[1], [0], [0], [1], [0, 0, 1, 1], [], []>} : vector<2x8xbf16>, vector<8x64xbf16>, vector<2x64xf32> -> vector<2x64xf32>
    %192 = arith.truncf %191 : vector<2x64xf32> to vector<2x64xbf16>
    %c64_139 = arith.constant 64 : index
    %c0_140 = arith.constant 0 : index
    %193 = vector.load %arg9[%c64_139, %c0_140] : memref<128x64xbf16, #tpu.memory_space<vmem>>, vector<64x64xbf16>
    %cst_141 = arith.constant dense<0.000000e+00> : vector<2x64xf32>
    %194 = tpu.matmul %192, %193, %cst_141 {dimension_numbers = #tpu.dot_dimension_numbers<[1], [0], [0], [1], [0, 0, 1, 1], [], []>} : vector<2x64xbf16>, vector<64x64xbf16>, vector<2x64xf32> -> vector<2x64xf32>
    %195 = arith.addf %185, %194 : vector<2x64xf32>
    %c0_142 = arith.constant 0 : index
    %c0_143 = arith.constant 0 : index
    %196 = vector.load %arg10[%c0_142, %c0_143] : memref<1x64xf32, #tpu.memory_space<vmem>>, vector<1x64xf32>
    %197 = vector.broadcast %196 : vector<1x64xf32> to vector<2x64xf32>
    %198 = arith.addf %195, %197 : vector<2x64xf32>
    %cst_144 = arith.constant 0.000000e+00 : f32
    %199 = vector.broadcast %cst_144 : f32 to vector<2x64xf32>
    %200 = arith.maximumf %198, %199 : vector<2x64xf32>
    %201 = arith.truncf %200 : vector<2x64xf32> to vector<2x64xbf16>
    %c0_145 = arith.constant 0 : index
    %c0_146 = arith.constant 0 : index
    %202 = vector.load %arg11[%c0_145, %c0_146] : memref<64x64xbf16, #tpu.memory_space<vmem>>, vector<64x64xbf16>
    %cst_147 = arith.constant dense<0.000000e+00> : vector<2x64xf32>
    %203 = tpu.matmul %201, %202, %cst_147 {dimension_numbers = #tpu.dot_dimension_numbers<[1], [0], [0], [1], [0, 0, 1, 1], [], []>} : vector<2x64xbf16>, vector<64x64xbf16>, vector<2x64xf32> -> vector<2x64xf32>
    %c0_148 = arith.constant 0 : index
    %c0_149 = arith.constant 0 : index
    %204 = vector.load %arg12[%c0_148, %c0_149] : memref<1x64xf32, #tpu.memory_space<vmem>>, vector<1x64xf32>
    %205 = vector.broadcast %204 : vector<1x64xf32> to vector<2x64xf32>
    %206 = arith.addf %203, %205 : vector<2x64xf32>
    %cst_150 = arith.constant 0.000000e+00 : f32
    %207 = vector.broadcast %cst_150 : f32 to vector<2x64xf32>
    %208 = arith.maximumf %206, %207 : vector<2x64xf32>
    %cst_151 = arith.constant dense<0xFF800000> : vector<64xf32>
    %209 = vector.multi_reduction <maximumf>, %208, %cst_151 [0] : vector<2x64xf32> to vector<64xf32>
    %210 = vector.shape_cast %209 : vector<64xf32> to vector<1x64xf32>
    %cst_152 = arith.constant dense<0.000000e+00> : vector<64xf32>
    %211 = vector.multi_reduction <add>, %208, %cst_152 [0] : vector<2x64xf32> to vector<64xf32>
    %212 = vector.shape_cast %211 : vector<64xf32> to vector<1x64xf32>
    %cst_153 = arith.constant 2.000000e+00 : f32
    %213 = vector.broadcast %cst_153 : f32 to vector<1x64xf32>
    %214 = arith.divf %212, %213 : vector<1x64xf32>
    %215 = arith.addf %210, %214 : vector<1x64xf32>
    %c0_154 = arith.constant 0 : index
    %c0_155 = arith.constant 0 : index
    %c0_156 = arith.constant 0 : index
    %216 = vector.load %arg13[%c0_154, %c0_155, %c0_156] : memref<1x1x64xf32, #tpu.memory_space<vmem>>, vector<1x1x64xf32>
    %217 = vector.shape_cast %216 : vector<1x1x64xf32> to vector<1x64xf32>
    %218 = vector.shape_cast %215 : vector<1x64xf32> to vector<1x1x64xf32>
    tpu.vector_store %arg13[%c0_154, %c0_155, %c0_156], %218 {strides = array<i32>} : memref<1x1x64xf32, #tpu.memory_space<vmem>>, vector<1x1x64xf32>,
    return
  }
  func.func @transform_0(%arg0: i32) -> (i32, i32, i32) {
    %c0_i32 = arith.constant 0 : i32
    %c0_i32_0 = arith.constant 0 : i32
    %c0_i32_1 = arith.constant 0 : i32
    return %arg0, %c0_i32, %c0_i32_0 : i32, i32, i32
  }
  func.func @transform_1(%arg0: i32) -> (i32, i32) {
    %c0_i32 = arith.constant 0 : i32
    %c0_i32_0 = arith.constant 0 : i32
    %c0_i32_1 = arith.constant 0 : i32
    return %c0_i32, %c0_i32_0 : i32, i32
  }
  func.func @transform_2(%arg0: i32) -> (i32, i32, i32) {
    %c0_i32 = arith.constant 0 : i32
    %c0_i32_0 = arith.constant 0 : i32
    %c0_i32_1 = arith.constant 0 : i32
    %c0_i32_2 = arith.constant 0 : i32
    return %c0_i32, %c0_i32_0, %c0_i32_1 : i32, i32, i32
  }
  func.func @transform_3(%arg0: i32) -> (i32, i32, i32) {
    %c0_i32 = arith.constant 0 : i32
    %c0_i32_0 = arith.constant 0 : i32
    %c0_i32_1 = arith.constant 0 : i32
    %c0_i32_2 = arith.constant 0 : i32
    return %c0_i32, %c0_i32_0, %c0_i32_1 : i32, i32, i32
  }
  func.func @transform_4(%arg0: i32) -> (i32, i32, i32) {
    %c0_i32 = arith.constant 0 : i32
    %c0_i32_0 = arith.constant 0 : i32
    %c0_i32_1 = arith.constant 0 : i32
    %c0_i32_2 = arith.constant 0 : i32
    return %c0_i32, %c0_i32_0, %c0_i32_1 : i32, i32, i32
  }
  func.func @transform_5(%arg0: i32) -> (i32, i32) {
    %c0_i32 = arith.constant 0 : i32
    %c0_i32_0 = arith.constant 0 : i32
    %c0_i32_1 = arith.constant 0 : i32
    return %c0_i32, %c0_i32_0 : i32, i32
  }
  func.func @transform_6(%arg0: i32) -> (i32, i32) {
    %c0_i32 = arith.constant 0 : i32
    %c0_i32_0 = arith.constant 0 : i32
    %c0_i32_1 = arith.constant 0 : i32
    return %c0_i32, %c0_i32_0 : i32, i32
  }
  func.func @transform_7(%arg0: i32) -> (i32, i32) {
    %c0_i32 = arith.constant 0 : i32
    %c0_i32_0 = arith.constant 0 : i32
    %c0_i32_1 = arith.constant 0 : i32
    return %c0_i32, %c0_i32_0 : i32, i32
  }
  func.func @transform_8(%arg0: i32) -> (i32, i32) {
    %c0_i32 = arith.constant 0 : i32
    %c0_i32_0 = arith.constant 0 : i32
    %c0_i32_1 = arith.constant 0 : i32
    return %c0_i32, %c0_i32_0 : i32, i32
  }
  func.func @transform_9(%arg0: i32) -> (i32, i32) {
    %c0_i32 = arith.constant 0 : i32
    %c0_i32_0 = arith.constant 0 : i32
    %c0_i32_1 = arith.constant 0 : i32
    return %c0_i32, %c0_i32_0 : i32, i32
  }
  func.func @transform_10(%arg0: i32) -> (i32, i32) {
    %c0_i32 = arith.constant 0 : i32
    %c0_i32_0 = arith.constant 0 : i32
    %c0_i32_1 = arith.constant 0 : i32
    return %c0_i32, %c0_i32_0 : i32, i32
  }
  func.func @transform_11(%arg0: i32) -> (i32, i32) {
    %c0_i32 = arith.constant 0 : i32
    %c0_i32_0 = arith.constant 0 : i32
    %c0_i32_1 = arith.constant 0 : i32
    return %c0_i32, %c0_i32_0 : i32, i32
  }
  func.func @transform_12(%arg0: i32) -> (i32, i32, i32) {
    %c0_i32 = arith.constant 0 : i32
    %c0_i32_0 = arith.constant 0 : i32
    %c0_i32_1 = arith.constant 0 : i32
    return %arg0, %c0_i32, %c0_i32_0 : i32, i32, i32
  }
}

</mosaic_0001>

<llo_original>
// kernel: forward.1
$region0: #{forward.1}
  #allocation0 [shape = 'u32[]', space=smem, size = 0x4, offset = 0x4, fixed_abs, tag = 'smem constant byte address 0x4 - core index']
  #allocation1 [shape = 'u32[144,128]{1,0:T(1,128)}', space=vmem, size = 0x12000, scoped, tag = 'internal scratch']
  #allocation2 [shape = 'f32[192,256]{1,0:T(8,128)}', space=vmem, size = 0x30000, scoped, tag = 'scratch operand']
  #allocation3 [shape = 'f32[64,256]{1,0:T(8,128)}', space=vmem, size = 0x10000, scoped, tag = 'scratch operand']
  %s0 = inlined_call_operand.vmem [shape: bf16[2,432,16], index: 0, kind: input, shape index: {}]
  %s1 = inlined_call_operand.vmem [shape: bf16[16,64], index: 1, kind: input, shape index: {}]
  %s2 = inlined_call_operand.vmem [shape: bf16[3,256,64], index: 2, kind: input, shape index: {}]
  %s3 = inlined_call_operand.vmem [shape: bf16[3,256,64], index: 3, kind: input, shape index: {}]
  %s4 = inlined_call_operand.vmem [shape: f32[3,1,64], index: 4, kind: input, shape index: {}]
  %s5 = inlined_call_operand.vmem [shape: bf16[8,24], index: 5, kind: input, shape index: {}]
  %s6 = inlined_call_operand.vmem [shape: bf16[4,16], index: 6, kind: input, shape index: {}]
  %s7 = inlined_call_operand.vmem [shape: bf16[2,8], index: 7, kind: input, shape index: {}]
  %s8 = inlined_call_operand.vmem [shape: bf16[128,64], index: 8, kind: input, shape index: {}]
  %s9 = inlined_call_operand.vmem [shape: f32[1,64], index: 9, kind: input, shape index: {}]
  %s10 = inlined_call_operand.vmem [shape: bf16[64,64], index: 10, kind: input, shape index: {}]
  %s11 = inlined_call_operand.vmem [shape: f32[1,64], index: 11, kind: input, shape index: {}]
  %s12 = inlined_call_operand.hbm [shape: f32[2,1,64], index: 12, kind: output, shape index: {}]
  %s13 = sld [smem:[#allocation0]]
  $region81: #{forward.1} parent=0
    _
  %s15 = ssub.s32 1, %s13
  %s16 = scalar_select 0, %s15, %s13
  $region1: #{forward.1} parent=0
    #allocation4 [shape = 'u8[1024]{0}', space=vmem, size = 0x400, scoped, tag = 'output window, operand 0']
    #allocation5 [shape = 's32[2]{0}', space=sflag, size = 0x8, scoped, tag = 'scoped memory for forward.1']
    %17 = vsyncpa [#allocation5], 0
    %s18 = scalar_lea.sflag [#allocation5], 1
    %19 = vsyncpa %s18, 0
    loop: start=0, step=1, limit=4
    $region2: #{forward.1} parent=1 // loop_pre_header
      _
    $region3: #{forward.1} parent=1 // loop_header
      %s21 = sphi 0, %s25
      %p22 = scmp.ge.s32.totalorder %s21, 4
      %s31 = sphi 0, %s33
      %s34 = sphi 0, %s31
      %s35 = sphi 0, %s34
      %s51 = sphi 0, %s35
      %s55 = sphi 0, %s55
      %s57 = sphi 0, %s55
      %s58 = sphi 0, %s57
      %s72 = sphi 0, %s58
      %s76 = sphi 0, %s76
      %s78 = sphi 0, %s76
      %s79 = sphi 0, %s78
      %s93 = sphi 0, %s79
      %s97 = sphi 0, %s97
      %s99 = sphi 0, %s97
      %s100 = sphi 0, %s99
      %s114 = sphi 0, %s100
      %s118 = sphi 0, %s118
      %s120 = sphi 0, %s118
      %s121 = sphi 0, %s120
      %s135 = sphi 0, %s121
      %s139 = sphi 0, %s139
      %s141 = sphi 0, %s139
      %s142 = sphi 0, %s141
      %s156 = sphi 0, %s142
      %s160 = sphi 0, %s160
      %s162 = sphi 0, %s160
      %s163 = sphi 0, %s162
      %s177 = sphi 0, %s163
      %s181 = sphi 0, %s181
      %s183 = sphi 0, %s181
      %s184 = sphi 0, %s183
      %s198 = sphi 0, %s184
      %s202 = sphi 0, %s202
      %s204 = sphi 0, %s202
      %s205 = sphi 0, %s204
      %s219 = sphi 0, %s205
      %s223 = sphi 0, %s223
      %s225 = sphi 0, %s223
      %s226 = sphi 0, %s225
      %s240 = sphi 0, %s226
      %s244 = sphi 0, %s244
      %s246 = sphi 0, %s244
      %s247 = sphi 0, %s246
      %s261 = sphi 0, %s247
      %s265 = sphi 0, %s265
      %s267 = sphi 0, %s265
      %s268 = sphi 0, %s267
      %s282 = sphi 0, %s268
      %s288 = sphi 0, %s290
      %s291 = sphi 0, %s288
      %s292 = sphi 0, %s291
      %s308 = sphi 0, %s292
    $region4: #{forward.1} parent=1 // loop_header_branch
      %24 = sbr.rel (%p22) target = $region8
    $region5: #{forward.1} parent=1 // loop_body
      %s26 = ssub.s32 %s21, 1
      %s27 = ssub.s32 %s21, 2
      %s28 = sadd.s32 %s21, 1
      %s29 = ssub.s32 %s21, %s28
      %p30 = scmp.eq.s32.totalorder %s29, 0
      %s32 = sadd.s32 %s31, 1
      %s33 = scalar_select %p30, %s31, %s32
      %p36 = pneg %p30
      %p37 = scmp.eq.s32.totalorder %s21, 1
      %p38 = por %p36, %p37
      %p39 = scmp.ne.s32.totalorder %s31, %s34
      %p40 = scmp.eq.s32.totalorder %s21, 0
      %p41 = por %p39, %p40
      %p42 = scmp.ne.s32.totalorder %s31, %s34
      %p43 = scmp.eq.s32.totalorder %s26, 1
      %p44 = por %p42, %p43
      %p45 = scmp.ne.s32.totalorder %s34, %s35
      %p46 = scmp.eq.s32.totalorder %s26, 0
      %p47 = por %p45, %p46
      %p48 = scmp.ne.s32.totalorder %s34, %s35
      %p49 = scmp.eq.s32.totalorder %s27, 1
      %p50 = por %p48, %p49
      %p52 = scmp.ne.s32.totalorder %s35, %s51
      %p53 = scmp.eq.s32.totalorder %s27, 0
      %p54 = por %p52, %p53
      %s56 = sadd.s32 %s55, 1
      %p59 = scmp.eq.s32.totalorder %s21, 1
      %p60 = scmp.ne.s32.totalorder %s55, %s57
      %p61 = scmp.eq.s32.totalorder %s21, 0
      %p62 = por %p60, %p61
      %p63 = scmp.ne.s32.totalorder %s55, %s57
      %p64 = scmp.eq.s32.totalorder %s26, 1
      %p65 = por %p63, %p64
      %p66 = scmp.ne.s32.totalorder %s57, %s58
      %p67 = scmp.eq.s32.totalorder %s26, 0
      %p68 = por %p66, %p67
      %p69 = scmp.ne.s32.totalorder %s57, %s58
      %p70 = scmp.eq.s32.totalorder %s27, 1
      %p71 = por %p69, %p70
      %p73 = scmp.ne.s32.totalorder %s58, %s72
      %p74 = scmp.eq.s32.totalorder %s27, 0
      %p75 = por %p73, %p74
      %s77 = sadd.s32 %s76, 1
      %p80 = scmp.eq.s32.totalorder %s21, 1
      %p81 = scmp.ne.s32.totalorder %s76, %s78
      %p82 = scmp.eq.s32.totalorder %s21, 0
      %p83 = por %p81, %p82
      %p84 = scmp.ne.s32.totalorder %s76, %s78
      %p85 = scmp.eq.s32.totalorder %s26, 1
      %p86 = por %p84, %p85
      %p87 = scmp.ne.s32.totalorder %s78, %s79
      %p88 = scmp.eq.s32.totalorder %s26, 0
      %p89 = por %p87, %p88
      %p90 = scmp.ne.s32.totalorder %s78, %s79
      %p91 = scmp.eq.s32.totalorder %s27, 1
      %p92 = por %p90, %p91
      %p94 = scmp.ne.s32.totalorder %s79, %s93
      %p95 = scmp.eq.s32.totalorder %s27, 0
      %p96 = por %p94, %p95
      %s98 = sadd.s32 %s97, 1
      %p101 = scmp.eq.s32.totalorder %s21, 1
      %p102 = scmp.ne.s32.totalorder %s97, %s99
      %p103 = scmp.eq.s32.totalorder %s21, 0
      %p104 = por %p102, %p103
      %p105 = scmp.ne.s32.totalorder %s97, %s99
      %p106 = scmp.eq.s32.totalorder %s26, 1
      %p107 = por %p105, %p106
      %p108 = scmp.ne.s32.totalorder %s99, %s100
      %p109 = scmp.eq.s32.totalorder %s26, 0
      %p110 = por %p108, %p109
      %p111 = scmp.ne.s32.totalorder %s99, %s100
      %p112 = scmp.eq.s32.totalorder %s27, 1
      %p113 = por %p111, %p112
      %p115 = scmp.ne.s32.totalorder %s100, %s114
      %p116 = scmp.eq.s32.totalorder %s27, 0
      %p117 = por %p115, %p116
      %s119 = sadd.s32 %s118, 1
      %p122 = scmp.eq.s32.totalorder %s21, 1
      %p123 = scmp.ne.s32.totalorder %s118, %s120
      %p124 = scmp.eq.s32.totalorder %s21, 0
      %p125 = por %p123, %p124
      %p126 = scmp.ne.s32.totalorder %s118, %s120
      %p127 = scmp.eq.s32.totalorder %s26, 1
      %p128 = por %p126, %p127
      %p129 = scmp.ne.s32.totalorder %s120, %s121
      %p130 = scmp.eq.s32.totalorder %s26, 0
      %p131 = por %p129, %p130
      %p132 = scmp.ne.s32.totalorder %s120, %s121
      %p133 = scmp.eq.s32.totalorder %s27, 1
      %p134 = por %p132, %p133
      %p136 = scmp.ne.s32.totalorder %s121, %s135
      %p137 = scmp.eq.s32.totalorder %s27, 0
      %p138 = por %p136, %p137
      %s140 = sadd.s32 %s139, 1
      %p143 = scmp.eq.s32.totalorder %s21, 1
      %p144 = scmp.ne.s32.totalorder %s139, %s141
      %p145 = scmp.eq.s32.totalorder %s21, 0
      %p146 = por %p144, %p145
      %p147 = scmp.ne.s32.totalorder %s139, %s141
      %p148 = scmp.eq.s32.totalorder %s26, 1
      %p149 = por %p147, %p148
      %p150 = scmp.ne.s32.totalorder %s141, %s142
      %p151 = scmp.eq.s32.totalorder %s26, 0
      %p152 = por %p150, %p151
      %p153 = scmp.ne.s32.totalorder %s141, %s142
      %p154 = scmp.eq.s32.totalorder %s27, 1
      %p155 = por %p153, %p154
      %p157 = scmp.ne.s32.totalorder %s142, %s156
      %p158 = scmp.eq.s32.totalorder %s27, 0
      %p159 = por %p157, %p158
      %s161 = sadd.s32 %s160, 1
      %p164 = scmp.eq.s32.totalorder %s21, 1
      %p165 = scmp.ne.s32.totalorder %s160, %s162
      %p166 = scmp.eq.s32.totalorder %s21, 0
      %p167 = por %p165, %p166
      %p168 = scmp.ne.s32.totalorder %s160, %s162
      %p169 = scmp.eq.s32.totalorder %s26, 1
      %p170 = por %p168, %p169
      %p171 = scmp.ne.s32.totalorder %s162, %s163
      %p172 = scmp.eq.s32.totalorder %s26, 0
      %p173 = por %p171, %p172
      %p174 = scmp.ne.s32.totalorder %s162, %s163
      %p175 = scmp.eq.s32.totalorder %s27, 1
      %p176 = por %p174, %p175
      %p178 = scmp.ne.s32.totalorder %s163, %s177
      %p179 = scmp.eq.s32.totalorder %s27, 0
      %p180 = por %p178, %p179
      %s182 = sadd.s32 %s181, 1
      %p185 = scmp.eq.s32.totalorder %s21, 1
      %p186 = scmp.ne.s32.totalorder %s181, %s183
      %p187 = scmp.eq.s32.totalorder %s21, 0
      %p188 = por %p186, %p187
      %p189 = scmp.ne.s32.totalorder %s181, %s183
      %p190 = scmp.eq.s32.totalorder %s26, 1
      %p191 = por %p189, %p190
      %p192 = scmp.ne.s32.totalorder %s183, %s184
      %p193 = scmp.eq.s32.totalorder %s26, 0
      %p194 = por %p192, %p193
      %p195 = scmp.ne.s32.totalorder %s183, %s184
      %p196 = scmp.eq.s32.totalorder %s27, 1
      %p197 = por %p195, %p196
      %p199 = scmp.ne.s32.totalorder %s184, %s198
      %p200 = scmp.eq.s32.totalorder %s27, 0
      %p201 = por %p199, %p200
      %s203 = sadd.s32 %s202, 1
      %p206 = scmp.eq.s32.totalorder %s21, 1
      %p207 = scmp.ne.s32.totalorder %s202, %s204
      %p208 = scmp.eq.s32.totalorder %s21, 0
      %p209 = por %p207, %p208
      %p210 = scmp.ne.s32.totalorder %s202, %s204
      %p211 = scmp.eq.s32.totalorder %s26, 1
      %p212 = por %p210, %p211
      %p213 = scmp.ne.s32.totalorder %s204, %s205
      %p214 = scmp.eq.s32.totalorder %s26, 0
      %p215 = por %p213, %p214
      %p216 = scmp.ne.s32.totalorder %s204, %s205
      %p217 = scmp.eq.s32.totalorder %s27, 1
      %p218 = por %p216, %p217
      %p220 = scmp.ne.s32.totalorder %s205, %s219
      %p221 = scmp.eq.s32.totalorder %s27, 0
      %p222 = por %p220, %p221
      %s224 = sadd.s32 %s223, 1
      %p227 = scmp.eq.s32.totalorder %s21, 1
      %p228 = scmp.ne.s32.totalorder %s223, %s225
      %p229 = scmp.eq.s32.totalorder %s21, 0
      %p230 = por %p228, %p229
      %p231 = scmp.ne.s32.totalorder %s223, %s225
      %p232 = scmp.eq.s32.totalorder %s26, 1
      %p233 = por %p231, %p232
      %p234 = scmp.ne.s32.totalorder %s225, %s226
      %p235 = scmp.eq.s32.totalorder %s26, 0
      %p236 = por %p234, %p235
      %p237 = scmp.ne.s32.totalorder %s225, %s226
      %p238 = scmp.eq.s32.totalorder %s27, 1
      %p239 = por %p237, %p238
      %p241 = scmp.ne.s32.totalorder %s226, %s240
      %p242 = scmp.eq.s32.totalorder %s27, 0
      %p243 = por %p241, %p242
      %s245 = sadd.s32 %s244, 1
      %p248 = scmp.eq.s32.totalorder %s21, 1
      %p249 = scmp.ne.s32.totalorder %s244, %s246
      %p250 = scmp.eq.s32.totalorder %s21, 0
      %p251 = por %p249, %p250
      %p252 = scmp.ne.s32.totalorder %s244, %s246
      %p253 = scmp.eq.s32.totalorder %s26, 1
      %p254 = por %p252, %p253
      %p255 = scmp.ne.s32.totalorder %s246, %s247
      %p256 = scmp.eq.s32.totalorder %s26, 0
      %p257 = por %p255, %p256
      %p258 = scmp.ne.s32.totalorder %s246, %s247
      %p259 = scmp.eq.s32.totalorder %s27, 1
      %p260 = por %p258, %p259
      %p262 = scmp.ne.s32.totalorder %s247, %s261
      %p263 = scmp.eq.s32.totalorder %s27, 0
      %p264 = por %p262, %p263
      %s266 = sadd.s32 %s265, 1
      %p269 = scmp.eq.s32.totalorder %s21, 1
      %p270 = scmp.ne.s32.totalorder %s265, %s267
      %p271 = scmp.eq.s32.totalorder %s21, 0
      %p272 = por %p270, %p271
      %p273 = scmp.ne.s32.totalorder %s265, %s267
      %p274 = scmp.eq.s32.totalorder %s26, 1
      %p275 = por %p273, %p274
      %p276 = scmp.ne.s32.totalorder %s267, %s268
      %p277 = scmp.eq.s32.totalorder %s26, 0
      %p278 = por %p276, %p277
      %p279 = scmp.ne.s32.totalorder %s267, %s268
      %p280 = scmp.eq.s32.totalorder %s27, 1
      %p281 = por %p279, %p280
      %p283 = scmp.ne.s32.totalorder %s268, %s282
      %p284 = scmp.eq.s32.totalorder %s27, 0
      %p285 = por %p283, %p284
      %s286 = ssub.s32 %s21, %s28
      %p287 = scmp.eq.s32.totalorder %s286, 0
      %s289 = sadd.s32 %s288, 1
      %s290 = scalar_select %p287, %s288, %s289
      %p293 = pneg %p287
      %p294 = scmp.eq.s32.totalorder %s21, 1
      %p295 = por %p293, %p294
      %p296 = scmp.ne.s32.totalorder %s288, %s291
      %p297 = scmp.eq.s32.totalorder %s21, 0
      %p298 = por %p296, %p297
      %p299 = scmp.ne.s32.totalorder %s288, %s291
      %p300 = scmp.eq.s32.totalorder %s26, 1
      %p301 = por %p299, %p300
      %p302 = scmp.ne.s32.totalorder %s291, %s292
      %p303 = scmp.eq.s32.totalorder %s26, 0
      %p304 = por %p302, %p303
      %p305 = scmp.ne.s32.totalorder %s291, %s292
      %p306 = scmp.eq.s32.totalorder %s27, 1
      %p307 = por %p305, %p306
      %p309 = scmp.ne.s32.totalorder %s292, %s308
      %p310 = scmp.eq.s32.totalorder %s27, 0
      %p311 = por %p309, %p310
      %p312 = scmp.le.s32.totalorder 1, %s21
      %p313 = scmp.lt.s32.totalorder %s21, 3
      %p314 = pnand %p312, %p313
      %p315 = pneg %p314
      // Predicated region
      $region9: #{forward.1} parent=5 // pred_check
        _
      $region10: #{forward.1} parent=5 // pred_check_branch
        %317 = sbr.rel (%p314) target = $region12
      $region11: #{forward.1} parent=5 // pred_region
        %s318 = ssub.s32 %s21, 1
        // Predicated region
        $region13: #{forward.1} parent=11 // pred_check
          %p319 = pneg %p68
        $region14: #{forward.1} parent=11 // pred_check_branch
          %321 = sbr.rel (%p319) target = $region16
        $region15: #{forward.1} parent=11 // pred_region
          _
        $region16: #{forward.1} parent=11 // pred_fallthru
          _
        // Predicated region
        $region17: #{forward.1} parent=11 // pred_check
          %p322 = pneg %p89
        $region18: #{forward.1} parent=11 // pred_check_branch
          %324 = sbr.rel (%p322) target = $region20
        $region19: #{forward.1} parent=11 // pred_region
          _
        $region20: #{forward.1} parent=11 // pred_fallthru
          _
        // Predicated region
        $region21: #{forward.1} parent=11 // pred_check
          %p325 = pneg %p110
        $region22: #{forward.1} parent=11 // pred_check_branch
          %327 = sbr.rel (%p325) target = $region24
        $region23: #{forward.1} parent=11 // pred_region
          _
        $region24: #{forward.1} parent=11 // pred_fallthru
          _
        // Predicated region
        $region25: #{forward.1} parent=11 // pred_check
          %p328 = pneg %p131
        $region26: #{forward.1} parent=11 // pred_check_branch
          %330 = sbr.rel (%p328) target = $region28
        $region27: #{forward.1} parent=11 // pred_region
          _
        $region28: #{forward.1} parent=11 // pred_fallthru
          _
        // Predicated region
        $region29: #{forward.1} parent=11 // pred_check
          %p331 = pneg %p152
        $region30: #{forward.1} parent=11 // pred_check_branch
          %333 = sbr.rel (%p331) target = $region32
        $region31: #{forward.1} parent=11 // pred_region
          _
        $region32: #{forward.1} parent=11 // pred_fallthru
          _
        // Predicated region
        $region33: #{forward.1} parent=11 // pred_check
          %p334 = pneg %p173
        $region34: #{forward.1} parent=11 // pred_check_branch
          %336 = sbr.rel (%p334) target = $region36
        $region35: #{forward.1} parent=11 // pred_region
          _
        $region36: #{forward.1} parent=11 // pred_fallthru
          _
        // Predicated region
        $region37: #{forward.1} parent=11 // pred_check
          %p337 = pneg %p194
        $region38: #{forward.1} parent=11 // pred_check_branch
          %339 = sbr.rel (%p337) target = $region40
        $region39: #{forward.1} parent=11 // pred_region
          _
        $region40: #{forward.1} parent=11 // pred_fallthru
          _
        // Predicated region
        $region41: #{forward.1} parent=11 // pred_check
          %p340 = pneg %p215
        $region42: #{forward.1} parent=11 // pred_check_branch
          %342 = sbr.rel (%p340) target = $region44
        $region43: #{forward.1} parent=11 // pred_region
          _
        $region44: #{forward.1} parent=11 // pred_fallthru
          _
        // Predicated region
        $region45: #{forward.1} parent=11 // pred_check
          %p343 = pneg %p236
        $region46: #{forward.1} parent=11 // pred_check_branch
          %345 = sbr.rel (%p343) target = $region48
        $region47: #{forward.1} parent=11 // pred_region
          _
        $region48: #{forward.1} parent=11 // pred_fallthru
          _
        // Predicated region
        $region49: #{forward.1} parent=11 // pred_check
          %p346 = pneg %p257
        $region50: #{forward.1} parent=11 // pred_check_branch
          %348 = sbr.rel (%p346) target = $region52
        $region51: #{forward.1} parent=11 // pred_region
          _
        $region52: #{forward.1} parent=11 // pred_fallthru
          _
        // Predicated region
        $region53: #{forward.1} parent=11 // pred_check
          %p349 = pneg %p278
        $region54: #{forward.1} parent=11 // pred_check_branch
          %351 = sbr.rel (%p349) target = $region56
        $region55: #{forward.1} parent=11 // pred_region
          _
        $region56: #{forward.1} parent=11 // pred_fallthru
          _
      $region12: #{forward.1} parent=5 // pred_fallthru
        _
      %p352 = scmp.lt.s32.totalorder %s21, 2
      // Predicated region
      $region57: #{forward.1} parent=5 // pred_check
        %p353 = pneg %p352
      $region58: #{forward.1} parent=5 // pred_check_branch
        %355 = sbr.rel (%p353) target = $region60
      $region59: #{forward.1} parent=5 // pred_region
        // Predicated region
        $region61: #{forward.1} parent=59 // pred_check
          %p356 = pneg %p41
        $region62: #{forward.1} parent=59 // pred_check_branch
          %358 = sbr.rel (%p356) target = $region64
        $region63: #{forward.1} parent=59 // pred_region
          %p359 = scmp.lt.s32.totalorder %s21, 1
          %s360 = scalar_select %p359, %s21, 1
          %s361 = smul.addr %s360, 54
          %s362 = smul.addr %s361, 4
          %s363 = scalar_lea.vmem %s0, %s362
        $region64: #{forward.1} parent=59 // pred_fallthru
          _
      $region60: #{forward.1} parent=5 // pred_fallthru
        _
      %p364 = scmp.le.s32.totalorder 1, %s21
      %p365 = scmp.lt.s32.totalorder %s21, 3
      %p366 = pnand %p364, %p365
      %p367 = pneg %p366
      // Predicated region
      $region65: #{forward.1} parent=5 // pred_check
        _
      $region66: #{forward.1} parent=5 // pred_check_branch
        %369 = sbr.rel (%p366) target = $region68
      $region67: #{forward.1} parent=5 // pred_region
        %s370 = ssub.s32 %s21, 1
        %p371 = scmp.lt.s32.totalorder %s26, 1
        %s372 = scalar_select %p371, %s26, 1
        %s373 = smul.addr %s372, 54
        %s374 = smul.addr %s373, 4
        %s375 = scalar_lea.vmem %s0, %s374
        %p376 = pneg %p47
        %p377 = pneg %p44
        %p378 = pneg %p68
        %p379 = pneg %p65
        %p380 = pneg %p89
        %p381 = pneg %p86
        %p382 = pneg %p110
        %p383 = pneg %p107
        %p384 = pneg %p131
        %p385 = pneg %p128
        %p386 = pneg %p152
        %p387 = pneg %p149
        %p388 = pneg %p173
        %p389 = pneg %p170
        %p390 = pneg %p194
        %p391 = pneg %p191
        %p392 = pneg %p215
        %p393 = pneg %p212
        %p394 = pneg %p236
        %p395 = pneg %p233
        %p396 = pneg %p257
        %p397 = pneg %p254
        %p398 = pneg %p278
        %p399 = pneg %p275
        %p400 = pneg %p304
        %p401 = pneg %p301
        %s402 = sand.u32 %s291, 1
        %s403 = scalar_lea.sflag [#allocation5], %s402
        %s404 = sand.u32 %s291, 1
        %s405 = scalar_lea.vmem [#allocation4], %s404
        %p406 = scmp.lt.s32.totalorder %s26, 1
        %s407 = scalar_select %p406, %s26, 1
        %s408 = smul.addr %s407, 54
        %s409 = smul.addr %s408, 4
        %s410 = scalar_lea.vmem %s0, %s409
        %412 = vst [vmem:[#allocation2] sm:$0xff] 0.0
        %413 = vst [vmem:[#allocation2 + $0x8] sm:$0xff] 0.0
        %414 = vst [vmem:[#allocation2 + $0x10] sm:$0xff] 0.0
        %415 = vst [vmem:[#allocation2 + $0x18] sm:$0xff] 0.0
        %416 = vst [vmem:[#allocation2 + $0x20] sm:$0xff] 0.0
        %417 = vst [vmem:[#allocation2 + $0x28] sm:$0xff] 0.0
        %418 = vst [vmem:[#allocation2 + $0x30] sm:$0xff] 0.0
        %419 = vst [vmem:[#allocation2 + $0x38] sm:$0xff] 0.0
        %420 = vst [vmem:[#allocation2 + $0x40] sm:$0xff] 0.0
        %421 = vst [vmem:[#allocation2 + $0x48] sm:$0xff] 0.0
        %422 = vst [vmem:[#allocation2 + $0x50] sm:$0xff] 0.0
        %423 = vst [vmem:[#allocation2 + $0x58] sm:$0xff] 0.0
        %424 = vst [vmem:[#allocation2 + $0x60] sm:$0xff] 0.0
        %425 = vst [vmem:[#allocation2 + $0x68] sm:$0xff] 0.0
        %426 = vst [vmem:[#allocation2 + $0x70] sm:$0xff] 0.0
        %427 = vst [vmem:[#allocation2 + $0x78] sm:$0xff] 0.0
        %428 = vst [vmem:[#allocation2 + $0x80] sm:$0xff] 0.0
        %429 = vst [vmem:[#allocation2 + $0x88] sm:$0xff] 0.0
        %430 = vst [vmem:[#allocation2 + $0x90] sm:$0xff] 0.0
        %431 = vst [vmem:[#allocation2 + $0x98] sm:$0xff] 0.0
        %432 = vst [vmem:[#allocation2 + $0xa0] sm:$0xff] 0.0
        %433 = vst [vmem:[#allocation2 + $0xa8] sm:$0xff] 0.0
        %434 = vst [vmem:[#allocation2 + $0xb0] sm:$0xff] 0.0
        %435 = vst [vmem:[#allocation2 + $0xb8] sm:$0xff] 0.0
        %436 = vst [vmem:[#allocation2 + $0xc0] sm:$0xff] 0.0
        %437 = vst [vmem:[#allocation2 + $0xc8] sm:$0xff] 0.0
        %438 = vst [vmem:[#allocation2 + $0xd0] sm:$0xff] 0.0
        %439 = vst [vmem:[#allocation2 + $0xd8] sm:$0xff] 0.0
        %440 = vst [vmem:[#allocation2 + $0xe0] sm:$0xff] 0.0
        %441 = vst [vmem:[#allocation2 + $0xe8] sm:$0xff] 0.0
        %442 = vst [vmem:[#allocation2 + $0xf0] sm:$0xff] 0.0
        %443 = vst [vmem:[#allocation2 + $0xf8] sm:$0xff] 0.0
        %444 = vst [vmem:[#allocation2 + $0x100] sm:$0xff] 0.0
        %445 = vst [vmem:[#allocation2 + $0x108] sm:$0xff] 0.0
        %446 = vst [vmem:[#allocation2 + $0x110] sm:$0xff] 0.0
        %447 = vst [vmem:[#allocation2 + $0x118] sm:$0xff] 0.0
        %448 = vst [vmem:[#allocation2 + $0x120] sm:$0xff] 0.0
        %449 = vst [vmem:[#allocation2 + $0x128] sm:$0xff] 0.0
        %450 = vst [vmem:[#allocation2 + $0x130] sm:$0xff] 0.0
        %451 = vst [vmem:[#allocation2 + $0x138] sm:$0xff] 0.0
        %452 = vst [vmem:[#allocation2 + $0x140] sm:$0xff] 0.0
        %453 = vst [vmem:[#allocation2 + $0x148] sm:$0xff] 0.0
        %454 = vst [vmem:[#allocation2 + $0x150] sm:$0xff] 0.0
        %455 = vst [vmem:[#allocation2 + $0x158] sm:$0xff] 0.0
        %456 = vst [vmem:[#allocation2 + $0x160] sm:$0xff] 0.0
        %457 = vst [vmem:[#allocation2 + $0x168] sm:$0xff] 0.0
        %458 = vst [vmem:[#allocation2 + $0x170] sm:$0xff] 0.0
        %459 = vst [vmem:[#allocation2 + $0x178] sm:$0xff] 0.0
        %460 = vst [vmem:[#allocation3] sm:$0xff] 0.0
        %461 = vst [vmem:[#allocation3 + $0x8] sm:$0xff] 0.0
        %462 = vst [vmem:[#allocation3 + $0x10] sm:$0xff] 0.0
        %463 = vst [vmem:[#allocation3 + $0x18] sm:$0xff] 0.0
        %464 = vst [vmem:[#allocation3 + $0x20] sm:$0xff] 0.0
        %465 = vst [vmem:[#allocation3 + $0x28] sm:$0xff] 0.0
        %466 = vst [vmem:[#allocation3 + $0x30] sm:$0xff] 0.0
        %467 = vst [vmem:[#allocation3 + $0x38] sm:$0xff] 0.0
        %468 = vst [vmem:[#allocation3 + $0x40] sm:$0xff] 0.0
        %469 = vst [vmem:[#allocation3 + $0x48] sm:$0xff] 0.0
        %470 = vst [vmem:[#allocation3 + $0x50] sm:$0xff] 0.0
        %471 = vst [vmem:[#allocation3 + $0x58] sm:$0xff] 0.0
        %472 = vst [vmem:[#allocation3 + $0x60] sm:$0xff] 0.0
        %473 = vst [vmem:[#allocation3 + $0x68] sm:$0xff] 0.0
        %474 = vst [vmem:[#allocation3 + $0x70] sm:$0xff] 0.0
        %475 = vst [vmem:[#allocation3 + $0x78] sm:$0xff] 0.0
        %v476 = vld [vmem:[%s410] sm:$0xf]
        %v477 = vld [vmem:[%s410 + $0x4] sm:$0xf]
        %v478 = vld [vmem:[%s410 + $0x8] sm:$0xf]
        %v479 = vld [vmem:[%s410 + $0xc] sm:$0xf]
        %v480 = vld [vmem:[%s410 + $0x10] sm:$0xf]
        %v481 = vld [vmem:[%s410 + $0x14] sm:$0xf]
        %v482 = vld [vmem:[%s410 + $0x18] sm:$0xf]
        %v483 = vld [vmem:[%s410 + $0x1c] sm:$0xf]
        %v484 = vld [vmem:[%s410 + $0x20] sm:$0xf]
        %v485 = vld [vmem:[%s410 + $0x24] sm:$0xf]
        %v486 = vld [vmem:[%s410 + $0x28] sm:$0xf]
        %v487 = vld [vmem:[%s410 + $0x2c] sm:$0xf]
        %v488 = vld [vmem:[%s410 + $0x30] sm:$0xf]
        %v489 = vld [vmem:[%s410 + $0x34] sm:$0xf]
        %v490 = vld [vmem:[%s410 + $0x38] sm:$0xf]
        %v491 = vld [vmem:[%s410 + $0x3c] sm:$0xf]
        %v492 = vld [vmem:[%s410 + $0x40] sm:$0xf]
        %v493 = vld [vmem:[%s410 + $0x44] sm:$0xf]
        %v494 = vld [vmem:[%s410 + $0x48] sm:$0xf]
        %v495 = vld [vmem:[%s410 + $0x4c] sm:$0xf]
        %v496 = vld [vmem:[%s410 + $0x50] sm:$0xf]
        %v497 = vld [vmem:[%s410 + $0x54] sm:$0xf]
        %v498 = vld [vmem:[%s410 + $0x58] sm:$0xf]
        %v499 = vld [vmem:[%s410 + $0x5c] sm:$0xf]
        %v500 = vld [vmem:[%s410 + $0x60] sm:$0xf]
        %v501 = vld [vmem:[%s410 + $0x64] sm:$0xf]
        %v502 = vld [vmem:[%s410 + $0x68] sm:$0xf]
        %v503 = vld [vmem:[%s410 + $0x6c] sm:$0xf]
        %v504 = vld [vmem:[%s410 + $0x70] sm:$0xf]
        %v505 = vld [vmem:[%s410 + $0x74] sm:$0xf]
        %v506 = vld [vmem:[%s410 + $0x78] sm:$0xf]
        %v507 = vld [vmem:[%s410 + $0x7c] sm:$0xf]
        %v508 = vld [vmem:[%s410 + $0x80] sm:$0xf]
        %v509 = vld [vmem:[%s410 + $0x84] sm:$0xf]
        %v510 = vld [vmem:[%s410 + $0x88] sm:$0xf]
        %v511 = vld [vmem:[%s410 + $0x8c] sm:$0xf]
        %v512 = vld [vmem:[%s410 + $0x90] sm:$0xf]
        %v513 = vld [vmem:[%s410 + $0x94] sm:$0xf]
        %v514 = vld [vmem:[%s410 + $0x98] sm:$0xf]
        %v515 = vld [vmem:[%s410 + $0x9c] sm:$0xf]
        %v516 = vld [vmem:[%s410 + $0xa0] sm:$0xf]
        %v517 = vld [vmem:[%s410 + $0xa4] sm:$0xf]
        %v518 = vld [vmem:[%s410 + $0xa8] sm:$0xf]
        %v519 = vld [vmem:[%s410 + $0xac] sm:$0xf]
        %v520 = vld [vmem:[%s410 + $0xb0] sm:$0xf]
        %v521 = vld [vmem:[%s410 + $0xb4] sm:$0xf]
        %v522 = vld [vmem:[%s410 + $0xb8] sm:$0xf]
        %v523 = vld [vmem:[%s410 + $0xbc] sm:$0xf]
        %v524 = vld [vmem:[%s410 + $0xc0] sm:$0xf]
        %v525 = vld [vmem:[%s410 + $0xc4] sm:$0xf]
        %v526 = vld [vmem:[%s410 + $0xc8] sm:$0xf]
        %v527 = vld [vmem:[%s410 + $0xcc] sm:$0xf]
        %v528 = vld [vmem:[%s410 + $0xd0] sm:$0xf]
        %v529 = vld [vmem:[%s410 + $0xd4] sm:$0xf]
        %v530 = vld [vmem:[%s1] sm:$0xf]
        %v531 = vld [vmem:[%s1 + $0x4] sm:$0xf]
        %v532 = vld [vmem:[%s4] sm:$0x1]
        %v534 = vlaneseq
        %v535 = vshrl.u32 %v534, 7
        %v536 = vsub.s32 0, %v535
        %v537 = vrot.slane %v532, %v536
        %v593 = vunpack.c.l.b16 %v476
        %v594 = vunpack.c.l.b16 %v477
        %v595 = vunpack.c.l.b16 %v478
        %v596 = vunpack.c.l.b16 %v479
        %v597 = vunpack.c.l.b16 %v480
        %v598 = vunpack.c.l.b16 %v481
        %v599 = vunpack.c.l.b16 %v482
        %v600 = vunpack.c.l.b16 %v483
        %v601 = vunpack.c.l.b16 %v484
        %v602 = vunpack.c.l.b16 %v485
        %v603 = vunpack.c.l.b16 %v486
        %v604 = vunpack.c.l.b16 %v487
        %v605 = vunpack.c.l.b16 %v488
        %v606 = vunpack.c.l.b16 %v489
        %v607 = vunpack.c.l.b16 %v490
        %v608 = vunpack.c.l.b16 %v491
        %v609 = vunpack.c.l.b16 %v492
        %v610 = vunpack.c.l.b16 %v493
        %v611 = vunpack.c.l.b16 %v494
        %v612 = vunpack.c.l.b16 %v495
        %v613 = vunpack.c.l.b16 %v496
        %v614 = vunpack.c.l.b16 %v497
        %v615 = vunpack.c.l.b16 %v498
        %v616 = vunpack.c.l.b16 %v499
        %v617 = vunpack.c.l.b16 %v500
        %v618 = vunpack.c.l.b16 %v501
        %v619 = vunpack.c.l.b16 %v502
        %v620 = vunpack.c.l.b16 %v503
        %v621 = vunpack.c.l.b16 %v504
        %v622 = vunpack.c.l.b16 %v505
        %v623 = vunpack.c.l.b16 %v506
        %v624 = vunpack.c.l.b16 %v507
        %v625 = vunpack.c.l.b16 %v508
        %v626 = vunpack.c.l.b16 %v509
        %v627 = vunpack.c.l.b16 %v510
        %v628 = vunpack.c.l.b16 %v511
        %v629 = vunpack.c.l.b16 %v512
        %v630 = vunpack.c.l.b16 %v513
        %v631 = vunpack.c.l.b16 %v514
        %v632 = vunpack.c.l.b16 %v515
        %v633 = vunpack.c.l.b16 %v516
        %v634 = vunpack.c.l.b16 %v517
        %v635 = vunpack.c.l.b16 %v518
        %v636 = vunpack.c.l.b16 %v519
        %v637 = vunpack.c.l.b16 %v520
        %v638 = vunpack.c.l.b16 %v521
        %v639 = vunpack.c.l.b16 %v522
        %v640 = vunpack.c.l.b16 %v523
        %v641 = vunpack.c.l.b16 %v524
        %v642 = vunpack.c.l.b16 %v525
        %v643 = vunpack.c.l.b16 %v526
        %v644 = vunpack.c.l.b16 %v527
        %v645 = vunpack.c.l.b16 %v528
        %v646 = vunpack.c.l.b16 %v529
        %v647 = vpack.c.b16 %v594, %v593
        %v648 = vpack.c.b16 %v596, %v595
        %v649 = vpack.c.b16 %v598, %v597
        %v650 = vpack.c.b16 %v600, %v599
        %v651 = vpack.c.b16 %v602, %v601
        %v652 = vpack.c.b16 %v604, %v603
        %v653 = vpack.c.b16 %v606, %v605
        %v654 = vpack.c.b16 %v608, %v607
        %v655 = vpack.c.b16 %v610, %v609
        %v656 = vpack.c.b16 %v612, %v611
        %v657 = vpack.c.b16 %v614, %v613
        %v658 = vpack.c.b16 %v616, %v615
        %v659 = vpack.c.b16 %v618, %v617
        %v660 = vpack.c.b16 %v620, %v619
        %v661 = vpack.c.b16 %v622, %v621
        %v662 = vpack.c.b16 %v624, %v623
        %v663 = vpack.c.b16 %v626, %v625
        %v664 = vpack.c.b16 %v628, %v627
        %v665 = vpack.c.b16 %v630, %v629
        %v666 = vpack.c.b16 %v632, %v631
        %v667 = vpack.c.b16 %v634, %v633
        %v668 = vpack.c.b16 %v636, %v635
        %v669 = vpack.c.b16 %v638, %v637
        %v670 = vpack.c.b16 %v640, %v639
        %v671 = vpack.c.b16 %v642, %v641
        %v672 = vpack.c.b16 %v644, %v643
        %v673 = vpack.c.b16 %v646, %v645
        %v676 = vunpack.c.l.b16 %v530
        %v677 = vunpack.c.l.b16 %v531
        %v678 = vpack.c.b16 %v677, %v676
        %vm680 = vcmask 130048
        %v682 = vsel %vm680, %v647, 0
        %v685 = vsel %vm680, %v648, 0
        %v688 = vsel %vm680, %v649, 0
        %v691 = vsel %vm680, %v650, 0
        %v694 = vsel %vm680, %v651, 0
        %v697 = vsel %vm680, %v652, 0
        %v700 = vsel %vm680, %v653, 0
        %v703 = vsel %vm680, %v654, 0
        %v706 = vsel %vm680, %v655, 0
        %v709 = vsel %vm680, %v656, 0
        %v712 = vsel %vm680, %v657, 0
        %v715 = vsel %vm680, %v658, 0
        %v718 = vsel %vm680, %v659, 0
        %v721 = vsel %vm680, %v660, 0
        %v724 = vsel %vm680, %v661, 0
        %v727 = vsel %vm680, %v662, 0
        %v730 = vsel %vm680, %v663, 0
        %v733 = vsel %vm680, %v664, 0
        %v736 = vsel %vm680, %v665, 0
        %v739 = vsel %vm680, %v666, 0
        %v742 = vsel %vm680, %v667, 0
        %v745 = vsel %vm680, %v668, 0
        %v748 = vsel %vm680, %v669, 0
        %v751 = vsel %vm680, %v670, 0
        %v754 = vsel %vm680, %v671, 0
        %v757 = vsel %vm680, %v672, 0
        %v760 = vsel %vm680, %v673, 0
        %762 = vmatprep.subr.bf16.mxu0 0
        %763 = vmatpush1.bf16.msra.mxu0 %v678
        %764 = vmatprep.subr.bf16.mxu0 0
        %765 = vmatpush1.bf16.msra.mxu0 0
        %766 = vmatprep.subr.bf16.mxu0 0
        %767 = vmatpush1.bf16.msra.mxu0 0
        %768 = vmatprep.subr.bf16.mxu0 0
        %769 = vmatpush1.bf16.msra.mxu0 0
        %770 = vmatprep.subr.bf16.mxu0 0
        %771 = vmatpush1.bf16.msra.mxu0 0
        %772 = vmatprep.subr.bf16.mxu0 0
        %773 = vmatpush1.bf16.msra.mxu0 0
        %774 = vmatprep.subr.bf16.mxu0 0
        %775 = vmatpush1.bf16.msra.mxu0 0
        %776 = vmatprep.subr.bf16.mxu0 0
        %777 = vmatpush1.bf16.msra.mxu0 0
        %778 = vmatprep.subr.bf16.mxu0 0
        %779 = vmatpush1.bf16.msra.mxu0 0
        %780 = vmatprep.subr.bf16.mxu0 0
        %781 = vmatpush1.bf16.msra.mxu0 0
        %782 = vmatprep.subr.bf16.mxu0 0
        %783 = vmatpush1.bf16.msra.mxu0 0
        %784 = vmatprep.subr.bf16.mxu0 0
        %785 = vmatpush1.bf16.msra.mxu0 0
        %786 = vmatprep.subr.bf16.mxu0 0
        %787 = vmatpush1.bf16.msra.mxu0 0
        %788 = vmatprep.subr.bf16.mxu0 0
        %789 = vmatpush1.bf16.msra.mxu0 0
        %790 = vmatprep.subr.bf16.mxu0 0
        %791 = vmatpush1.bf16.msra.mxu0 0
        %792 = vmatprep.subr.bf16.mxu0 0
        %793 = vmatpush1.bf16.msra.mxu0 0
        %794 = vmatprep.mubr.bf16.mxu0 0
        %795 = vmatmul.mubr.bf16.gmra.mrb[0].mxu0 %v682
        %v796 = vpop.f32.mrb[0].mxu0
        %v797 = vpop.f32.mrb[0].mxu0
        %v798 = vpop.f32.mrb[0].mxu0
        %v799 = vpop.f32.mrb[0].mxu0
        %800 = vmatprep.mubr.bf16.mxu0 0
        %801 = vmatmul.mubr.bf16.gmra.mrb[0].mxu0 %v685
        %v802 = vpop.f32.mrb[0].mxu0
        %v803 = vpop.f32.mrb[0].mxu0
        %v804 = vpop.f32.mrb[0].mxu0
        %v805 = vadd.f32 %v537, %v804
        %v806 = vpop.f32.mrb[0].mxu0
        %807 = vmatprep.mubr.bf16.mxu0 0
        %808 = vmatmul.mubr.bf16.gmra.mrb[0].mxu0 %v688
        %v809 = vpop.f32.mrb[0].mxu0
        %v810 = vadd.f32 %v537, %v809
        %v811 = vpop.f32.mrb[0].mxu0
        %v812 = vpop.f32.mrb[0].mxu0
        %v813 = vadd.f32 %v537, %v812
        %v814 = vpop.f32.mrb[0].mxu0
        %815 = vmatprep.mubr.bf16.mxu0 0
        %816 = vmatmul.mubr.bf16.gmra.mrb[0].mxu0 %v691
        %v817 = vpop.f32.mrb[0].mxu0
        %v818 = vadd.f32 %v537, %v817
        %v819 = vpop.f32.mrb[0].mxu0
        %v820 = vpop.f32.mrb[0].mxu0
        %v821 = vadd.f32 %v537, %v820
        %v822 = vpop.f32.mrb[0].mxu0
        %823 = vmatprep.mubr.bf16.mxu0 0
        %824 = vmatmul.mubr.bf16.gmra.mrb[0].mxu0 %v694
        %v825 = vpop.f32.mrb[0].mxu0
        %v826 = vadd.f32 %v537, %v825
        %v827 = vpop.f32.mrb[0].mxu0
        %v828 = vpop.f32.mrb[0].mxu0
        %v829 = vadd.f32 %v537, %v828
        %v830 = vpop.f32.mrb[0].mxu0
        %831 = vmatprep.mubr.bf16.mxu0 0
        %832 = vmatmul.mubr.bf16.gmra.mrb[0].mxu0 %v697
        %v833 = vpop.f32.mrb[0].mxu0
        %v834 = vadd.f32 %v537, %v833
        %v835 = vpop.f32.mrb[0].mxu0
        %v836 = vpop.f32.mrb[0].mxu0
        %v837 = vadd.f32 %v537, %v836
        %v838 = vpop.f32.mrb[0].mxu0
        %839 = vmatprep.mubr.bf16.mxu0 0
        %840 = vmatmul.mubr.bf16.gmra.mrb[0].mxu0 %v700
        %v841 = vpop.f32.mrb[0].mxu0
        %v842 = vadd.f32 %v537, %v841
        %v843 = vpop.f32.mrb[0].mxu0
        %v844 = vpop.f32.mrb[0].mxu0
        %v845 = vadd.f32 %v537, %v844
        %v846 = vpop.f32.mrb[0].mxu0
        %847 = vmatprep.mubr.bf16.mxu0 0
        %848 = vmatmul.mubr.bf16.gmra.mrb[0].mxu0 %v703
        %v849 = vpop.f32.mrb[0].mxu0
        %v850 = vadd.f32 %v537, %v849
        %v851 = vpop.f32.mrb[0].mxu0
        %v852 = vpop.f32.mrb[0].mxu0
        %v853 = vadd.f32 %v537, %v852
        %v854 = vpop.f32.mrb[0].mxu0
        %855 = vmatprep.mubr.bf16.mxu0 0
        %856 = vmatmul.mubr.bf16.gmra.mrb[0].mxu0 %v706
        %v857 = vpop.f32.mrb[0].mxu0
        %v858 = vadd.f32 %v537, %v857
        %v859 = vpop.f32.mrb[0].mxu0
        %v860 = vpop.f32.mrb[0].mxu0
        %v861 = vadd.f32 %v537, %v860
        %v862 = vpop.f32.mrb[0].mxu0
        %863 = vmatprep.mubr.bf16.mxu0 0
        %864 = vmatmul.mubr.bf16.gmra.mrb[0].mxu0 %v709
        %v865 = vpop.f32.mrb[0].mxu0
        %v866 = vadd.f32 %v537, %v865
        %v867 = vpop.f32.mrb[0].mxu0
        %v868 = vpop.f32.mrb[0].mxu0
        %v869 = vadd.f32 %v537, %v868
        %v870 = vpop.f32.mrb[0].mxu0
        %871 = vmatprep.mubr.bf16.mxu0 0
        %872 = vmatmul.mubr.bf16.gmra.mrb[0].mxu0 %v712
        %v873 = vpop.f32.mrb[0].mxu0
        %v874 = vadd.f32 %v537, %v873
        %v875 = vpop.f32.mrb[0].mxu0
        %v876 = vpop.f32.mrb[0].mxu0
        %v877 = vadd.f32 %v537, %v876
        %v878 = vpop.f32.mrb[0].mxu0
        %879 = vmatprep.mubr.bf16.mxu0 0
        %880 = vmatmul.mubr.bf16.gmra.mrb[0].mxu0 %v715
        %v881 = vpop.f32.mrb[0].mxu0
        %v882 = vadd.f32 %v537, %v881
        %v883 = vpop.f32.mrb[0].mxu0
        %v884 = vpop.f32.mrb[0].mxu0
        %v885 = vadd.f32 %v537, %v884
        %v886 = vpop.f32.mrb[0].mxu0
        %887 = vmatprep.mubr.bf16.mxu0 0
        %888 = vmatmul.mubr.bf16.gmra.mrb[0].mxu0 %v718
        %v889 = vpop.f32.mrb[0].mxu0
        %v890 = vadd.f32 %v537, %v889
        %v891 = vpop.f32.mrb[0].mxu0
        %v892 = vpop.f32.mrb[0].mxu0
        %v893 = vadd.f32 %v537, %v892
        %v894 = vpop.f32.mrb[0].mxu0
        %895 = vmatprep.mubr.bf16.mxu0 0
        %896 = vmatmul.mubr.bf16.gmra.mrb[0].mxu0 %v721
        %v897 = vpop.f32.mrb[0].mxu0
        %v898 = vadd.f32 %v537, %v897
        %v899 = vpop.f32.mrb[0].mxu0
        %v900 = vpop.f32.mrb[0].mxu0
        %v901 = vadd.f32 %v537, %v900
        %v902 = vpop.f32.mrb[0].mxu0
        %903 = vmatprep.mubr.bf16.mxu0 0
        %904 = vmatmul.mubr.bf16.gmra.mrb[0].mxu0 %v724
        %v905 = vpop.f32.mrb[0].mxu0
        %v906 = vadd.f32 %v537, %v905
        %v907 = vpop.f32.mrb[0].mxu0
        %v908 = vpop.f32.mrb[0].mxu0
        %v909 = vadd.f32 %v537, %v908
        %v910 = vpop.f32.mrb[0].mxu0
        %911 = vmatprep.mubr.bf16.mxu0 0
        %912 = vmatmul.mubr.bf16.gmra.mrb[0].mxu0 %v727
        %v913 = vpop.f32.mrb[0].mxu0
        %v914 = vadd.f32 %v537, %v913
        %v915 = vpop.f32.mrb[0].mxu0
        %v916 = vpop.f32.mrb[0].mxu0
        %v917 = vadd.f32 %v537, %v916
        %v918 = vpop.f32.mrb[0].mxu0
        %919 = vmatprep.mubr.bf16.mxu0 0
        %920 = vmatmul.mubr.bf16.gmra.mrb[0].mxu0 %v730
        %v921 = vpop.f32.mrb[0].mxu0
        %v922 = vadd.f32 %v537, %v921
        %v923 = vpop.f32.mrb[0].mxu0
        %v924 = vpop.f32.mrb[0].mxu0
        %v925 = vadd.f32 %v537, %v924
        %v926 = vpop.f32.mrb[0].mxu0
        %927 = vmatprep.mubr.bf16.mxu0 0
        %928 = vmatmul.mubr.bf16.gmra.mrb[0].mxu0 %v733
        %v929 = vpop.f32.mrb[0].mxu0
        %v930 = vadd.f32 %v537, %v929
        %v931 = vpop.f32.mrb[0].mxu0
        %v932 = vpop.f32.mrb[0].mxu0
        %v933 = vadd.f32 %v537, %v932
        %v934 = vpop.f32.mrb[0].mxu0
        %935 = vmatprep.mubr.bf16.mxu0 0
        %936 = vmatmul.mubr.bf16.gmra.mrb[0].mxu0 %v736
        %v937 = vpop.f32.mrb[0].mxu0
        %v938 = vadd.f32 %v537, %v937
        %v939 = vpop.f32.mrb[0].mxu0
        %v940 = vpop.f32.mrb[0].mxu0
        %v941 = vadd.f32 %v537, %v940
        %v942 = vpop.f32.mrb[0].mxu0
        %943 = vmatprep.mubr.bf16.mxu0 0
        %944 = vmatmul.mubr.bf16.gmra.mrb[0].mxu0 %v739
        %v945 = vpop.f32.mrb[0].mxu0
        %v946 = vadd.f32 %v537, %v945
        %v947 = vpop.f32.mrb[0].mxu0
        %v948 = vpop.f32.mrb[0].mxu0
        %v949 = vadd.f32 %v537, %v948
        %v950 = vpop.f32.mrb[0].mxu0
        %951 = vmatprep.mubr.bf16.mxu0 0
        %952 = vmatmul.mubr.bf16.gmra.mrb[0].mxu0 %v742
        %v953 = vpop.f32.mrb[0].mxu0
        %v954 = vadd.f32 %v537, %v953
        %v955 = vpop.f32.mrb[0].mxu0
        %v956 = vpop.f32.mrb[0].mxu0
        %v957 = vadd.f32 %v537, %v956
        %v958 = vpop.f32.mrb[0].mxu0
        %959 = vmatprep.mubr.bf16.mxu0 0
        %960 = vmatmul.mubr.bf16.gmra.mrb[0].mxu0 %v745
        %v961 = vpop.f32.mrb[0].mxu0
        %v962 = vadd.f32 %v537, %v961
        %v963 = vpop.f32.mrb[0].mxu0
        %v964 = vpop.f32.mrb[0].mxu0
        %v965 = vadd.f32 %v537, %v964
        %v966 = vpop.f32.mrb[0].mxu0
        %967 = vmatprep.mubr.bf16.mxu0 0
        %968 = vmatmul.mubr.bf16.gmra.mrb[0].mxu0 %v748
        %v969 = vpop.f32.mrb[0].mxu0
        %v970 = vadd.f32 %v537, %v969
        %v971 = vpop.f32.mrb[0].mxu0
        %v972 = vpop.f32.mrb[0].mxu0
        %v973 = vadd.f32 %v537, %v972
        %v974 = vpop.f32.mrb[0].mxu0
        %975 = vmatprep.mubr.bf16.mxu0 0
        %976 = vmatmul.mubr.bf16.gmra.mrb[0].mxu0 %v751
        %v977 = vpop.f32.mrb[0].mxu0
        %v978 = vadd.f32 %v537, %v977
        %v979 = vpop.f32.mrb[0].mxu0
        %v980 = vpop.f32.mrb[0].mxu0
        %v981 = vadd.f32 %v537, %v980
        %v982 = vpop.f32.mrb[0].mxu0
        %983 = vmatprep.mubr.bf16.mxu0 0
        %984 = vmatmul.mubr.bf16.gmra.mrb[0].mxu0 %v754
        %v985 = vpop.f32.mrb[0].mxu0
        %v986 = vadd.f32 %v537, %v985
        %v987 = vpop.f32.mrb[0].mxu0
        %v988 = vpop.f32.mrb[0].mxu0
        %v989 = vadd.f32 %v537, %v988
        %v990 = vpop.f32.mrb[0].mxu0
        %991 = vmatprep.mubr.bf16.mxu0 0
        %992 = vmatmul.mubr.bf16.gmra.mrb[0].mxu0 %v757
        %v993 = vpop.f32.mrb[0].mxu0
        %v994 = vadd.f32 %v537, %v993
        %v995 = vpop.f32.mrb[0].mxu0
        %v996 = vpop.f32.mrb[0].mxu0
        %v997 = vadd.f32 %v537, %v996
        %v998 = vpop.f32.mrb[0].mxu0
        %999 = vmatprep.mubr.bf16.mxu0 0
        %1000 = vmatmul.mubr.bf16.gmra.mrb[0].mxu0 %v760
        %v1001 = vpop.f32.mrb[0].mxu0
        %v1002 = vpop.f32.mrb[0].mxu0
        %v1003 = vpop.f32.mrb[0].mxu0
        %v1004 = vpop.f32.mrb[0].mxu0
        %1005 = vdwg.mxu0
        %v1006 = vmax.f32 %v805, 0.0
        %v1007 = vmax.f32 %v810, 0.0
        %v1008 = vmax.f32 %v813, 0.0
        %v1009 = vmax.f32 %v818, 0.0
        %v1010 = vmax.f32 %v821, 0.0
        %v1011 = vmax.f32 %v826, 0.0
        %v1012 = vmax.f32 %v829, 0.0
        %v1013 = vmax.f32 %v834, 0.0
        %v1014 = vmax.f32 %v837, 0.0
        %v1015 = vmax.f32 %v842, 0.0
        %v1016 = vmax.f32 %v845, 0.0
        %v1017 = vmax.f32 %v850, 0.0
        %v1018 = vmax.f32 %v853, 0.0
        %v1019 = vmax.f32 %v858, 0.0
        %v1020 = vmax.f32 %v861, 0.0
        %v1021 = vmax.f32 %v866, 0.0
        %v1022 = vmax.f32 %v869, 0.0
        %v1023 = vmax.f32 %v874, 0.0
        %v1024 = vmax.f32 %v877, 0.0
        %v1025 = vmax.f32 %v882, 0.0
        %v1026 = vmax.f32 %v885, 0.0
        %v1027 = vmax.f32 %v890, 0.0
        %v1028 = vmax.f32 %v893, 0.0
        %v1029 = vmax.f32 %v898, 0.0
        %v1030 = vmax.f32 %v901, 0.0
        %v1031 = vmax.f32 %v906, 0.0
        %v1032 = vmax.f32 %v909, 0.0
        %v1033 = vmax.f32 %v914, 0.0
        %v1034 = vmax.f32 %v917, 0.0
        %v1035 = vmax.f32 %v922, 0.0
        %v1036 = vmax.f32 %v925, 0.0
        %v1037 = vmax.f32 %v930, 0.0
        %v1038 = vmax.f32 %v933, 0.0
        %v1039 = vmax.f32 %v938, 0.0
        %v1040 = vmax.f32 %v941, 0.0
        %v1041 = vmax.f32 %v946, 0.0
        %v1042 = vmax.f32 %v949, 0.0
        %v1043 = vmax.f32 %v954, 0.0
        %v1044 = vmax.f32 %v957, 0.0
        %v1045 = vmax.f32 %v962, 0.0
        %v1046 = vmax.f32 %v965, 0.0
        %v1047 = vmax.f32 %v970, 0.0
        %v1048 = vmax.f32 %v973, 0.0
        %v1049 = vmax.f32 %v978, 0.0
        %v1050 = vmax.f32 %v981, 0.0
        %v1051 = vmax.f32 %v986, 0.0
        %v1052 = vmax.f32 %v989, 0.0
        %v1053 = vmax.f32 %v994, 0.0
        %v1054 = vmax.f32 %v997, 0.0
        %vm1104 = vcmask 1046528
        %v1105 = vrot.slane %v1006, 1
        %v1106 = vrot.slane %v1007, 1
        %v1107 = vsel %vm1104, %v1105, %v1106
        %v1108 = vrot.slane %v1008, 1
        %v1109 = vsel %vm1104, %v1106, %v1108
        %v1110 = vrot.slane %v1009, 1
        %v1111 = vsel %vm1104, %v1108, %v1110
        %v1112 = vrot.slane %v1010, 1
        %v1113 = vsel %vm1104, %v1110, %v1112
        %v1114 = vrot.slane %v1011, 1
        %v1115 = vsel %vm1104, %v1112, %v1114
        %v1116 = vrot.slane %v1012, 1
        %v1117 = vsel %vm1104, %v1114, %v1116
        %v1118 = vrot.slane %v1013, 1
        %v1119 = vsel %vm1104, %v1116, %v1118
        %v1120 = vrot.slane %v1014, 1
        %v1121 = vsel %vm1104, %v1118, %v1120
        %v1122 = vrot.slane %v1015, 1
        %v1123 = vsel %vm1104, %v1120, %v1122
        %v1124 = vrot.slane %v1016, 1
        %v1125 = vsel %vm1104, %v1122, %v1124
        %v1126 = vrot.slane %v1017, 1
        %v1127 = vsel %vm1104, %v1124, %v1126
        %v1128 = vrot.slane %v1018, 1
        %v1129 = vsel %vm1104, %v1126, %v1128
        %v1130 = vrot.slane %v1019, 1
        %v1131 = vsel %vm1104, %v1128, %v1130
        %v1132 = vrot.slane %v1020, 1
        %v1133 = vsel %vm1104, %v1130, %v1132
        %v1134 = vrot.slane %v1021, 1
        %v1135 = vsel %vm1104, %v1132, %v1134
        %v1136 = vrot.slane %v1022, 1
        %v1137 = vsel %vm1104, %v1134, %v1136
        %v1138 = vrot.slane %v1023, 1
        %v1139 = vsel %vm1104, %v1136, %v1138
        %v1140 = vrot.slane %v1024, 1
        %v1141 = vsel %vm1104, %v1138, %v1140
        %v1142 = vrot.slane %v1025, 1
        %v1143 = vsel %vm1104, %v1140, %v1142
        %v1144 = vrot.slane %v1026, 1
        %v1145 = vsel %vm1104, %v1142, %v1144
        %v1146 = vrot.slane %v1027, 1
        %v1147 = vsel %vm1104, %v1144, %v1146
        %v1148 = vrot.slane %v1028, 1
        %v1149 = vsel %vm1104, %v1146, %v1148
        %v1150 = vrot.slane %v1029, 1
        %v1151 = vsel %vm1104, %v1148, %v1150
        %v1152 = vrot.slane %v1030, 1
        %v1153 = vsel %vm1104, %v1150, %v1152
        %v1154 = vrot.slane %v1031, 1
        %v1155 = vsel %vm1104, %v1152, %v1154
        %v1156 = vrot.slane %v1032, 1
        %v1157 = vsel %vm1104, %v1154, %v1156
        %v1158 = vrot.slane %v1033, 1
        %v1159 = vsel %vm1104, %v1156, %v1158
        %v1160 = vrot.slane %v1034, 1
        %v1161 = vsel %vm1104, %v1158, %v1160
        %v1162 = vrot.slane %v1035, 1
        %v1163 = vsel %vm1104, %v1160, %v1162
        %v1164 = vrot.slane %v1036, 1
        %v1165 = vsel %vm1104, %v1162, %v1164
        %v1166 = vrot.slane %v1037, 1
        %v1167 = vsel %vm1104, %v1164, %v1166
        %v1168 = vrot.slane %v1038, 1
        %v1169 = vsel %vm1104, %v1166, %v1168
        %v1170 = vrot.slane %v1039, 1
        %v1171 = vsel %vm1104, %v1168, %v1170
        %v1172 = vrot.slane %v1040, 1
        %v1173 = vsel %vm1104, %v1170, %v1172
        %v1174 = vrot.slane %v1041, 1
        %v1175 = vsel %vm1104, %v1172, %v1174
        %v1176 = vrot.slane %v1042, 1
        %v1177 = vsel %vm1104, %v1174, %v1176
        %v1178 = vrot.slane %v1043, 1
        %v1179 = vsel %vm1104, %v1176, %v1178
        %v1180 = vrot.slane %v1044, 1
        %v1181 = vsel %vm1104, %v1178, %v1180
        %v1182 = vrot.slane %v1045, 1
        %v1183 = vsel %vm1104, %v1180, %v1182
        %v1184 = vrot.slane %v1046, 1
        %v1185 = vsel %vm1104, %v1182, %v1184
        %v1186 = vrot.slane %v1047, 1
        %v1187 = vsel %vm1104, %v1184, %v1186
        %v1188 = vrot.slane %v1048, 1
        %v1189 = vsel %vm1104, %v1186, %v1188
        %v1190 = vrot.slane %v1049, 1
        %v1191 = vsel %vm1104, %v1188, %v1190
        %v1192 = vrot.slane %v1050, 1
        %v1193 = vsel %vm1104, %v1190, %v1192
        %v1194 = vrot.slane %v1051, 1
        %v1195 = vsel %vm1104, %v1192, %v1194
        %v1196 = vrot.slane %v1052, 1
        %v1197 = vsel %vm1104, %v1194, %v1196
        %v1198 = vrot.slane %v1053, 1
        %v1199 = vsel %vm1104, %v1196, %v1198
        %v1200 = vrot.slane %v1054, 1
        %v1201 = vsel %vm1104, %v1198, %v1200
        %v1250 = vmax.f32 %v1006, %v1107
        %v1251 = vmax.f32 %v1007, %v1109
        %v1252 = vmax.f32 %v1008, %v1111
        %v1253 = vmax.f32 %v1009, %v1113
        %v1254 = vmax.f32 %v1010, %v1115
        %v1255 = vmax.f32 %v1011, %v1117
        %v1256 = vmax.f32 %v1012, %v1119
        %v1257 = vmax.f32 %v1013, %v1121
        %v1258 = vmax.f32 %v1014, %v1123
        %v1259 = vmax.f32 %v1015, %v1125
        %v1260 = vmax.f32 %v1016, %v1127
        %v1261 = vmax.f32 %v1017, %v1129
        %v1262 = vmax.f32 %v1018, %v1131
        %v1263 = vmax.f32 %v1019, %v1133
        %v1264 = vmax.f32 %v1020, %v1135
        %v1265 = vmax.f32 %v1021, %v1137
        %v1266 = vmax.f32 %v1022, %v1139
        %v1267 = vmax.f32 %v1023, %v1141
        %v1268 = vmax.f32 %v1024, %v1143
        %v1269 = vmax.f32 %v1025, %v1145
        %v1270 = vmax.f32 %v1026, %v1147
        %v1271 = vmax.f32 %v1027, %v1149
        %v1272 = vmax.f32 %v1028, %v1151
        %v1273 = vmax.f32 %v1029, %v1153
        %v1274 = vmax.f32 %v1030, %v1155
        %v1275 = vmax.f32 %v1031, %v1157
        %v1276 = vmax.f32 %v1032, %v1159
        %v1277 = vmax.f32 %v1033, %v1161
        %v1278 = vmax.f32 %v1034, %v1163
        %v1279 = vmax.f32 %v1035, %v1165
        %v1280 = vmax.f32 %v1036, %v1167
        %v1281 = vmax.f32 %v1037, %v1169
        %v1282 = vmax.f32 %v1038, %v1171
        %v1283 = vmax.f32 %v1039, %v1173
        %v1284 = vmax.f32 %v1040, %v1175
        %v1285 = vmax.f32 %v1041, %v1177
        %v1286 = vmax.f32 %v1042, %v1179
        %v1287 = vmax.f32 %v1043, %v1181
        %v1288 = vmax.f32 %v1044, %v1183
        %v1289 = vmax.f32 %v1045, %v1185
        %v1290 = vmax.f32 %v1046, %v1187
        %v1291 = vmax.f32 %v1047, %v1189
        %v1292 = vmax.f32 %v1048, %v1191
        %v1293 = vmax.f32 %v1049, %v1193
        %v1294 = vmax.f32 %v1050, %v1195
        %v1295 = vmax.f32 %v1051, %v1197
        %v1296 = vmax.f32 %v1052, %v1199
        %v1297 = vmax.f32 %v1053, %v1201
        %v1298 = vmax.f32 %v1250, %v1253
        %v1299 = vmax.f32 %v1251, %v1254
        %v1300 = vmax.f32 %v1252, %v1255
        %v1301 = vld [vmem:[%s5] sm:$0xf]
        %v1302 = vpack.c.bf16 %v1299, %v1298
        %v1303 = vpack.c.bf16 %v1300, %v1300
        %vm1304 = vcmask 195584
        %v1306 = vsel %vm1304, %v1301, 0
        %vm1308 = vcmask 1043456
        %v1310 = vsel %vm1308, %v1303, 0
        %1312 = vmatprep.subr.bf16.mxu0 0
        %1313 = vmatpush1.bf16.msra.mxu0 %v1302
        %1314 = vmatprep.subr.bf16.mxu0 0
        %1315 = vmatpush1.bf16.msra.mxu0 %v1310
        %1316 = vmatprep.subr.bf16.mxu0 0
        %1317 = vmatpush1.bf16.msra.mxu0 0
        %1318 = vmatprep.subr.bf16.mxu0 0
        %1319 = vmatpush1.bf16.msra.mxu0 0
        %1320 = vmatprep.subr.bf16.mxu0 0
        %1321 = vmatpush1.bf16.msra.mxu0 0
        %1322 = vmatprep.subr.bf16.mxu0 0
        %1323 = vmatpush1.bf16.msra.mxu0 0
        %1324 = vmatprep.subr.bf16.mxu0 0
        %1325 = vmatpush1.bf16.msra.mxu0 0
        %1326 = vmatprep.subr.bf16.mxu0 0
        %1327 = vmatpush1.bf16.msra.mxu0 0
        %1328 = vmatprep.subr.bf16.mxu0 0
        %1329 = vmatpush1.bf16.msra.mxu0 0
        %1330 = vmatprep.subr.bf16.mxu0 0
        %1331 = vmatpush1.bf16.msra.mxu0 0
        %1332 = vmatprep.subr.bf16.mxu0 0
        %1333 = vmatpush1.bf16.msra.mxu0 0
        %1334 = vmatprep.subr.bf16.mxu0 0
        %1335 = vmatpush1.bf16.msra.mxu0 0
        %1336 = vmatprep.subr.bf16.mxu0 0
        %1337 = vmatpush1.bf16.msra.mxu0 0
        %1338 = vmatprep.subr.bf16.mxu0 0
        %1339 = vmatpush1.bf16.msra.mxu0 0
        %1340 = vmatprep.subr.bf16.mxu0 0
        %1341 = vmatpush1.bf16.msra.mxu0 0
        %1342 = vmatprep.subr.bf16.mxu0 0
        %1343 = vmatpush1.bf16.msra.mxu0 0
        %1344 = vmatprep.mubr.bf16.mxu0 0
        %1345 = vmatmul.mubr.bf16.gmra.mrb[0].mxu0 %v1306
        %v1346 = vpop.f32.mrb[0].mxu0
        %v1347 = vadd.f32 0.0, %v1346
        %v1348 = vpop.f32.mrb[0].mxu0
        %v1349 = vpop.f32.mrb[0].mxu0
        %v1350 = vpop.f32.mrb[0].mxu0
        %1351 = vdwg.mxu0
        %v1353 = vrot.slane %v1347, 6
        %vm1355 = vcmask 523266
        %1356 = vst.msk [vmem:[#allocation2 + $0x40] sm:$0xfc] %vm1355, %v1353
        %vm1357 = vcmask 517120
        %1358 = vst.msk [vmem:[#allocation2 + $0x50] sm:$0x3] %vm1357, %v1353
        %v1359 = vrot.slane %v1347, 7
        %1360 = vrot.lane.b32.xlu0 %v1359, 64
        %v1361 = vpop.permute.xlu0 %1360
        %vm1363 = vcmask 1048065
        %1364 = vst.msk [vmem:[#allocation2 + $0x40] sm:$0xfe] %vm1363, %v1361
        %vm1365 = vcmask 1040896
        %1366 = vst.msk [vmem:[#allocation2 + $0x50] sm:$0x1] %vm1365, %v1361
        %vm1367 = vcmask 523264
        %1368 = vst.msk [vmem:[#allocation2 + $0x48] sm:$0xff] %vm1367, %v1347
        %v1369 = vmax.f32 %v1256, %v1259
        %v1370 = vmax.f32 %v1257, %v1260
        %v1371 = vmax.f32 %v1258, %v1261
        %v1372 = vld [vmem:[%s5] sm:$0xf]
        %v1373 = vpack.c.bf16 %v1370, %v1369
        %v1374 = vpack.c.bf16 %v1371, %v1371
        %v1376 = vsel %vm1304, %v1372, 0
        %v1379 = vsel %vm1308, %v1374, 0
        %1381 = vmatprep.subr.bf16.mxu0 0
        %1382 = vmatpush1.bf16.msra.mxu0 %v1373
        %1383 = vmatprep.subr.bf16.mxu0 0
        %1384 = vmatpush1.bf16.msra.mxu0 %v1379
        %1385 = vmatprep.subr.bf16.mxu0 0
        %1386 = vmatpush1.bf16.msra.mxu0 0
        %1387 = vmatprep.subr.bf16.mxu0 0
        %1388 = vmatpush1.bf16.msra.mxu0 0
        %1389 = vmatprep.subr.bf16.mxu0 0
        %1390 = vmatpush1.bf16.msra.mxu0 0
        %1391 = vmatprep.subr.bf16.mxu0 0
        %1392 = vmatpush1.bf16.msra.mxu0 0
        %1393 = vmatprep.subr.bf16.mxu0 0
        %1394 = vmatpush1.bf16.msra.mxu0 0
        %1395 = vmatprep.subr.bf16.mxu0 0
        %1396 = vmatpush1.bf16.msra.mxu0 0
        %1397 = vmatprep.subr.bf16.mxu0 0
        %1398 = vmatpush1.bf16.msra.mxu0 0
        %1399 = vmatprep.subr.bf16.mxu0 0
        %1400 = vmatpush1.bf16.msra.mxu0 0
        %1401 = vmatprep.subr.bf16.mxu0 0
        %1402 = vmatpush1.bf16.msra.mxu0 0
        %1403 = vmatprep.subr.bf16.mxu0 0
        %1404 = vmatpush1.bf16.msra.mxu0 0
        %1405 = vmatprep.subr.bf16.mxu0 0
        %1406 = vmatpush1.bf16.msra.mxu0 0
        %1407 = vmatprep.subr.bf16.mxu0 0
        %1408 = vmatpush1.bf16.msra.mxu0 0
        %1409 = vmatprep.subr.bf16.mxu0 0
        %1410 = vmatpush1.bf16.msra.mxu0 0
        %1411 = vmatprep.subr.bf16.mxu0 0
        %1412 = vmatpush1.bf16.msra.mxu0 0
        %1413 = vmatprep.mubr.bf16.mxu0 0
        %1414 = vmatmul.mubr.bf16.gmra.mrb[0].mxu0 %v1376
        %v1415 = vpop.f32.mrb[0].mxu0
        %v1416 = vadd.f32 0.0, %v1415
        %v1417 = vpop.f32.mrb[0].mxu0
        %v1418 = vpop.f32.mrb[0].mxu0
        %v1419 = vpop.f32.mrb[0].mxu0
        %1420 = vdwg.mxu0
        %v1422 = vrot.slane %v1416, 6
        %1424 = vst.msk [vmem:[#allocation2 + $0x60] sm:$0xfc] %vm1355, %v1422
        %1425 = vst.msk [vmem:[#allocation2 + $0x70] sm:$0x3] %vm1357, %v1422
        %v1426 = vrot.slane %v1416, 7
        %1427 = vrot.lane.b32.xlu0 %v1426, 64
        %v1428 = vpop.permute.xlu0 %1427
        %1430 = vst.msk [vmem:[#allocation2 + $0x60] sm:$0xfe] %vm1363, %v1428
        %1431 = vst.msk [vmem:[#allocation2 + $0x70] sm:$0x1] %vm1365, %v1428
        %1432 = vst.msk [vmem:[#allocation2 + $0x68] sm:$0xff] %vm1367, %v1416
        %v1433 = vmax.f32 %v1262, %v1265
        %v1434 = vmax.f32 %v1263, %v1266
        %v1435 = vmax.f32 %v1264, %v1267
        %v1436 = vld [vmem:[%s5] sm:$0xf]
        %v1437 = vpack.c.bf16 %v1434, %v1433
        %v1438 = vpack.c.bf16 %v1435, %v1435
        %v1440 = vsel %vm1304, %v1436, 0
        %v1443 = vsel %vm1308, %v1438, 0
        %1445 = vmatprep.subr.bf16.mxu0 0
        %1446 = vmatpush1.bf16.msra.mxu0 %v1437
        %1447 = vmatprep.subr.bf16.mxu0 0
        %1448 = vmatpush1.bf16.msra.mxu0 %v1443
        %1449 = vmatprep.subr.bf16.mxu0 0
        %1450 = vmatpush1.bf16.msra.mxu0 0
        %1451 = vmatprep.subr.bf16.mxu0 0
        %1452 = vmatpush1.bf16.msra.mxu0 0
        %1453 = vmatprep.subr.bf16.mxu0 0
        %1454 = vmatpush1.bf16.msra.mxu0 0
        %1455 = vmatprep.subr.bf16.mxu0 0
        %1456 = vmatpush1.bf16.msra.mxu0 0
        %1457 = vmatprep.subr.bf16.mxu0 0
        %1458 = vmatpush1.bf16.msra.mxu0 0
        %1459 = vmatprep.subr.bf16.mxu0 0
        %1460 = vmatpush1.bf16.msra.mxu0 0
        %1461 = vmatprep.subr.bf16.mxu0 0
        %1462 = vmatpush1.bf16.msra.mxu0 0
        %1463 = vmatprep.subr.bf16.mxu0 0
        %1464 = vmatpush1.bf16.msra.mxu0 0
        %1465 = vmatprep.subr.bf16.mxu0 0
        %1466 = vmatpush1.bf16.msra.mxu0 0
        %1467 = vmatprep.subr.bf16.mxu0 0
        %1468 = vmatpush1.bf16.msra.mxu0 0
        %1469 = vmatprep.subr.bf16.mxu0 0
        %1470 = vmatpush1.bf16.msra.mxu0 0
        %1471 = vmatprep.subr.bf16.mxu0 0
        %1472 = vmatpush1.bf16.msra.mxu0 0
        %1473 = vmatprep.subr.bf16.mxu0 0
        %1474 = vmatpush1.bf16.msra.mxu0 0
        %1475 = vmatprep.subr.bf16.mxu0 0
        %1476 = vmatpush1.bf16.msra.mxu0 0
        %1477 = vmatprep.mubr.bf16.mxu0 0
        %1478 = vmatmul.mubr.bf16.gmra.mrb[0].mxu0 %v1440
        %v1479 = vpop.f32.mrb[0].mxu0
        %v1480 = vadd.f32 0.0, %v1479
        %v1481 = vpop.f32.mrb[0].mxu0
        %v1482 = vpop.f32.mrb[0].mxu0
        %v1483 = vpop.f32.mrb[0].mxu0
        %1484 = vdwg.mxu0
        %v1486 = vrot.slane %v1480, 6
        %1488 = vst.msk [vmem:[#allocation2 + $0x80] sm:$0xfc] %vm1355, %v1486
        %1489 = vst.msk [vmem:[#allocation2 + $0x90] sm:$0x3] %vm1357, %v1486
        %v1490 = vrot.slane %v1480, 7
        %1491 = vrot.lane.b32.xlu0 %v1490, 64
        %v1492 = vpop.permute.xlu0 %1491
        %1494 = vst.msk [vmem:[#allocation2 + $0x80] sm:$0xfe] %vm1363, %v1492
        %1495 = vst.msk [vmem:[#allocation2 + $0x90] sm:$0x1] %vm1365, %v1492
        %1496 = vst.msk [vmem:[#allocation2 + $0x88] sm:$0xff] %vm1367, %v1480
        %v1497 = vmax.f32 %v1268, %v1271
        %v1498 = vmax.f32 %v1269, %v1272
        %v1499 = vmax.f32 %v1270, %v1273
        %v1500 = vld [vmem:[%s5] sm:$0xf]
        %v1501 = vpack.c.bf16 %v1498, %v1497
        %v1502 = vpack.c.bf16 %v1499, %v1499
        %v1504 = vsel %vm1304, %v1500, 0
        %v1507 = vsel %vm1308, %v1502, 0
        %1509 = vmatprep.subr.bf16.mxu0 0
        %1510 = vmatpush1.bf16.msra.mxu0 %v1501
        %1511 = vmatprep.subr.bf16.mxu0 0
        %1512 = vmatpush1.bf16.msra.mxu0 %v1507
        %1513 = vmatprep.subr.bf16.mxu0 0
        %1514 = vmatpush1.bf16.msra.mxu0 0
        %1515 = vmatprep.subr.bf16.mxu0 0
        %1516 = vmatpush1.bf16.msra.mxu0 0
        %1517 = vmatprep.subr.bf16.mxu0 0
        %1518 = vmatpush1.bf16.msra.mxu0 0
        %1519 = vmatprep.subr.bf16.mxu0 0
        %1520 = vmatpush1.bf16.msra.mxu0 0
        %1521 = vmatprep.subr.bf16.mxu0 0
        %1522 = vmatpush1.bf16.msra.mxu0 0
        %1523 = vmatprep.subr.bf16.mxu0 0
        %1524 = vmatpush1.bf16.msra.mxu0 0
        %1525 = vmatprep.subr.bf16.mxu0 0
        %1526 = vmatpush1.bf16.msra.mxu0 0
        %1527 = vmatprep.subr.bf16.mxu0 0
        %1528 = vmatpush1.bf16.msra.mxu0 0
        %1529 = vmatprep.subr.bf16.mxu0 0
        %1530 = vmatpush1.bf16.msra.mxu0 0
        %1531 = vmatprep.subr.bf16.mxu0 0
        %1532 = vmatpush1.bf16.msra.mxu0 0
        %1533 = vmatprep.subr.bf16.mxu0 0
        %1534 = vmatpush1.bf16.msra.mxu0 0
        %1535 = vmatprep.subr.bf16.mxu0 0
        %1536 = vmatpush1.bf16.msra.mxu0 0
        %1537 = vmatprep.subr.bf16.mxu0 0
        %1538 = vmatpush1.bf16.msra.mxu0 0
        %1539 = vmatprep.subr.bf16.mxu0 0
        %1540 = vmatpush1.bf16.msra.mxu0 0
        %1541 = vmatprep.mubr.bf16.mxu0 0
        %1542 = vmatmul.mubr.bf16.gmra.mrb[0].mxu0 %v1504
        %v1543 = vpop.f32.mrb[0].mxu0
        %v1544 = vadd.f32 0.0, %v1543
        %v1545 = vpop.f32.mrb[0].mxu0
        %v1546 = vpop.f32.mrb[0].mxu0
        %v1547 = vpop.f32.mrb[0].mxu0
        %1548 = vdwg.mxu0
        %v1550 = vrot.slane %v1544, 6
        %1552 = vst.msk [vmem:[#allocation2 + $0xa0] sm:$0xfc] %vm1355, %v1550
        %1553 = vst.msk [vmem:[#allocation2 + $0xb0] sm:$0x3] %vm1357, %v1550
        %v1554 = vrot.slane %v1544, 7
        %1555 = vrot.lane.b32.xlu0 %v1554, 64
        %v1556 = vpop.permute.xlu0 %1555
        %1558 = vst.msk [vmem:[#allocation2 + $0xa0] sm:$0xfe] %vm1363, %v1556
        %1559 = vst.msk [vmem:[#allocation2 + $0xb0] sm:$0x1] %vm1365, %v1556
        %1560 = vst.msk [vmem:[#allocation2 + $0xa8] sm:$0xff] %vm1367, %v1544
        %v1561 = vmax.f32 %v1274, %v1277
        %v1562 = vmax.f32 %v1275, %v1278
        %v1563 = vmax.f32 %v1276, %v1279
        %v1564 = vld [vmem:[%s5] sm:$0xf]
        %v1565 = vpack.c.bf16 %v1562, %v1561
        %v1566 = vpack.c.bf16 %v1563, %v1563
        %v1568 = vsel %vm1304, %v1564, 0
        %v1571 = vsel %vm1308, %v1566, 0
        %1573 = vmatprep.subr.bf16.mxu0 0
        %1574 = vmatpush1.bf16.msra.mxu0 %v1565
        %1575 = vmatprep.subr.bf16.mxu0 0
        %1576 = vmatpush1.bf16.msra.mxu0 %v1571
        %1577 = vmatprep.subr.bf16.mxu0 0
        %1578 = vmatpush1.bf16.msra.mxu0 0
        %1579 = vmatprep.subr.bf16.mxu0 0
        %1580 = vmatpush1.bf16.msra.mxu0 0
        %1581 = vmatprep.subr.bf16.mxu0 0
        %1582 = vmatpush1.bf16.msra.mxu0 0
        %1583 = vmatprep.subr.bf16.mxu0 0
        %1584 = vmatpush1.bf16.msra.mxu0 0
        %1585 = vmatprep.subr.bf16.mxu0 0
        %1586 = vmatpush1.bf16.msra.mxu0 0
        %1587 = vmatprep.subr.bf16.mxu0 0
        %1588 = vmatpush1.bf16.msra.mxu0 0
        %1589 = vmatprep.subr.bf16.mxu0 0
        %1590 = vmatpush1.bf16.msra.mxu0 0
        %1591 = vmatprep.subr.bf16.mxu0 0
        %1592 = vmatpush1.bf16.msra.mxu0 0
        %1593 = vmatprep.subr.bf16.mxu0 0
        %1594 = vmatpush1.bf16.msra.mxu0 0
        %1595 = vmatprep.subr.bf16.mxu0 0
        %1596 = vmatpush1.bf16.msra.mxu0 0
        %1597 = vmatprep.subr.bf16.mxu0 0
        %1598 = vmatpush1.bf16.msra.mxu0 0
        %1599 = vmatprep.subr.bf16.mxu0 0
        %1600 = vmatpush1.bf16.msra.mxu0 0
        %1601 = vmatprep.subr.bf16.mxu0 0
        %1602 = vmatpush1.bf16.msra.mxu0 0
        %1603 = vmatprep.subr.bf16.mxu0 0
        %1604 = vmatpush1.bf16.msra.mxu0 0
        %1605 = vmatprep.mubr.bf16.mxu0 0
        %1606 = vmatmul.mubr.bf16.gmra.mrb[0].mxu0 %v1568
        %v1607 = vpop.f32.mrb[0].mxu0
        %v1608 = vadd.f32 0.0, %v1607
        %v1609 = vpop.f32.mrb[0].mxu0
        %v1610 = vpop.f32.mrb[0].mxu0
        %v1611 = vpop.f32.mrb[0].mxu0
        %1612 = vdwg.mxu0
        %v1614 = vrot.slane %v1608, 6
        %1616 = vst.msk [vmem:[#allocation2 + $0xc0] sm:$0xfc] %vm1355, %v1614
        %1617 = vst.msk [vmem:[#allocation2 + $0xd0] sm:$0x3] %vm1357, %v1614
        %v1618 = vrot.slane %v1608, 7
        %1619 = vrot.lane.b32.xlu0 %v1618, 64
        %v1620 = vpop.permute.xlu0 %1619
        %1622 = vst.msk [vmem:[#allocation2 + $0xc0] sm:$0xfe] %vm1363, %v1620
        %1623 = vst.msk [vmem:[#allocation2 + $0xd0] sm:$0x1] %vm1365, %v1620
        %1624 = vst.msk [vmem:[#allocation2 + $0xc8] sm:$0xff] %vm1367, %v1608
        %v1625 = vmax.f32 %v1280, %v1283
        %v1626 = vmax.f32 %v1281, %v1284
        %v1627 = vmax.f32 %v1282, %v1285
        %v1628 = vld [vmem:[%s5] sm:$0xf]
        %v1629 = vpack.c.bf16 %v1626, %v1625
        %v1630 = vpack.c.bf16 %v1627, %v1627
        %v1632 = vsel %vm1304, %v1628, 0
        %v1635 = vsel %vm1308, %v1630, 0
        %1637 = vmatprep.subr.bf16.mxu0 0
        %1638 = vmatpush1.bf16.msra.mxu0 %v1629
        %1639 = vmatprep.subr.bf16.mxu0 0
        %1640 = vmatpush1.bf16.msra.mxu0 %v1635
        %1641 = vmatprep.subr.bf16.mxu0 0
        %1642 = vmatpush1.bf16.msra.mxu0 0
        %1643 = vmatprep.subr.bf16.mxu0 0
        %1644 = vmatpush1.bf16.msra.mxu0 0
        %1645 = vmatprep.subr.bf16.mxu0 0
        %1646 = vmatpush1.bf16.msra.mxu0 0
        %1647 = vmatprep.subr.bf16.mxu0 0
        %1648 = vmatpush1.bf16.msra.mxu0 0
        %1649 = vmatprep.subr.bf16.mxu0 0
        %1650 = vmatpush1.bf16.msra.mxu0 0
        %1651 = vmatprep.subr.bf16.mxu0 0
        %1652 = vmatpush1.bf16.msra.mxu0 0
        %1653 = vmatprep.subr.bf16.mxu0 0
        %1654 = vmatpush1.bf16.msra.mxu0 0
        %1655 = vmatprep.subr.bf16.mxu0 0
        %1656 = vmatpush1.bf16.msra.mxu0 0
        %1657 = vmatprep.subr.bf16.mxu0 0
        %1658 = vmatpush1.bf16.msra.mxu0 0
        %1659 = vmatprep.subr.bf16.mxu0 0
        %1660 = vmatpush1.bf16.msra.mxu0 0
        %1661 = vmatprep.subr.bf16.mxu0 0
        %1662 = vmatpush1.bf16.msra.mxu0 0
        %1663 = vmatprep.subr.bf16.mxu0 0
        %1664 = vmatpush1.bf16.msra.mxu0 0
        %1665 = vmatprep.subr.bf16.mxu0 0
        %1666 = vmatpush1.bf16.msra.mxu0 0
        %1667 = vmatprep.subr.bf16.mxu0 0
        %1668 = vmatpush1.bf16.msra.mxu0 0
        %1669 = vmatprep.mubr.bf16.mxu0 0
        %1670 = vmatmul.mubr.bf16.gmra.mrb[0].mxu0 %v1632
        %v1671 = vpop.f32.mrb[0].mxu0
        %v1672 = vadd.f32 0.0, %v1671
        %v1673 = vpop.f32.mrb[0].mxu0
        %v1674 = vpop.f32.mrb[0].mxu0
        %v1675 = vpop.f32.mrb[0].mxu0
        %1676 = vdwg.mxu0
        %v1678 = vrot.slane %v1672, 6
        %1680 = vst.msk [vmem:[#allocation2 + $0xe0] sm:$0xfc] %vm1355, %v1678
        %1681 = vst.msk [vmem:[#allocation2 + $0xf0] sm:$0x3] %vm1357, %v1678
        %v1682 = vrot.slane %v1672, 7
        %1683 = vrot.lane.b32.xlu0 %v1682, 64
        %v1684 = vpop.permute.xlu0 %1683
        %1686 = vst.msk [vmem:[#allocation2 + $0xe0] sm:$0xfe] %vm1363, %v1684
        %1687 = vst.msk [vmem:[#allocation2 + $0xf0] sm:$0x1] %vm1365, %v1684
        %1688 = vst.msk [vmem:[#allocation2 + $0xe8] sm:$0xff] %vm1367, %v1672
        %v1689 = vmax.f32 %v1286, %v1289
        %v1690 = vmax.f32 %v1287, %v1290
        %v1691 = vmax.f32 %v1288, %v1291
        %v1692 = vld [vmem:[%s5] sm:$0xf]
        %v1693 = vpack.c.bf16 %v1690, %v1689
        %v1694 = vpack.c.bf16 %v1691, %v1691
        %v1696 = vsel %vm1304, %v1692, 0
        %v1699 = vsel %vm1308, %v1694, 0
        %1701 = vmatprep.subr.bf16.mxu0 0
        %1702 = vmatpush1.bf16.msra.mxu0 %v1693
        %1703 = vmatprep.subr.bf16.mxu0 0
        %1704 = vmatpush1.bf16.msra.mxu0 %v1699
        %1705 = vmatprep.subr.bf16.mxu0 0
        %1706 = vmatpush1.bf16.msra.mxu0 0
        %1707 = vmatprep.subr.bf16.mxu0 0
        %1708 = vmatpush1.bf16.msra.mxu0 0
        %1709 = vmatprep.subr.bf16.mxu0 0
        %1710 = vmatpush1.bf16.msra.mxu0 0
        %1711 = vmatprep.subr.bf16.mxu0 0
        %1712 = vmatpush1.bf16.msra.mxu0 0
        %1713 = vmatprep.subr.bf16.mxu0 0
        %1714 = vmatpush1.bf16.msra.mxu0 0
        %1715 = vmatprep.subr.bf16.mxu0 0
        %1716 = vmatpush1.bf16.msra.mxu0 0
        %1717 = vmatprep.subr.bf16.mxu0 0
        %1718 = vmatpush1.bf16.msra.mxu0 0
        %1719 = vmatprep.subr.bf16.mxu0 0
        %1720 = vmatpush1.bf16.msra.mxu0 0
        %1721 = vmatprep.subr.bf16.mxu0 0
        %1722 = vmatpush1.bf16.msra.mxu0 0
        %1723 = vmatprep.subr.bf16.mxu0 0
        %1724 = vmatpush1.bf16.msra.mxu0 0
        %1725 = vmatprep.subr.bf16.mxu0 0
        %1726 = vmatpush1.bf16.msra.mxu0 0
        %1727 = vmatprep.subr.bf16.mxu0 0
        %1728 = vmatpush1.bf16.msra.mxu0 0
        %1729 = vmatprep.subr.bf16.mxu0 0
        %1730 = vmatpush1.bf16.msra.mxu0 0
        %1731 = vmatprep.subr.bf16.mxu0 0
        %1732 = vmatpush1.bf16.msra.mxu0 0
        %1733 = vmatprep.mubr.bf16.mxu0 0
        %1734 = vmatmul.mubr.bf16.gmra.mrb[0].mxu0 %v1696
        %v1735 = vpop.f32.mrb[0].mxu0
        %v1736 = vadd.f32 0.0, %v1735
        %v1737 = vpop.f32.mrb[0].mxu0
        %v1738 = vpop.f32.mrb[0].mxu0
        %v1739 = vpop.f32.mrb[0].mxu0
        %1740 = vdwg.mxu0
        %v1742 = vrot.slane %v1736, 6
        %1744 = vst.msk [vmem:[#allocation2 + $0x100] sm:$0xfc] %vm1355, %v1742
        %1745 = vst.msk [vmem:[#allocation2 + $0x110] sm:$0x3] %vm1357, %v1742
        %v1746 = vrot.slane %v1736, 7
        %1747 = vrot.lane.b32.xlu0 %v1746, 64
        %v1748 = vpop.permute.xlu0 %1747
        %1750 = vst.msk [vmem:[#allocation2 + $0x100] sm:$0xfe] %vm1363, %v1748
        %1751 = vst.msk [vmem:[#allocation2 + $0x110] sm:$0x1] %vm1365, %v1748
        %1752 = vst.msk [vmem:[#allocation2 + $0x108] sm:$0xff] %vm1367, %v1736
        %v1753 = vmax.f32 %v1292, %v1295
        %v1754 = vmax.f32 %v1293, %v1296
        %v1755 = vmax.f32 %v1294, %v1297
        %v1756 = vld [vmem:[%s5] sm:$0xf]
        %v1757 = vpack.c.bf16 %v1754, %v1753
        %v1758 = vpack.c.bf16 %v1755, %v1755
        %v1760 = vsel %vm1304, %v1756, 0
        %v1763 = vsel %vm1308, %v1758, 0
        %1765 = vmatprep.subr.bf16.mxu0 0
        %1766 = vmatpush1.bf16.msra.mxu0 %v1757
        %1767 = vmatprep.subr.bf16.mxu0 0
        %1768 = vmatpush1.bf16.msra.mxu0 %v1763
        %1769 = vmatprep.subr.bf16.mxu0 0
        %1770 = vmatpush1.bf16.msra.mxu0 0
        %1771 = vmatprep.subr.bf16.mxu0 0
        %1772 = vmatpush1.bf16.msra.mxu0 0
        %1773 = vmatprep.subr.bf16.mxu0 0
        %1774 = vmatpush1.bf16.msra.mxu0 0
        %1775 = vmatprep.subr.bf16.mxu0 0
        %1776 = vmatpush1.bf16.msra.mxu0 0
        %1777 = vmatprep.subr.bf16.mxu0 0
        %1778 = vmatpush1.bf16.msra.mxu0 0
        %1779 = vmatprep.subr.bf16.mxu0 0
        %1780 = vmatpush1.bf16.msra.mxu0 0
        %1781 = vmatprep.subr.bf16.mxu0 0
        %1782 = vmatpush1.bf16.msra.mxu0 0
        %1783 = vmatprep.subr.bf16.mxu0 0
        %1784 = vmatpush1.bf16.msra.mxu0 0
        %1785 = vmatprep.subr.bf16.mxu0 0
        %1786 = vmatpush1.bf16.msra.mxu0 0
        %1787 = vmatprep.subr.bf16.mxu0 0
        %1788 = vmatpush1.bf16.msra.mxu0 0
        %1789 = vmatprep.subr.bf16.mxu0 0
        %1790 = vmatpush1.bf16.msra.mxu0 0
        %1791 = vmatprep.subr.bf16.mxu0 0
        %1792 = vmatpush1.bf16.msra.mxu0 0
        %1793 = vmatprep.subr.bf16.mxu0 0
        %1794 = vmatpush1.bf16.msra.mxu0 0
        %1795 = vmatprep.subr.bf16.mxu0 0
        %1796 = vmatpush1.bf16.msra.mxu0 0
        %1797 = vmatprep.mubr.bf16.mxu0 0
        %1798 = vmatmul.mubr.bf16.gmra.mrb[0].mxu0 %v1760
        %v1799 = vpop.f32.mrb[0].mxu0
        %v1800 = vadd.f32 0.0, %v1799
        %v1801 = vpop.f32.mrb[0].mxu0
        %v1802 = vpop.f32.mrb[0].mxu0
        %v1803 = vpop.f32.mrb[0].mxu0
        %1804 = vdwg.mxu0
        %v1806 = vrot.slane %v1800, 6
        %1808 = vst.msk [vmem:[#allocation2 + $0x120] sm:$0xfc] %vm1355, %v1806
        %1809 = vst.msk [vmem:[#allocation2 + $0x130] sm:$0x3] %vm1357, %v1806
        %v1810 = vrot.slane %v1800, 7
        %1811 = vrot.lane.b32.xlu0 %v1810, 64
        %v1812 = vpop.permute.xlu0 %1811
        %1814 = vst.msk [vmem:[#allocation2 + $0x120] sm:$0xfe] %vm1363, %v1812
        %1815 = vst.msk [vmem:[#allocation2 + $0x130] sm:$0x1] %vm1365, %v1812
        %1816 = vst.msk [vmem:[#allocation2 + $0x128] sm:$0xff] %vm1367, %v1800
        %s1817 = scalar_lea.vmem %s4, 1
        %v1818 = vld [vmem:[%s1817] sm:$0x1]
        %v1819 = vld [vmem:[#allocation2] sm:$0xff]
        %v1820 = vld [vmem:[#allocation2 + $0x8] sm:$0xff]
        %v1821 = vld [vmem:[#allocation2 + $0x10] sm:$0xff]
        %v1822 = vld [vmem:[#allocation2 + $0x18] sm:$0xff]
        %v1823 = vld [vmem:[#allocation2 + $0x20] sm:$0xff]
        %v1824 = vld [vmem:[#allocation2 + $0x28] sm:$0xff]
        %v1825 = vld [vmem:[#allocation2 + $0x30] sm:$0xff]
        %v1826 = vld [vmem:[#allocation2 + $0x38] sm:$0xff]
        %v1827 = vld [vmem:[#allocation2 + $0x40] sm:$0xff]
        %v1828 = vld [vmem:[#allocation2 + $0x48] sm:$0xff]
        %v1829 = vld [vmem:[#allocation2 + $0x50] sm:$0xff]
        %v1830 = vld [vmem:[#allocation2 + $0x58] sm:$0xff]
        %v1831 = vld [vmem:[#allocation2 + $0x60] sm:$0xff]
        %v1832 = vld [vmem:[#allocation2 + $0x68] sm:$0xff]
        %v1833 = vld [vmem:[#allocation2 + $0x70] sm:$0xff]
        %v1834 = vld [vmem:[#allocation2 + $0x78] sm:$0xff]
        %v1835 = vld [vmem:[#allocation2 + $0x80] sm:$0xff]
        %v1836 = vld [vmem:[#allocation2 + $0x88] sm:$0xff]
        %v1837 = vld [vmem:[#allocation2 + $0x90] sm:$0xff]
        %v1838 = vld [vmem:[#allocation2 + $0x98] sm:$0xff]
        %v1839 = vld [vmem:[#allocation2 + $0xa0] sm:$0xff]
        %v1840 = vld [vmem:[#allocation2 + $0xa8] sm:$0xff]
        %v1841 = vld [vmem:[#allocation2 + $0xb0] sm:$0xff]
        %v1842 = vld [vmem:[#allocation2 + $0xb8] sm:$0xff]
        %v1843 = vld [vmem:[#allocation2 + $0xc0] sm:$0xff]
        %v1844 = vld [vmem:[#allocation2 + $0xc8] sm:$0xff]
        %v1845 = vld [vmem:[#allocation2 + $0xd0] sm:$0xff]
        %v1846 = vld [vmem:[#allocation2 + $0xd8] sm:$0xff]
        %v1847 = vld [vmem:[#allocation2 + $0xe0] sm:$0xff]
        %v1848 = vld [vmem:[#allocation2 + $0xe8] sm:$0xff]
        %v1849 = vld [vmem:[#allocation2 + $0xf0] sm:$0xff]
        %v1850 = vld [vmem:[#allocation2 + $0xf8] sm:$0xff]
        %v1851 = vld [vmem:[#allocation2 + $0x100] sm:$0xff]
        %v1852 = vld [vmem:[#allocation2 + $0x108] sm:$0xff]
        %v1853 = vld [vmem:[#allocation2 + $0x110] sm:$0xff]
        %v1854 = vld [vmem:[#allocation2 + $0x118] sm:$0xff]
        %v1855 = vld [vmem:[#allocation2 + $0x120] sm:$0xff]
        %v1856 = vld [vmem:[#allocation2 + $0x128] sm:$0xff]
        %v1857 = vld [vmem:[#allocation2 + $0x130] sm:$0xff]
        %v1858 = vld [vmem:[#allocation2 + $0x138] sm:$0xff]
        %v1859 = vpack.c.bf16 %v1821, %v1819
        %v1860 = vpack.c.bf16 %v1822, %v1820
        %v1861 = vpack.c.bf16 %v1825, %v1823
        %v1862 = vpack.c.bf16 %v1826, %v1824
        %v1863 = vpack.c.bf16 %v1829, %v1827
        %v1864 = vpack.c.bf16 %v1830, %v1828
        %v1865 = vpack.c.bf16 %v1833, %v1831
        %v1866 = vpack.c.bf16 %v1834, %v1832
        %v1867 = vpack.c.bf16 %v1837, %v1835
        %v1868 = vpack.c.bf16 %v1838, %v1836
        %v1869 = vpack.c.bf16 %v1841, %v1839
        %v1870 = vpack.c.bf16 %v1842, %v1840
        %v1871 = vpack.c.bf16 %v1845, %v1843
        %v1872 = vpack.c.bf16 %v1846, %v1844
        %v1873 = vpack.c.bf16 %v1849, %v1847
        %v1874 = vpack.c.bf16 %v1850, %v1848
        %v1875 = vpack.c.bf16 %v1853, %v1851
        %v1876 = vpack.c.bf16 %v1854, %v1852
        %v1877 = vpack.c.bf16 %v1857, %v1855
        %v1878 = vpack.c.bf16 %v1858, %v1856
        %v1879 = vld [vmem:[%s2] sm:$0xf]
        %v1880 = vld [vmem:[%s2 + $0x4] sm:$0xf]
        %v1881 = vld [vmem:[%s2 + $0x8] sm:$0xf]
        %v1882 = vld [vmem:[%s2 + $0xc] sm:$0xf]
        %v1883 = vld [vmem:[%s2 + $0x10] sm:$0xf]
        %v1884 = vld [vmem:[%s2 + $0x14] sm:$0xf]
        %v1885 = vld [vmem:[%s2 + $0x18] sm:$0xf]
        %v1886 = vld [vmem:[%s2 + $0x1c] sm:$0xf]
        %v1887 = vld [vmem:[%s2 + $0x20] sm:$0xf]
        %v1888 = vld [vmem:[%s2 + $0x24] sm:$0xf]
        %v1889 = vld [vmem:[%s2 + $0x28] sm:$0xf]
        %v1890 = vld [vmem:[%s2 + $0x2c] sm:$0xf]
        %v1891 = vld [vmem:[%s2 + $0x30] sm:$0xf]
        %v1892 = vld [vmem:[%s2 + $0x34] sm:$0xf]
        %v1893 = vld [vmem:[%s2 + $0x38] sm:$0xf]
        %v1894 = vld [vmem:[%s2 + $0x3c] sm:$0xf]
        %v1895 = vld [vmem:[%s2 + $0x40] sm:$0xf]
        %v1896 = vld [vmem:[%s2 + $0x44] sm:$0xf]
        %v1897 = vld [vmem:[%s2 + $0x48] sm:$0xf]
        %v1898 = vld [vmem:[%s2 + $0x4c] sm:$0xf]
        %v1899 = vld [vmem:[%s2 + $0x50] sm:$0xf]
        %v1900 = vld [vmem:[%s2 + $0x54] sm:$0xf]
        %v1901 = vld [vmem:[%s2 + $0x58] sm:$0xf]
        %v1902 = vld [vmem:[%s2 + $0x5c] sm:$0xf]
        %v1903 = vld [vmem:[%s2 + $0x60] sm:$0xf]
        %v1904 = vld [vmem:[%s2 + $0x64] sm:$0xf]
        %v1905 = vld [vmem:[%s2 + $0x68] sm:$0xf]
        %v1906 = vld [vmem:[%s2 + $0x6c] sm:$0xf]
        %v1907 = vld [vmem:[%s2 + $0x70] sm:$0xf]
        %v1908 = vld [vmem:[%s2 + $0x74] sm:$0xf]
        %v1909 = vld [vmem:[%s2 + $0x78] sm:$0xf]
        %v1910 = vld [vmem:[%s2 + $0x7c] sm:$0xf]
        %v1911 = vld [vmem:[#allocation2 + $0x140] sm:$0xff]
        %v1912 = vld [vmem:[#allocation2 + $0x148] sm:$0xff]
        %v1913 = vld [vmem:[#allocation2 + $0x150] sm:$0xff]
        %v1914 = vld [vmem:[#allocation2 + $0x158] sm:$0xff]
        %v1915 = vpack.c.bf16 %v1913, %v1911
        %v1916 = vpack.c.bf16 %v1914, %v1912
        %s1917 = scalar_lea.vmem %s2, 128
        %v1918 = vld [vmem:[%s1917] sm:$0xf]
        %v1919 = vld [vmem:[%s1917 + $0x4] sm:$0xf]
        %v1920 = vld [vmem:[%s1917 + $0x8] sm:$0xf]
        %v1921 = vld [vmem:[%s1917 + $0xc] sm:$0xf]
        %v1922 = vld [vmem:[%s1917 + $0x10] sm:$0xf]
        %v1923 = vld [vmem:[%s1917 + $0x14] sm:$0xf]
        %v1924 = vld [vmem:[%s1917 + $0x18] sm:$0xf]
        %v1925 = vld [vmem:[%s1917 + $0x1c] sm:$0xf]
        %v1926 = vld [vmem:[%s1917 + $0x20] sm:$0xf]
        %v1927 = vld [vmem:[%s1917 + $0x24] sm:$0xf]
        %v1928 = vld [vmem:[%s1917 + $0x28] sm:$0xf]
        %v1929 = vld [vmem:[%s1917 + $0x2c] sm:$0xf]
        %v1930 = vld [vmem:[%s1917 + $0x30] sm:$0xf]
        %v1931 = vld [vmem:[%s1917 + $0x34] sm:$0xf]
        %v1932 = vld [vmem:[%s1917 + $0x38] sm:$0xf]
        %v1933 = vld [vmem:[%s1917 + $0x3c] sm:$0xf]
        %v1934 = vld [vmem:[%s1917 + $0x40] sm:$0xf]
        %v1935 = vld [vmem:[%s1917 + $0x44] sm:$0xf]
        %v1936 = vld [vmem:[%s1917 + $0x48] sm:$0xf]
        %v1937 = vld [vmem:[%s1917 + $0x4c] sm:$0xf]
        %v1938 = vld [vmem:[%s1917 + $0x50] sm:$0xf]
        %v1939 = vld [vmem:[%s1917 + $0x54] sm:$0xf]
        %v1940 = vld [vmem:[%s1917 + $0x58] sm:$0xf]
        %v1941 = vld [vmem:[%s1917 + $0x5c] sm:$0xf]
        %v1942 = vld [vmem:[%s1917 + $0x60] sm:$0xf]
        %v1943 = vld [vmem:[%s1917 + $0x64] sm:$0xf]
        %v1944 = vld [vmem:[%s1917 + $0x68] sm:$0xf]
        %v1945 = vld [vmem:[%s1917 + $0x6c] sm:$0xf]
        %v1946 = vld [vmem:[%s1917 + $0x70] sm:$0xf]
        %v1947 = vld [vmem:[%s1917 + $0x74] sm:$0xf]
        %v1948 = vld [vmem:[%s1917 + $0x78] sm:$0xf]
        %v1949 = vld [vmem:[%s1917 + $0x7c] sm:$0xf]
        %v1982 = vunpack.c.l.b16 %v1918
        %v1983 = vunpack.c.l.b16 %v1919
        %v1984 = vunpack.c.l.b16 %v1920
        %v1985 = vunpack.c.l.b16 %v1921
        %v1986 = vunpack.c.l.b16 %v1922
        %v1987 = vunpack.c.l.b16 %v1923
        %v1988 = vunpack.c.l.b16 %v1924
        %v1989 = vunpack.c.l.b16 %v1925
        %v1990 = vunpack.c.l.b16 %v1926
        %v1991 = vunpack.c.l.b16 %v1927
        %v1992 = vunpack.c.l.b16 %v1928
        %v1993 = vunpack.c.l.b16 %v1929
        %v1994 = vunpack.c.l.b16 %v1930
        %v1995 = vunpack.c.l.b16 %v1931
        %v1996 = vunpack.c.l.b16 %v1932
        %v1997 = vunpack.c.l.b16 %v1933
        %v1998 = vunpack.c.l.b16 %v1934
        %v1999 = vunpack.c.l.b16 %v1935
        %v2000 = vunpack.c.l.b16 %v1936
        %v2001 = vunpack.c.l.b16 %v1937
        %v2002 = vunpack.c.l.b16 %v1938
        %v2003 = vunpack.c.l.b16 %v1939
        %v2004 = vunpack.c.l.b16 %v1940
        %v2005 = vunpack.c.l.b16 %v1941
        %v2006 = vunpack.c.l.b16 %v1942
        %v2007 = vunpack.c.l.b16 %v1943
        %v2008 = vunpack.c.l.b16 %v1944
        %v2009 = vunpack.c.l.b16 %v1945
        %v2010 = vunpack.c.l.b16 %v1946
        %v2011 = vunpack.c.l.b16 %v1947
        %v2012 = vunpack.c.l.b16 %v1948
        %v2013 = vunpack.c.l.b16 %v1949
        %v2014 = vpack.c.b16 %v1983, %v1982
        %v2015 = vpack.c.b16 %v1985, %v1984
        %v2016 = vpack.c.b16 %v1987, %v1986
        %v2017 = vpack.c.b16 %v1989, %v1988
        %v2018 = vpack.c.b16 %v1991, %v1990
        %v2019 = vpack.c.b16 %v1993, %v1992
        %v2020 = vpack.c.b16 %v1995, %v1994
        %v2021 = vpack.c.b16 %v1997, %v1996
        %v2022 = vpack.c.b16 %v1999, %v1998
        %v2023 = vpack.c.b16 %v2001, %v2000
        %v2024 = vpack.c.b16 %v2003, %v2002
        %v2025 = vpack.c.b16 %v2005, %v2004
        %v2026 = vpack.c.b16 %v2007, %v2006
        %v2027 = vpack.c.b16 %v2009, %v2008
        %v2028 = vpack.c.b16 %v2011, %v2010
        %v2029 = vpack.c.b16 %v2013, %v2012
        %2046 = vmatprep.subr.bf16.mxu0 0
        %2047 = vmatpush1.bf16.msra.mxu0 %v2014
        %2048 = vmatprep.subr.bf16.mxu0 0
        %2049 = vmatpush1.bf16.msra.mxu0 %v2015
        %2050 = vmatprep.subr.bf16.mxu0 0
        %2051 = vmatpush1.bf16.msra.mxu0 %v2016
        %2052 = vmatprep.subr.bf16.mxu0 0
        %2053 = vmatpush1.bf16.msra.mxu0 %v2017
        %2054 = vmatprep.subr.bf16.mxu0 0
        %2055 = vmatpush1.bf16.msra.mxu0 %v2018
        %2056 = vmatprep.subr.bf16.mxu0 0
        %2057 = vmatpush1.bf16.msra.mxu0 %v2019
        %2058 = vmatprep.subr.bf16.mxu0 0
        %2059 = vmatpush1.bf16.msra.mxu0 %v2020
        %2060 = vmatprep.subr.bf16.mxu0 0
        %2061 = vmatpush1.bf16.msra.mxu0 %v2021
        %2062 = vmatprep.subr.bf16.mxu0 0
        %2063 = vmatpush1.bf16.msra.mxu0 %v2022
        %2064 = vmatprep.subr.bf16.mxu0 0
        %2065 = vmatpush1.bf16.msra.mxu0 %v2023
        %2066 = vmatprep.subr.bf16.mxu0 0
        %2067 = vmatpush1.bf16.msra.mxu0 %v2024
        %2068 = vmatprep.subr.bf16.mxu0 0
        %2069 = vmatpush1.bf16.msra.mxu0 %v2025
        %2070 = vmatprep.subr.bf16.mxu0 0
        %2071 = vmatpush1.bf16.msra.mxu0 %v2026
        %2072 = vmatprep.subr.bf16.mxu0 0
        %2073 = vmatpush1.bf16.msra.mxu0 %v2027
        %2074 = vmatprep.subr.bf16.mxu0 0
        %2075 = vmatpush1.bf16.msra.mxu0 %v2028
        %2076 = vmatprep.subr.bf16.mxu0 0
        %2077 = vmatpush1.bf16.msra.mxu0 %v2029
        %2078 = vmatprep.mubr.bf16.mxu0 %v1862
        %2079 = vmatmul.mubr.bf16.gmra.mrb[0].mxu0 %v1861
        %v2080 = vpop.f32.mrb[0].mxu0
        %v2081 = vpop.f32.mrb[0].mxu0
        %v2082 = vpop.f32.mrb[0].mxu0
        %v2083 = vpop.f32.mrb[0].mxu0
        %2084 = vmatprep.mubr.bf16.mxu0 %v1864
        %2085 = vmatmul.mubr.bf16.gmra.mrb[0].mxu0 %v1863
        %v2086 = vpop.f32.mrb[0].mxu0
        %v2087 = vadd.f32 0.0, %v2086
        %v2088 = vpop.f32.mrb[0].mxu0
        %v2089 = vpop.f32.mrb[0].mxu0
        %v2090 = vadd.f32 0.0, %v2089
        %v2091 = vpop.f32.mrb[0].mxu0
        %2092 = vmatprep.mubr.bf16.mxu0 %v1866
        %2093 = vmatmul.mubr.bf16.gmra.mrb[0].mxu0 %v1865
        %v2094 = vpop.f32.mrb[0].mxu0
        %v2095 = vadd.f32 0.0, %v2094
        %v2096 = vpop.f32.mrb[0].mxu0
        %v2097 = vpop.f32.mrb[0].mxu0
        %v2098 = vadd.f32 0.0, %v2097
        %v2099 = vpop.f32.mrb[0].mxu0
        %2100 = vmatprep.mubr.bf16.mxu0 %v1868
        %2101 = vmatmul.mubr.bf16.gmra.mrb[0].mxu0 %v1867
        %v2102 = vpop.f32.mrb[0].mxu0
        %v2103 = vadd.f32 0.0, %v2102
        %v2104 = vpop.f32.mrb[0].mxu0
        %v2105 = vpop.f32.mrb[0].mxu0
        %v2106 = vadd.f32 0.0, %v2105
        %v2107 = vpop.f32.mrb[0].mxu0
        %2108 = vmatprep.mubr.bf16.mxu0 %v1870
        %2109 = vmatmul.mubr.bf16.gmra.mrb[0].mxu0 %v1869
        %v2110 = vpop.f32.mrb[0].mxu0
        %v2111 = vadd.f32 0.0, %v2110
        %v2112 = vpop.f32.mrb[0].mxu0
        %v2113 = vpop.f32.mrb[0].mxu0
        %v2114 = vadd.f32 0.0, %v2113
        %v2115 = vpop.f32.mrb[0].mxu0
        %2116 = vmatprep.mubr.bf16.mxu0 %v1872
        %2117 = vmatmul.mubr.bf16.gmra.mrb[0].mxu0 %v1871
        %v2118 = vpop.f32.mrb[0].mxu0
        %v2119 = vadd.f32 0.0, %v2118
        %v2120 = vpop.f32.mrb[0].mxu0
        %v2121 = vpop.f32.mrb[0].mxu0
        %v2122 = vadd.f32 0.0, %v2121
        %v2123 = vpop.f32.mrb[0].mxu0
        %2124 = vmatprep.mubr.bf16.mxu0 %v1874
        %2125 = vmatmul.mubr.bf16.gmra.mrb[0].mxu0 %v1873
        %v2126 = vpop.f32.mrb[0].mxu0
        %v2127 = vadd.f32 0.0, %v2126
        %v2128 = vpop.f32.mrb[0].mxu0
        %v2129 = vpop.f32.mrb[0].mxu0
        %v2130 = vadd.f32 0.0, %v2129
        %v2131 = vpop.f32.mrb[0].mxu0
        %2132 = vmatprep.mubr.bf16.mxu0 %v1876
        %2133 = vmatmul.mubr.bf16.gmra.mrb[0].mxu0 %v1875
        %v2134 = vpop.f32.mrb[0].mxu0
        %v2135 = vadd.f32 0.0, %v2134
        %v2136 = vpop.f32.mrb[0].mxu0
        %v2137 = vpop.f32.mrb[0].mxu0
        %v2138 = vadd.f32 0.0, %v2137
        %v2139 = vpop.f32.mrb[0].mxu0
        %2140 = vmatprep.mubr.bf16.mxu0 %v1878
        %2141 = vmatmul.mubr.bf16.gmra.mrb[0].mxu0 %v1877
        %v2142 = vpop.f32.mrb[0].mxu0
        %v2143 = vadd.f32 0.0, %v2142
        %v2144 = vpop.f32.mrb[0].mxu0
        %v2145 = vpop.f32.mrb[0].mxu0
        %v2146 = vadd.f32 0.0, %v2145
        %v2147 = vpop.f32.mrb[0].mxu0
        %2148 = vmatprep.mubr.bf16.mxu0 %v1916
        %2149 = vmatmul.mubr.bf16.gmra.mrb[0].mxu0 %v1915
        %v2150 = vpop.f32.mrb[0].mxu0
        %v2151 = vadd.f32 0.0, %v2150
        %v2152 = vpop.f32.mrb[0].mxu0
        %v2153 = vpop.f32.mrb[0].mxu0
        %v2154 = vpop.f32.mrb[0].mxu0
        %2155 = vdwg.mxu0
        %v2188 = vunpack.c.l.b16 %v1879
        %v2189 = vunpack.c.l.b16 %v1880
        %v2190 = vunpack.c.l.b16 %v1881
        %v2191 = vunpack.c.l.b16 %v1882
        %v2192 = vunpack.c.l.b16 %v1883
        %v2193 = vunpack.c.l.b16 %v1884
        %v2194 = vunpack.c.l.b16 %v1885
        %v2195 = vunpack.c.l.b16 %v1886
        %v2196 = vunpack.c.l.b16 %v1887
        %v2197 = vunpack.c.l.b16 %v1888
        %v2198 = vunpack.c.l.b16 %v1889
        %v2199 = vunpack.c.l.b16 %v1890
        %v2200 = vunpack.c.l.b16 %v1891
        %v2201 = vunpack.c.l.b16 %v1892
        %v2202 = vunpack.c.l.b16 %v1893
        %v2203 = vunpack.c.l.b16 %v1894
        %v2204 = vunpack.c.l.b16 %v1895
        %v2205 = vunpack.c.l.b16 %v1896
        %v2206 = vunpack.c.l.b16 %v1897
        %v2207 = vunpack.c.l.b16 %v1898
        %v2208 = vunpack.c.l.b16 %v1899
        %v2209 = vunpack.c.l.b16 %v1900
        %v2210 = vunpack.c.l.b16 %v1901
        %v2211 = vunpack.c.l.b16 %v1902
        %v2212 = vunpack.c.l.b16 %v1903
        %v2213 = vunpack.c.l.b16 %v1904
        %v2214 = vunpack.c.l.b16 %v1905
        %v2215 = vunpack.c.l.b16 %v1906
        %v2216 = vunpack.c.l.b16 %v1907
        %v2217 = vunpack.c.l.b16 %v1908
        %v2218 = vunpack.c.l.b16 %v1909
        %v2219 = vunpack.c.l.b16 %v1910
        %v2220 = vpack.c.b16 %v2189, %v2188
        %v2221 = vpack.c.b16 %v2191, %v2190
        %v2222 = vpack.c.b16 %v2193, %v2192
        %v2223 = vpack.c.b16 %v2195, %v2194
        %v2224 = vpack.c.b16 %v2197, %v2196
        %v2225 = vpack.c.b16 %v2199, %v2198
        %v2226 = vpack.c.b16 %v2201, %v2200
        %v2227 = vpack.c.b16 %v2203, %v2202
        %v2228 = vpack.c.b16 %v2205, %v2204
        %v2229 = vpack.c.b16 %v2207, %v2206
        %v2230 = vpack.c.b16 %v2209, %v2208
        %v2231 = vpack.c.b16 %v2211, %v2210
        %v2232 = vpack.c.b16 %v2213, %v2212
        %v2233 = vpack.c.b16 %v2215, %v2214
        %v2234 = vpack.c.b16 %v2217, %v2216
        %v2235 = vpack.c.b16 %v2219, %v2218
        %2252 = vmatprep.subr.bf16.mxu0 0
        %2253 = vmatpush1.bf16.msra.mxu0 %v2220
        %2254 = vmatprep.subr.bf16.mxu0 0
        %2255 = vmatpush1.bf16.msra.mxu0 %v2221
        %2256 = vmatprep.subr.bf16.mxu0 0
        %2257 = vmatpush1.bf16.msra.mxu0 %v2222
        %2258 = vmatprep.subr.bf16.mxu0 0
        %2259 = vmatpush1.bf16.msra.mxu0 %v2223
        %2260 = vmatprep.subr.bf16.mxu0 0
        %2261 = vmatpush1.bf16.msra.mxu0 %v2224
        %2262 = vmatprep.subr.bf16.mxu0 0
        %2263 = vmatpush1.bf16.msra.mxu0 %v2225
        %2264 = vmatprep.subr.bf16.mxu0 0
        %2265 = vmatpush1.bf16.msra.mxu0 %v2226
        %2266 = vmatprep.subr.bf16.mxu0 0
        %2267 = vmatpush1.bf16.msra.mxu0 %v2227
        %2268 = vmatprep.subr.bf16.mxu0 0
        %2269 = vmatpush1.bf16.msra.mxu0 %v2228
        %2270 = vmatprep.subr.bf16.mxu0 0
        %2271 = vmatpush1.bf16.msra.mxu0 %v2229
        %2272 = vmatprep.subr.bf16.mxu0 0
        %2273 = vmatpush1.bf16.msra.mxu0 %v2230
        %2274 = vmatprep.subr.bf16.mxu0 0
        %2275 = vmatpush1.bf16.msra.mxu0 %v2231
        %2276 = vmatprep.subr.bf16.mxu0 0
        %2277 = vmatpush1.bf16.msra.mxu0 %v2232
        %2278 = vmatprep.subr.bf16.mxu0 0
        %2279 = vmatpush1.bf16.msra.mxu0 %v2233
        %2280 = vmatprep.subr.bf16.mxu0 0
        %2281 = vmatpush1.bf16.msra.mxu0 %v2234
        %2282 = vmatprep.subr.bf16.mxu0 0
        %2283 = vmatpush1.bf16.msra.mxu0 %v2235
        %2284 = vmatprep.mubr.bf16.mxu0 %v1860
        %2285 = vmatmul.mubr.bf16.gmra.mrb[0].mxu0 %v1859
        %v2286 = vpop.f32.mrb[0].mxu0
        %v2287 = vpop.f32.mrb[0].mxu0
        %v2288 = vpop.f32.mrb[0].mxu0
        %v2289 = vpop.f32.mrb[0].mxu0
        %2290 = vmatprep.mubr.bf16.mxu0 %v1862
        %2291 = vmatmul.mubr.bf16.gmra.mrb[0].mxu0 %v1861
        %v2292 = vpop.f32.mrb[0].mxu0
        %v2293 = vadd.f32 %v2087, %v2292
        %v2294 = vpop.f32.mrb[0].mxu0
        %v2295 = vpop.f32.mrb[0].mxu0
        %v2296 = vadd.f32 %v2090, %v2295
        %v2297 = vpop.f32.mrb[0].mxu0
        %2298 = vmatprep.mubr.bf16.mxu0 %v1864
        %2299 = vmatmul.mubr.bf16.gmra.mrb[0].mxu0 %v1863
        %v2300 = vpop.f32.mrb[0].mxu0
        %v2301 = vadd.f32 %v2095, %v2300
        %v2302 = vpop.f32.mrb[0].mxu0
        %v2303 = vpop.f32.mrb[0].mxu0
        %v2304 = vadd.f32 %v2098, %v2303
        %v2305 = vpop.f32.mrb[0].mxu0
        %2306 = vmatprep.mubr.bf16.mxu0 %v1866
        %2307 = vmatmul.mubr.bf16.gmra.mrb[0].mxu0 %v1865
        %v2308 = vpop.f32.mrb[0].mxu0
        %v2309 = vadd.f32 %v2103, %v2308
        %v2310 = vpop.f32.mrb[0].mxu0
        %v2311 = vpop.f32.mrb[0].mxu0
        %v2312 = vadd.f32 %v2106, %v2311
        %v2313 = vpop.f32.mrb[0].mxu0
        %2314 = vmatprep.mubr.bf16.mxu0 %v1868
        %2315 = vmatmul.mubr.bf16.gmra.mrb[0].mxu0 %v1867
        %v2316 = vpop.f32.mrb[0].mxu0
        %v2317 = vadd.f32 %v2111, %v2316
        %v2318 = vpop.f32.mrb[0].mxu0
        %v2319 = vpop.f32.mrb[0].mxu0
        %v2320 = vadd.f32 %v2114, %v2319
        %v2321 = vpop.f32.mrb[0].mxu0
        %2322 = vmatprep.mubr.bf16.mxu0 %v1870
        %2323 = vmatmul.mubr.bf16.gmra.mrb[0].mxu0 %v1869
        %v2324 = vpop.f32.mrb[0].mxu0
        %v2325 = vadd.f32 %v2119, %v2324
        %v2326 = vpop.f32.mrb[0].mxu0
        %v2327 = vpop.f32.mrb[0].mxu0
        %v2328 = vadd.f32 %v2122, %v2327
        %v2329 = vpop.f32.mrb[0].mxu0
        %2330 = vmatprep.mubr.bf16.mxu0 %v1872
        %2331 = vmatmul.mubr.bf16.gmra.mrb[0].mxu0 %v1871
        %v2332 = vpop.f32.mrb[0].mxu0
        %v2333 = vadd.f32 %v2127, %v2332
        %v2334 = vpop.f32.mrb[0].mxu0
        %v2335 = vpop.f32.mrb[0].mxu0
        %v2336 = vadd.f32 %v2130, %v2335
        %v2337 = vpop.f32.mrb[0].mxu0
        %2338 = vmatprep.mubr.bf16.mxu0 %v1874
        %2339 = vmatmul.mubr.bf16.gmra.mrb[0].mxu0 %v1873
        %v2340 = vpop.f32.mrb[0].mxu0
        %v2341 = vadd.f32 %v2135, %v2340
        %v2342 = vpop.f32.mrb[0].mxu0
        %v2343 = vpop.f32.mrb[0].mxu0
        %v2344 = vadd.f32 %v2138, %v2343
        %v2345 = vpop.f32.mrb[0].mxu0
        %2346 = vmatprep.mubr.bf16.mxu0 %v1876
        %2347 = vmatmul.mubr.bf16.gmra.mrb[0].mxu0 %v1875
        %v2348 = vpop.f32.mrb[0].mxu0
        %v2349 = vadd.f32 %v2143, %v2348
        %v2350 = vpop.f32.mrb[0].mxu0
        %v2351 = vpop.f32.mrb[0].mxu0
        %v2352 = vadd.f32 %v2146, %v2351
        %v2353 = vpop.f32.mrb[0].mxu0
        %2354 = vmatprep.mubr.bf16.mxu0 %v1878
        %2355 = vmatmul.mubr.bf16.gmra.mrb[0].mxu0 %v1877
        %v2356 = vpop.f32.mrb[0].mxu0
        %v2357 = vadd.f32 %v2151, %v2356
        %v2358 = vpop.f32.mrb[0].mxu0
        %v2359 = vpop.f32.mrb[0].mxu0
        %v2360 = vpop.f32.mrb[0].mxu0
        %2361 = vdwg.mxu0
        %v2362 = vld [vmem:[#allocation2 + $0x40] sm:$0xff]
        %v2363 = vld [vmem:[#allocation2 + $0x48] sm:$0xff]
        %v2364 = vld [vmem:[#allocation2 + $0x50] sm:$0xff]
        %v2365 = vld [vmem:[#allocation2 + $0x58] sm:$0xff]
        %v2366 = vld [vmem:[#allocation2 + $0x60] sm:$0xff]
        %v2367 = vld [vmem:[#allocation2 + $0x68] sm:$0xff]
        %v2368 = vld [vmem:[#allocation2 + $0x70] sm:$0xff]
        %v2369 = vld [vmem:[#allocation2 + $0x78] sm:$0xff]
        %v2370 = vld [vmem:[#allocation2 + $0x80] sm:$0xff]
        %v2371 = vld [vmem:[#allocation2 + $0x88] sm:$0xff]
        %v2372 = vld [vmem:[#allocation2 + $0x90] sm:$0xff]
        %v2373 = vld [vmem:[#allocation2 + $0x98] sm:$0xff]
        %v2374 = vld [vmem:[#allocation2 + $0xa0] sm:$0xff]
        %v2375 = vld [vmem:[#allocation2 + $0xa8] sm:$0xff]
        %v2376 = vld [vmem:[#allocation2 + $0xb0] sm:$0xff]
        %v2377 = vld [vmem:[#allocation2 + $0xb8] sm:$0xff]
        %v2378 = vld [vmem:[#allocation2 + $0xc0] sm:$0xff]
        %v2379 = vld [vmem:[#allocation2 + $0xc8] sm:$0xff]
        %v2380 = vld [vmem:[#allocation2 + $0xd0] sm:$0xff]
        %v2381 = vld [vmem:[#allocation2 + $0xd8] sm:$0xff]
        %v2382 = vld [vmem:[#allocation2 + $0xe0] sm:$0xff]
        %v2383 = vld [vmem:[#allocation2 + $0xe8] sm:$0xff]
        %v2384 = vld [vmem:[#allocation2 + $0xf0] sm:$0xff]
        %v2385 = vld [vmem:[#allocation2 + $0xf8] sm:$0xff]
        %v2386 = vld [vmem:[#allocation2 + $0x100] sm:$0xff]
        %v2387 = vld [vmem:[#allocation2 + $0x108] sm:$0xff]
        %v2388 = vld [vmem:[#allocation2 + $0x110] sm:$0xff]
        %v2389 = vld [vmem:[#allocation2 + $0x118] sm:$0xff]
        %v2390 = vld [vmem:[#allocation2 + $0x120] sm:$0xff]
        %v2391 = vld [vmem:[#allocation2 + $0x128] sm:$0xff]
        %v2392 = vld [vmem:[#allocation2 + $0x130] sm:$0xff]
        %v2393 = vld [vmem:[#allocation2 + $0x138] sm:$0xff]
        %v2394 = vld [vmem:[#allocation2 + $0x140] sm:$0xff]
        %v2395 = vld [vmem:[#allocation2 + $0x148] sm:$0xff]
        %v2396 = vld [vmem:[#allocation2 + $0x150] sm:$0xff]
        %v2397 = vld [vmem:[#allocation2 + $0x158] sm:$0xff]
        %v2398 = vld [vmem:[#allocation2 + $0x160] sm:$0xff]
        %v2399 = vld [vmem:[#allocation2 + $0x168] sm:$0xff]
        %v2400 = vld [vmem:[#allocation2 + $0x170] sm:$0xff]
        %v2401 = vld [vmem:[#allocation2 + $0x178] sm:$0xff]
        %v2402 = vpack.c.bf16 %v2364, %v2362
        %v2403 = vpack.c.bf16 %v2365, %v2363
        %v2404 = vpack.c.bf16 %v2368, %v2366
        %v2405 = vpack.c.bf16 %v2369, %v2367
        %v2406 = vpack.c.bf16 %v2372, %v2370
        %v2407 = vpack.c.bf16 %v2373, %v2371
        %v2408 = vpack.c.bf16 %v2376, %v2374
        %v2409 = vpack.c.bf16 %v2377, %v2375
        %v2410 = vpack.c.bf16 %v2380, %v2378
        %v2411 = vpack.c.bf16 %v2381, %v2379
        %v2412 = vpack.c.bf16 %v2384, %v2382
        %v2413 = vpack.c.bf16 %v2385, %v2383
        %v2414 = vpack.c.bf16 %v2388, %v2386
        %v2415 = vpack.c.bf16 %v2389, %v2387
        %v2416 = vpack.c.bf16 %v2392, %v2390
        %v2417 = vpack.c.bf16 %v2393, %v2391
        %v2418 = vpack.c.bf16 %v2396, %v2394
        %v2419 = vpack.c.bf16 %v2397, %v2395
        %v2420 = vpack.c.bf16 %v2400, %v2398
        %v2421 = vpack.c.bf16 %v2401, %v2399
        %s2422 = scalar_lea.vmem %s2, 256
        %v2423 = vld [vmem:[%s2422] sm:$0xf]
        %v2424 = vld [vmem:[%s2422 + $0x4] sm:$0xf]
        %v2425 = vld [vmem:[%s2422 + $0x8] sm:$0xf]
        %v2426 = vld [vmem:[%s2422 + $0xc] sm:$0xf]
        %v2427 = vld [vmem:[%s2422 + $0x10] sm:$0xf]
        %v2428 = vld [vmem:[%s2422 + $0x14] sm:$0xf]
        %v2429 = vld [vmem:[%s2422 + $0x18] sm:$0xf]
        %v2430 = vld [vmem:[%s2422 + $0x1c] sm:$0xf]
        %v2431 = vld [vmem:[%s2422 + $0x20] sm:$0xf]
        %v2432 = vld [vmem:[%s2422 + $0x24] sm:$0xf]
        %v2433 = vld [vmem:[%s2422 + $0x28] sm:$0xf]
        %v2434 = vld [vmem:[%s2422 + $0x2c] sm:$0xf]
        %v2435 = vld [vmem:[%s2422 + $0x30] sm:$0xf]
        %v2436 = vld [vmem:[%s2422 + $0x34] sm:$0xf]
        %v2437 = vld [vmem:[%s2422 + $0x38] sm:$0xf]
        %v2438 = vld [vmem:[%s2422 + $0x3c] sm:$0xf]
        %v2439 = vld [vmem:[%s2422 + $0x40] sm:$0xf]
        %v2440 = vld [vmem:[%s2422 + $0x44] sm:$0xf]
        %v2441 = vld [vmem:[%s2422 + $0x48] sm:$0xf]
        %v2442 = vld [vmem:[%s2422 + $0x4c] sm:$0xf]
        %v2443 = vld [vmem:[%s2422 + $0x50] sm:$0xf]
        %v2444 = vld [vmem:[%s2422 + $0x54] sm:$0xf]
        %v2445 = vld [vmem:[%s2422 + $0x58] sm:$0xf]
        %v2446 = vld [vmem:[%s2422 + $0x5c] sm:$0xf]
        %v2447 = vld [vmem:[%s2422 + $0x60] sm:$0xf]
        %v2448 = vld [vmem:[%s2422 + $0x64] sm:$0xf]
        %v2449 = vld [vmem:[%s2422 + $0x68] sm:$0xf]
        %v2450 = vld [vmem:[%s2422 + $0x6c] sm:$0xf]
        %v2451 = vld [vmem:[%s2422 + $0x70] sm:$0xf]
        %v2452 = vld [vmem:[%s2422 + $0x74] sm:$0xf]
        %v2453 = vld [vmem:[%s2422 + $0x78] sm:$0xf]
        %v2454 = vld [vmem:[%s2422 + $0x7c] sm:$0xf]
        %v2487 = vunpack.c.l.b16 %v2423
        %v2488 = vunpack.c.l.b16 %v2424
        %v2489 = vunpack.c.l.b16 %v2425
        %v2490 = vunpack.c.l.b16 %v2426
        %v2491 = vunpack.c.l.b16 %v2427
        %v2492 = vunpack.c.l.b16 %v2428
        %v2493 = vunpack.c.l.b16 %v2429
        %v2494 = vunpack.c.l.b16 %v2430
        %v2495 = vunpack.c.l.b16 %v2431
        %v2496 = vunpack.c.l.b16 %v2432
        %v2497 = vunpack.c.l.b16 %v2433
        %v2498 = vunpack.c.l.b16 %v2434
        %v2499 = vunpack.c.l.b16 %v2435
        %v2500 = vunpack.c.l.b16 %v2436
        %v2501 = vunpack.c.l.b16 %v2437
        %v2502 = vunpack.c.l.b16 %v2438
        %v2503 = vunpack.c.l.b16 %v2439
        %v2504 = vunpack.c.l.b16 %v2440
        %v2505 = vunpack.c.l.b16 %v2441
        %v2506 = vunpack.c.l.b16 %v2442
        %v2507 = vunpack.c.l.b16 %v2443
        %v2508 = vunpack.c.l.b16 %v2444
        %v2509 = vunpack.c.l.b16 %v2445
        %v2510 = vunpack.c.l.b16 %v2446
        %v2511 = vunpack.c.l.b16 %v2447
        %v2512 = vunpack.c.l.b16 %v2448
        %v2513 = vunpack.c.l.b16 %v2449
        %v2514 = vunpack.c.l.b16 %v2450
        %v2515 = vunpack.c.l.b16 %v2451
        %v2516 = vunpack.c.l.b16 %v2452
        %v2517 = vunpack.c.l.b16 %v2453
        %v2518 = vunpack.c.l.b16 %v2454
        %v2519 = vpack.c.b16 %v2488, %v2487
        %v2520 = vpack.c.b16 %v2490, %v2489
        %v2521 = vpack.c.b16 %v2492, %v2491
        %v2522 = vpack.c.b16 %v2494, %v2493
        %v2523 = vpack.c.b16 %v2496, %v2495
        %v2524 = vpack.c.b16 %v2498, %v2497
        %v2525 = vpack.c.b16 %v2500, %v2499
        %v2526 = vpack.c.b16 %v2502, %v2501
        %v2527 = vpack.c.b16 %v2504, %v2503
        %v2528 = vpack.c.b16 %v2506, %v2505
        %v2529 = vpack.c.b16 %v2508, %v2507
        %v2530 = vpack.c.b16 %v2510, %v2509
        %v2531 = vpack.c.b16 %v2512, %v2511
        %v2532 = vpack.c.b16 %v2514, %v2513
        %v2533 = vpack.c.b16 %v2516, %v2515
        %v2534 = vpack.c.b16 %v2518, %v2517
        %2551 = vmatprep.subr.bf16.mxu0 0
        %2552 = vmatpush1.bf16.msra.mxu0 %v2519
        %2553 = vmatprep.subr.bf16.mxu0 0
        %2554 = vmatpush1.bf16.msra.mxu0 %v2520
        %2555 = vmatprep.subr.bf16.mxu0 0
        %2556 = vmatpush1.bf16.msra.mxu0 %v2521
        %2557 = vmatprep.subr.bf16.mxu0 0
        %2558 = vmatpush1.bf16.msra.mxu0 %v2522
        %2559 = vmatprep.subr.bf16.mxu0 0
        %2560 = vmatpush1.bf16.msra.mxu0 %v2523
        %2561 = vmatprep.subr.bf16.mxu0 0
        %2562 = vmatpush1.bf16.msra.mxu0 %v2524
        %2563 = vmatprep.subr.bf16.mxu0 0
        %2564 = vmatpush1.bf16.msra.mxu0 %v2525
        %2565 = vmatprep.subr.bf16.mxu0 0
        %2566 = vmatpush1.bf16.msra.mxu0 %v2526
        %2567 = vmatprep.subr.bf16.mxu0 0
        %2568 = vmatpush1.bf16.msra.mxu0 %v2527
        %2569 = vmatprep.subr.bf16.mxu0 0
        %2570 = vmatpush1.bf16.msra.mxu0 %v2528
        %2571 = vmatprep.subr.bf16.mxu0 0
        %2572 = vmatpush1.bf16.msra.mxu0 %v2529
        %2573 = vmatprep.subr.bf16.mxu0 0
        %2574 = vmatpush1.bf16.msra.mxu0 %v2530
        %2575 = vmatprep.subr.bf16.mxu0 0
        %2576 = vmatpush1.bf16.msra.mxu0 %v2531
        %2577 = vmatprep.subr.bf16.mxu0 0
        %2578 = vmatpush1.bf16.msra.mxu0 %v2532
        %2579 = vmatprep.subr.bf16.mxu0 0
        %2580 = vmatpush1.bf16.msra.mxu0 %v2533
        %2581 = vmatprep.subr.bf16.mxu0 0
        %2582 = vmatpush1.bf16.msra.mxu0 %v2534
        %2583 = vmatprep.mubr.bf16.mxu0 %v2403
        %2584 = vmatmul.mubr.bf16.gmra.mrb[0].mxu0 %v2402
        %v2585 = vpop.f32.mrb[0].mxu0
        %v2586 = vpop.f32.mrb[0].mxu0
        %v2587 = vpop.f32.mrb[0].mxu0
        %v2588 = vpop.f32.mrb[0].mxu0
        %2589 = vmatprep.mubr.bf16.mxu0 %v2405
        %2590 = vmatmul.mubr.bf16.gmra.mrb[0].mxu0 %v2404
        %v2591 = vpop.f32.mrb[0].mxu0
        %v2592 = vadd.f32 0.0, %v2591
        %v2593 = vpop.f32.mrb[0].mxu0
        %v2594 = vpop.f32.mrb[0].mxu0
        %v2595 = vadd.f32 0.0, %v2594
        %v2596 = vpop.f32.mrb[0].mxu0
        %2597 = vmatprep.mubr.bf16.mxu0 %v2407
        %2598 = vmatmul.mubr.bf16.gmra.mrb[0].mxu0 %v2406
        %v2599 = vpop.f32.mrb[0].mxu0
        %v2600 = vadd.f32 0.0, %v2599
        %v2601 = vpop.f32.mrb[0].mxu0
        %v2602 = vpop.f32.mrb[0].mxu0
        %v2603 = vadd.f32 0.0, %v2602
        %v2604 = vpop.f32.mrb[0].mxu0
        %2605 = vmatprep.mubr.bf16.mxu0 %v2409
        %2606 = vmatmul.mubr.bf16.gmra.mrb[0].mxu0 %v2408
        %v2607 = vpop.f32.mrb[0].mxu0
        %v2608 = vadd.f32 0.0, %v2607
        %v2609 = vpop.f32.mrb[0].mxu0
        %v2610 = vpop.f32.mrb[0].mxu0
        %v2611 = vadd.f32 0.0, %v2610
        %v2612 = vpop.f32.mrb[0].mxu0
        %2613 = vmatprep.mubr.bf16.mxu0 %v2411
        %2614 = vmatmul.mubr.bf16.gmra.mrb[0].mxu0 %v2410
        %v2615 = vpop.f32.mrb[0].mxu0
        %v2616 = vadd.f32 0.0, %v2615
        %v2617 = vpop.f32.mrb[0].mxu0
        %v2618 = vpop.f32.mrb[0].mxu0
        %v2619 = vadd.f32 0.0, %v2618
        %v2620 = vpop.f32.mrb[0].mxu0
        %2621 = vmatprep.mubr.bf16.mxu0 %v2413
        %2622 = vmatmul.mubr.bf16.gmra.mrb[0].mxu0 %v2412
        %v2623 = vpop.f32.mrb[0].mxu0
        %v2624 = vadd.f32 0.0, %v2623
        %v2625 = vpop.f32.mrb[0].mxu0
        %v2626 = vpop.f32.mrb[0].mxu0
        %v2627 = vadd.f32 0.0, %v2626
        %v2628 = vpop.f32.mrb[0].mxu0
        %2629 = vmatprep.mubr.bf16.mxu0 %v2415
        %2630 = vmatmul.mubr.bf16.gmra.mrb[0].mxu0 %v2414
        %v2631 = vpop.f32.mrb[0].mxu0
        %v2632 = vadd.f32 0.0, %v2631
        %v2633 = vpop.f32.mrb[0].mxu0
        %v2634 = vpop.f32.mrb[0].mxu0
        %v2635 = vadd.f32 0.0, %v2634
        %v2636 = vpop.f32.mrb[0].mxu0
        %2637 = vmatprep.mubr.bf16.mxu0 %v2417
        %2638 = vmatmul.mubr.bf16.gmra.mrb[0].mxu0 %v2416
        %v2639 = vpop.f32.mrb[0].mxu0
        %v2640 = vadd.f32 0.0, %v2639
        %v2641 = vpop.f32.mrb[0].mxu0
        %v2642 = vpop.f32.mrb[0].mxu0
        %v2643 = vadd.f32 0.0, %v2642
        %v2644 = vpop.f32.mrb[0].mxu0
        %2645 = vmatprep.mubr.bf16.mxu0 %v2419
        %2646 = vmatmul.mubr.bf16.gmra.mrb[0].mxu0 %v2418
        %v2647 = vpop.f32.mrb[0].mxu0
        %v2648 = vadd.f32 0.0, %v2647
        %v2649 = vpop.f32.mrb[0].mxu0
        %v2650 = vpop.f32.mrb[0].mxu0
        %v2651 = vadd.f32 0.0, %v2650
        %v2652 = vpop.f32.mrb[0].mxu0
        %2653 = vmatprep.mubr.bf16.mxu0 %v2421
        %2654 = vmatmul.mubr.bf16.gmra.mrb[0].mxu0 %v2420
        %v2655 = vpop.f32.mrb[0].mxu0
        %v2656 = vadd.f32 0.0, %v2655
        %v2657 = vpop.f32.mrb[0].mxu0
        %v2658 = vpop.f32.mrb[0].mxu0
        %v2659 = vpop.f32.mrb[0].mxu0
        %2660 = vdwg.mxu0
        %v2661 = vadd.f32 %v2293, %v2592
        %v2662 = vadd.f32 %v2296, %v2595
        %v2663 = vadd.f32 %v2301, %v2600
        %v2664 = vadd.f32 %v2304, %v2603
        %v2665 = vadd.f32 %v2309, %v2608
        %v2666 = vadd.f32 %v2312, %v2611
        %v2667 = vadd.f32 %v2317, %v2616
        %v2668 = vadd.f32 %v2320, %v2619
        %v2669 = vadd.f32 %v2325, %v2624
        %v2670 = vadd.f32 %v2328, %v2627
        %v2671 = vadd.f32 %v2333, %v2632
        %v2672 = vadd.f32 %v2336, %v2635
        %v2673 = vadd.f32 %v2341, %v2640
        %v2674 = vadd.f32 %v2344, %v2643
        %v2675 = vadd.f32 %v2349, %v2648
        %v2676 = vadd.f32 %v2352, %v2651
        %v2677 = vadd.f32 %v2357, %v2656
        %v2679 = vlaneseq
        %v2680 = vshrl.u32 %v2679, 7
        %v2681 = vsub.s32 0, %v2680
        %v2682 = vrot.slane %v1818, %v2681
        %v2684 = vadd.f32 %v2661, %v2682
        %v2685 = vadd.f32 %v2662, %v2682
        %v2686 = vadd.f32 %v2663, %v2682
        %v2687 = vadd.f32 %v2664, %v2682
        %v2688 = vadd.f32 %v2665, %v2682
        %v2689 = vadd.f32 %v2666, %v2682
        %v2690 = vadd.f32 %v2667, %v2682
        %v2691 = vadd.f32 %v2668, %v2682
        %v2692 = vadd.f32 %v2669, %v2682
        %v2693 = vadd.f32 %v2670, %v2682
        %v2694 = vadd.f32 %v2671, %v2682
        %v2695 = vadd.f32 %v2672, %v2682
        %v2696 = vadd.f32 %v2673, %v2682
        %v2697 = vadd.f32 %v2674, %v2682
        %v2698 = vadd.f32 %v2675, %v2682
        %v2699 = vadd.f32 %v2676, %v2682
        %v2700 = vadd.f32 %v2677, %v2682
        %v2701 = vmax.f32 %v2684, 0.0
        %v2702 = vmax.f32 %v2685, 0.0
        %v2703 = vmax.f32 %v2686, 0.0
        %v2704 = vmax.f32 %v2687, 0.0
        %v2705 = vmax.f32 %v2688, 0.0
        %v2706 = vmax.f32 %v2689, 0.0
        %v2707 = vmax.f32 %v2690, 0.0
        %v2708 = vmax.f32 %v2691, 0.0
        %v2709 = vmax.f32 %v2692, 0.0
        %v2710 = vmax.f32 %v2693, 0.0
        %v2711 = vmax.f32 %v2694, 0.0
        %v2712 = vmax.f32 %v2695, 0.0
        %v2713 = vmax.f32 %v2696, 0.0
        %v2714 = vmax.f32 %v2697, 0.0
        %v2715 = vmax.f32 %v2698, 0.0
        %v2716 = vmax.f32 %v2699, 0.0
        %v2717 = vmax.f32 %v2700, 0.0
        %v2735 = vrot.slane %v2701, 1
        %v2736 = vrot.slane %v2702, 1
        %v2737 = vsel %vm1104, %v2735, %v2736
        %v2738 = vrot.slane %v2703, 1
        %v2739 = vsel %vm1104, %v2736, %v2738
        %v2740 = vrot.slane %v2704, 1
        %v2741 = vsel %vm1104, %v2738, %v2740
        %v2742 = vrot.slane %v2705, 1
        %v2743 = vsel %vm1104, %v2740, %v2742
        %v2744 = vrot.slane %v2706, 1
        %v2745 = vsel %vm1104, %v2742, %v2744
        %v2746 = vrot.slane %v2707, 1
        %v2747 = vsel %vm1104, %v2744, %v2746
        %v2748 = vrot.slane %v2708, 1
        %v2749 = vsel %vm1104, %v2746, %v2748
        %v2750 = vrot.slane %v2709, 1
        %v2751 = vsel %vm1104, %v2748, %v2750
        %v2752 = vrot.slane %v2710, 1
        %v2753 = vsel %vm1104, %v2750, %v2752
        %v2754 = vrot.slane %v2711, 1
        %v2755 = vsel %vm1104, %v2752, %v2754
        %v2756 = vrot.slane %v2712, 1
        %v2757 = vsel %vm1104, %v2754, %v2756
        %v2758 = vrot.slane %v2713, 1
        %v2759 = vsel %vm1104, %v2756, %v2758
        %v2760 = vrot.slane %v2714, 1
        %v2761 = vsel %vm1104, %v2758, %v2760
        %v2762 = vrot.slane %v2715, 1
        %v2763 = vsel %vm1104, %v2760, %v2762
        %v2764 = vrot.slane %v2716, 1
        %v2765 = vsel %vm1104, %v2762, %v2764
        %v2766 = vrot.slane %v2717, 1
        %v2767 = vsel %vm1104, %v2764, %v2766
        %v2784 = vmax.f32 %v2701, %v2737
        %v2785 = vmax.f32 %v2702, %v2739
        %v2786 = vmax.f32 %v2703, %v2741
        %v2787 = vmax.f32 %v2704, %v2743
        %v2788 = vmax.f32 %v2705, %v2745
        %v2789 = vmax.f32 %v2706, %v2747
        %v2790 = vmax.f32 %v2707, %v2749
        %v2791 = vmax.f32 %v2708, %v2751
        %v2792 = vmax.f32 %v2709, %v2753
        %v2793 = vmax.f32 %v2710, %v2755
        %v2794 = vmax.f32 %v2711, %v2757
        %v2795 = vmax.f32 %v2712, %v2759
        %v2796 = vmax.f32 %v2713, %v2761
        %v2797 = vmax.f32 %v2714, %v2763
        %v2798 = vmax.f32 %v2715, %v2765
        %v2799 = vmax.f32 %v2716, %v2767
        %v2800 = vmax.f32 %v2784, %v2786
        %v2801 = vmax.f32 %v2785, %v2787
        %v2802 = vld [vmem:[%s6] sm:$0x3]
        %v2803 = vpack.c.bf16 %v2801, %v2800
        %v2805 = vsel %vm680, %v2802, 0
        %2807 = vmatprep.subr.bf16.mxu0 0
        %2808 = vmatpush1.bf16.msra.mxu0 %v2803
        %2809 = vmatprep.subr.bf16.mxu0 0
        %2810 = vmatpush1.bf16.msra.mxu0 0
        %2811 = vmatprep.subr.bf16.mxu0 0
        %2812 = vmatpush1.bf16.msra.mxu0 0
        %2813 = vmatprep.subr.bf16.mxu0 0
        %2814 = vmatpush1.bf16.msra.mxu0 0
        %2815 = vmatprep.subr.bf16.mxu0 0
        %2816 = vmatpush1.bf16.msra.mxu0 0
        %2817 = vmatprep.subr.bf16.mxu0 0
        %2818 = vmatpush1.bf16.msra.mxu0 0
        %2819 = vmatprep.subr.bf16.mxu0 0
        %2820 = vmatpush1.bf16.msra.mxu0 0
        %2821 = vmatprep.subr.bf16.mxu0 0
        %2822 = vmatpush1.bf16.msra.mxu0 0
        %2823 = vmatprep.subr.bf16.mxu0 0
        %2824 = vmatpush1.bf16.msra.mxu0 0
        %2825 = vmatprep.subr.bf16.mxu0 0
        %2826 = vmatpush1.bf16.msra.mxu0 0
        %2827 = vmatprep.subr.bf16.mxu0 0
        %2828 = vmatpush1.bf16.msra.mxu0 0
        %2829 = vmatprep.subr.bf16.mxu0 0
        %2830 = vmatpush1.bf16.msra.mxu0 0
        %2831 = vmatprep.subr.bf16.mxu0 0
        %2832 = vmatpush1.bf16.msra.mxu0 0
        %2833 = vmatprep.subr.bf16.mxu0 0
        %2834 = vmatpush1.bf16.msra.mxu0 0
        %2835 = vmatprep.subr.bf16.mxu0 0
        %2836 = vmatpush1.bf16.msra.mxu0 0
        %2837 = vmatprep.subr.bf16.mxu0 0
        %2838 = vmatpush1.bf16.msra.mxu0 0
        %2839 = vmatprep.mubr.bf16.mxu0 0
        %2840 = vmatmul.mubr.bf16.gmra.mrb[0].mxu0 %v2805
        %v2841 = vpop.f32.mrb[0].mxu0
        %v2842 = vadd.f32 0.0, %v2841
        %v2843 = vpop.f32.mrb[0].mxu0
        %v2844 = vpop.f32.mrb[0].mxu0
        %v2845 = vpop.f32.mrb[0].mxu0
        %2846 = vdwg.mxu0
        %v2848 = vrot.slane %v2842, 6
        %vm2850 = vcmask 521218
        %2851 = vst.msk [vmem:[#allocation3 + $0x20] sm:$0x3c] %vm2850, %v2848
        %v2852 = vrot.slane %v2842, 7
        %2853 = vrot.lane.b32.xlu0 %v2852, 64
        %v2854 = vpop.permute.xlu0 %2853
        %vm2856 = vcmask 1044993
        %2857 = vst.msk [vmem:[#allocation3 + $0x20] sm:$0x1e] %vm2856, %v2854
        %vm2858 = vcmask 519168
        %2859 = vst.msk [vmem:[#allocation3 + $0x28] sm:$0xf] %vm2858, %v2842
        %v2860 = vmax.f32 %v2788, %v2790
        %v2861 = vmax.f32 %v2789, %v2791
        %v2862 = vld [vmem:[%s6] sm:$0x3]
        %v2863 = vpack.c.bf16 %v2861, %v2860
        %v2865 = vsel %vm680, %v2862, 0
        %2867 = vmatprep.subr.bf16.mxu0 0
        %2868 = vmatpush1.bf16.msra.mxu0 %v2863
        %2869 = vmatprep.subr.bf16.mxu0 0
        %2870 = vmatpush1.bf16.msra.mxu0 0
        %2871 = vmatprep.subr.bf16.mxu0 0
        %2872 = vmatpush1.bf16.msra.mxu0 0
        %2873 = vmatprep.subr.bf16.mxu0 0
        %2874 = vmatpush1.bf16.msra.mxu0 0
        %2875 = vmatprep.subr.bf16.mxu0 0
        %2876 = vmatpush1.bf16.msra.mxu0 0
        %2877 = vmatprep.subr.bf16.mxu0 0
        %2878 = vmatpush1.bf16.msra.mxu0 0
        %2879 = vmatprep.subr.bf16.mxu0 0
        %2880 = vmatpush1.bf16.msra.mxu0 0
        %2881 = vmatprep.subr.bf16.mxu0 0
        %2882 = vmatpush1.bf16.msra.mxu0 0
        %2883 = vmatprep.subr.bf16.mxu0 0
        %2884 = vmatpush1.bf16.msra.mxu0 0
        %2885 = vmatprep.subr.bf16.mxu0 0
        %2886 = vmatpush1.bf16.msra.mxu0 0
        %2887 = vmatprep.subr.bf16.mxu0 0
        %2888 = vmatpush1.bf16.msra.mxu0 0
        %2889 = vmatprep.subr.bf16.mxu0 0
        %2890 = vmatpush1.bf16.msra.mxu0 0
        %2891 = vmatprep.subr.bf16.mxu0 0
        %2892 = vmatpush1.bf16.msra.mxu0 0
        %2893 = vmatprep.subr.bf16.mxu0 0
        %2894 = vmatpush1.bf16.msra.mxu0 0
        %2895 = vmatprep.subr.bf16.mxu0 0
        %2896 = vmatpush1.bf16.msra.mxu0 0
        %2897 = vmatprep.subr.bf16.mxu0 0
        %2898 = vmatpush1.bf16.msra.mxu0 0
        %2899 = vmatprep.mubr.bf16.mxu0 0
        %2900 = vmatmul.mubr.bf16.gmra.mrb[0].mxu0 %v2865
        %v2901 = vpop.f32.mrb[0].mxu0
        %v2902 = vadd.f32 0.0, %v2901
        %v2903 = vpop.f32.mrb[0].mxu0
        %v2904 = vpop.f32.mrb[0].mxu0
        %v2905 = vpop.f32.mrb[0].mxu0
        %2906 = vdwg.mxu0
        %v2908 = vrot.slane %v2902, 6
        %2910 = vst.msk [vmem:[#allocation3 + $0x30] sm:$0x3c] %vm2850, %v2908
        %v2911 = vrot.slane %v2902, 7
        %2912 = vrot.lane.b32.xlu0 %v2911, 64
        %v2913 = vpop.permute.xlu0 %2912
        %2915 = vst.msk [vmem:[#allocation3 + $0x30] sm:$0x1e] %vm2856, %v2913
        %2916 = vst.msk [vmem:[#allocation3 + $0x38] sm:$0xf] %vm2858, %v2902
        %v2917 = vmax.f32 %v2792, %v2794
        %v2918 = vmax.f32 %v2793, %v2795
        %v2919 = vld [vmem:[%s6] sm:$0x3]
        %v2920 = vpack.c.bf16 %v2918, %v2917
        %v2922 = vsel %vm680, %v2919, 0
        %2924 = vmatprep.subr.bf16.mxu0 0
        %2925 = vmatpush1.bf16.msra.mxu0 %v2920
        %2926 = vmatprep.subr.bf16.mxu0 0
        %2927 = vmatpush1.bf16.msra.mxu0 0
        %2928 = vmatprep.subr.bf16.mxu0 0
        %2929 = vmatpush1.bf16.msra.mxu0 0
        %2930 = vmatprep.subr.bf16.mxu0 0
        %2931 = vmatpush1.bf16.msra.mxu0 0
        %2932 = vmatprep.subr.bf16.mxu0 0
        %2933 = vmatpush1.bf16.msra.mxu0 0
        %2934 = vmatprep.subr.bf16.mxu0 0
        %2935 = vmatpush1.bf16.msra.mxu0 0
        %2936 = vmatprep.subr.bf16.mxu0 0
        %2937 = vmatpush1.bf16.msra.mxu0 0
        %2938 = vmatprep.subr.bf16.mxu0 0
        %2939 = vmatpush1.bf16.msra.mxu0 0
        %2940 = vmatprep.subr.bf16.mxu0 0
        %2941 = vmatpush1.bf16.msra.mxu0 0
        %2942 = vmatprep.subr.bf16.mxu0 0
        %2943 = vmatpush1.bf16.msra.mxu0 0
        %2944 = vmatprep.subr.bf16.mxu0 0
        %2945 = vmatpush1.bf16.msra.mxu0 0
        %2946 = vmatprep.subr.bf16.mxu0 0
        %2947 = vmatpush1.bf16.msra.mxu0 0
        %2948 = vmatprep.subr.bf16.mxu0 0
        %2949 = vmatpush1.bf16.msra.mxu0 0
        %2950 = vmatprep.subr.bf16.mxu0 0
        %2951 = vmatpush1.bf16.msra.mxu0 0
        %2952 = vmatprep.subr.bf16.mxu0 0
        %2953 = vmatpush1.bf16.msra.mxu0 0
        %2954 = vmatprep.subr.bf16.mxu0 0
        %2955 = vmatpush1.bf16.msra.mxu0 0
        %2956 = vmatprep.mubr.bf16.mxu0 0
        %2957 = vmatmul.mubr.bf16.gmra.mrb[0].mxu0 %v2922
        %v2958 = vpop.f32.mrb[0].mxu0
        %v2959 = vadd.f32 0.0, %v2958
        %v2960 = vpop.f32.mrb[0].mxu0
        %v2961 = vpop.f32.mrb[0].mxu0
        %v2962 = vpop.f32.mrb[0].mxu0
        %2963 = vdwg.mxu0
        %v2965 = vrot.slane %v2959, 6
        %2967 = vst.msk [vmem:[#allocation3 + $0x40] sm:$0x3c] %vm2850, %v2965
        %v2968 = vrot.slane %v2959, 7
        %2969 = vrot.lane.b32.xlu0 %v2968, 64
        %v2970 = vpop.permute.xlu0 %2969
        %2972 = vst.msk [vmem:[#allocation3 + $0x40] sm:$0x1e] %vm2856, %v2970
        %2973 = vst.msk [vmem:[#allocation3 + $0x48] sm:$0xf] %vm2858, %v2959
        %v2974 = vmax.f32 %v2796, %v2798
        %v2975 = vmax.f32 %v2797, %v2799
        %v2976 = vld [vmem:[%s6] sm:$0x3]
        %v2977 = vpack.c.bf16 %v2975, %v2974
        %v2979 = vsel %vm680, %v2976, 0
        %2981 = vmatprep.subr.bf16.mxu0 0
        %2982 = vmatpush1.bf16.msra.mxu0 %v2977
        %2983 = vmatprep.subr.bf16.mxu0 0
        %2984 = vmatpush1.bf16.msra.mxu0 0
        %2985 = vmatprep.subr.bf16.mxu0 0
        %2986 = vmatpush1.bf16.msra.mxu0 0
        %2987 = vmatprep.subr.bf16.mxu0 0
        %2988 = vmatpush1.bf16.msra.mxu0 0
        %2989 = vmatprep.subr.bf16.mxu0 0
        %2990 = vmatpush1.bf16.msra.mxu0 0
        %2991 = vmatprep.subr.bf16.mxu0 0
        %2992 = vmatpush1.bf16.msra.mxu0 0
        %2993 = vmatprep.subr.bf16.mxu0 0
        %2994 = vmatpush1.bf16.msra.mxu0 0
        %2995 = vmatprep.subr.bf16.mxu0 0
        %2996 = vmatpush1.bf16.msra.mxu0 0
        %2997 = vmatprep.subr.bf16.mxu0 0
        %2998 = vmatpush1.bf16.msra.mxu0 0
        %2999 = vmatprep.subr.bf16.mxu0 0
        %3000 = vmatpush1.bf16.msra.mxu0 0
        %3001 = vmatprep.subr.bf16.mxu0 0
        %3002 = vmatpush1.bf16.msra.mxu0 0
        %3003 = vmatprep.subr.bf16.mxu0 0
        %3004 = vmatpush1.bf16.msra.mxu0 0
        %3005 = vmatprep.subr.bf16.mxu0 0
        %3006 = vmatpush1.bf16.msra.mxu0 0
        %3007 = vmatprep.subr.bf16.mxu0 0
        %3008 = vmatpush1.bf16.msra.mxu0 0
        %3009 = vmatprep.subr.bf16.mxu0 0
        %3010 = vmatpush1.bf16.msra.mxu0 0
        %3011 = vmatprep.subr.bf16.mxu0 0
        %3012 = vmatpush1.bf16.msra.mxu0 0
        %3013 = vmatprep.mubr.bf16.mxu0 0
        %3014 = vmatmul.mubr.bf16.gmra.mrb[0].mxu0 %v2979
        %v3015 = vpop.f32.mrb[0].mxu0
        %v3016 = vadd.f32 0.0, %v3015
        %v3017 = vpop.f32.mrb[0].mxu0
        %v3018 = vpop.f32.mrb[0].mxu0
        %v3019 = vpop.f32.mrb[0].mxu0
        %3020 = vdwg.mxu0
        %v3022 = vrot.slane %v3016, 6
        %3024 = vst.msk [vmem:[#allocation3 + $0x50] sm:$0x3c] %vm2850, %v3022
        %v3025 = vrot.slane %v3016, 7
        %3026 = vrot.lane.b32.xlu0 %v3025, 64
        %v3027 = vpop.permute.xlu0 %3026
        %3029 = vst.msk [vmem:[#allocation3 + $0x50] sm:$0x1e] %vm2856, %v3027
        %3030 = vst.msk [vmem:[#allocation3 + $0x58] sm:$0xf] %vm2858, %v3016
        %s3031 = scalar_lea.vmem %s4, 2
        %v3032 = vld [vmem:[%s3031] sm:$0x1]
        %v3033 = vld [vmem:[#allocation3] sm:$0xff]
        %v3034 = vld [vmem:[#allocation3 + $0x8] sm:$0xff]
        %v3035 = vld [vmem:[#allocation3 + $0x10] sm:$0xff]
        %v3036 = vld [vmem:[#allocation3 + $0x18] sm:$0xff]
        %v3037 = vld [vmem:[#allocation3 + $0x20] sm:$0xff]
        %v3038 = vld [vmem:[#allocation3 + $0x28] sm:$0xff]
        %v3039 = vld [vmem:[#allocation3 + $0x30] sm:$0xff]
        %v3040 = vld [vmem:[#allocation3 + $0x38] sm:$0xff]
        %v3041 = vld [vmem:[#allocation3 + $0x40] sm:$0xff]
        %v3042 = vld [vmem:[#allocation3 + $0x48] sm:$0xff]
        %v3043 = vld [vmem:[#allocation3 + $0x50] sm:$0xff]
        %v3044 = vld [vmem:[#allocation3 + $0x58] sm:$0xff]
        %v3045 = vpack.c.bf16 %v3035, %v3033
        %v3046 = vpack.c.bf16 %v3036, %v3034
        %v3047 = vpack.c.bf16 %v3039, %v3037
        %v3048 = vpack.c.bf16 %v3040, %v3038
        %v3049 = vpack.c.bf16 %v3043, %v3041
        %v3050 = vpack.c.bf16 %v3044, %v3042
        %v3051 = vld [vmem:[%s3] sm:$0xf]
        %v3052 = vld [vmem:[%s3 + $0x4] sm:$0xf]
        %v3053 = vld [vmem:[%s3 + $0x8] sm:$0xf]
        %v3054 = vld [vmem:[%s3 + $0xc] sm:$0xf]
        %v3055 = vld [vmem:[%s3 + $0x10] sm:$0xf]
        %v3056 = vld [vmem:[%s3 + $0x14] sm:$0xf]
        %v3057 = vld [vmem:[%s3 + $0x18] sm:$0xf]
        %v3058 = vld [vmem:[%s3 + $0x1c] sm:$0xf]
        %v3059 = vld [vmem:[%s3 + $0x20] sm:$0xf]
        %v3060 = vld [vmem:[%s3 + $0x24] sm:$0xf]
        %v3061 = vld [vmem:[%s3 + $0x28] sm:$0xf]
        %v3062 = vld [vmem:[%s3 + $0x2c] sm:$0xf]
        %v3063 = vld [vmem:[%s3 + $0x30] sm:$0xf]
        %v3064 = vld [vmem:[%s3 + $0x34] sm:$0xf]
        %v3065 = vld [vmem:[%s3 + $0x38] sm:$0xf]
        %v3066 = vld [vmem:[%s3 + $0x3c] sm:$0xf]
        %v3067 = vld [vmem:[%s3 + $0x40] sm:$0xf]
        %v3068 = vld [vmem:[%s3 + $0x44] sm:$0xf]
        %v3069 = vld [vmem:[%s3 + $0x48] sm:$0xf]
        %v3070 = vld [vmem:[%s3 + $0x4c] sm:$0xf]
        %v3071 = vld [vmem:[%s3 + $0x50] sm:$0xf]
        %v3072 = vld [vmem:[%s3 + $0x54] sm:$0xf]
        %v3073 = vld [vmem:[%s3 + $0x58] sm:$0xf]
        %v3074 = vld [vmem:[%s3 + $0x5c] sm:$0xf]
        %v3075 = vld [vmem:[%s3 + $0x60] sm:$0xf]
        %v3076 = vld [vmem:[%s3 + $0x64] sm:$0xf]
        %v3077 = vld [vmem:[%s3 + $0x68] sm:$0xf]
        %v3078 = vld [vmem:[%s3 + $0x6c] sm:$0xf]
        %v3079 = vld [vmem:[%s3 + $0x70] sm:$0xf]
        %v3080 = vld [vmem:[%s3 + $0x74] sm:$0xf]
        %v3081 = vld [vmem:[%s3 + $0x78] sm:$0xf]
        %v3082 = vld [vmem:[%s3 + $0x7c] sm:$0xf]
        %v3083 = vld [vmem:[#allocation3 + $0x60] sm:$0xff]
        %v3084 = vld [vmem:[#allocation3 + $0x68] sm:$0xff]
        %v3085 = vpack.c.bf16 %v3037, %v3035
        %v3086 = vpack.c.bf16 %v3038, %v3036
        %v3087 = vpack.c.bf16 %v3041, %v3039
        %v3088 = vpack.c.bf16 %v3042, %v3040
        %v3089 = vpack.c.bf16 %v3083, %v3043
        %v3090 = vpack.c.bf16 %v3084, %v3044
        %s3091 = scalar_lea.vmem %s3, 128
        %v3092 = vld [vmem:[%s3091] sm:$0xf]
        %v3093 = vld [vmem:[%s3091 + $0x4] sm:$0xf]
        %v3094 = vld [vmem:[%s3091 + $0x8] sm:$0xf]
        %v3095 = vld [vmem:[%s3091 + $0xc] sm:$0xf]
        %v3096 = vld [vmem:[%s3091 + $0x10] sm:$0xf]
        %v3097 = vld [vmem:[%s3091 + $0x14] sm:$0xf]
        %v3098 = vld [vmem:[%s3091 + $0x18] sm:$0xf]
        %v3099 = vld [vmem:[%s3091 + $0x1c] sm:$0xf]
        %v3100 = vld [vmem:[%s3091 + $0x20] sm:$0xf]
        %v3101 = vld [vmem:[%s3091 + $0x24] sm:$0xf]
        %v3102 = vld [vmem:[%s3091 + $0x28] sm:$0xf]
        %v3103 = vld [vmem:[%s3091 + $0x2c] sm:$0xf]
        %v3104 = vld [vmem:[%s3091 + $0x30] sm:$0xf]
        %v3105 = vld [vmem:[%s3091 + $0x34] sm:$0xf]
        %v3106 = vld [vmem:[%s3091 + $0x38] sm:$0xf]
        %v3107 = vld [vmem:[%s3091 + $0x3c] sm:$0xf]
        %v3108 = vld [vmem:[%s3091 + $0x40] sm:$0xf]
        %v3109 = vld [vmem:[%s3091 + $0x44] sm:$0xf]
        %v3110 = vld [vmem:[%s3091 + $0x48] sm:$0xf]
        %v3111 = vld [vmem:[%s3091 + $0x4c] sm:$0xf]
        %v3112 = vld [vmem:[%s3091 + $0x50] sm:$0xf]
        %v3113 = vld [vmem:[%s3091 + $0x54] sm:$0xf]
        %v3114 = vld [vmem:[%s3091 + $0x58] sm:$0xf]
        %v3115 = vld [vmem:[%s3091 + $0x5c] sm:$0xf]
        %v3116 = vld [vmem:[%s3091 + $0x60] sm:$0xf]
        %v3117 = vld [vmem:[%s3091 + $0x64] sm:$0xf]
        %v3118 = vld [vmem:[%s3091 + $0x68] sm:$0xf]
        %v3119 = vld [vmem:[%s3091 + $0x6c] sm:$0xf]
        %v3120 = vld [vmem:[%s3091 + $0x70] sm:$0xf]
        %v3121 = vld [vmem:[%s3091 + $0x74] sm:$0xf]
        %v3122 = vld [vmem:[%s3091 + $0x78] sm:$0xf]
        %v3123 = vld [vmem:[%s3091 + $0x7c] sm:$0xf]
        %v3156 = vunpack.c.l.b16 %v3092
        %v3157 = vunpack.c.l.b16 %v3093
        %v3158 = vunpack.c.l.b16 %v3094
        %v3159 = vunpack.c.l.b16 %v3095
        %v3160 = vunpack.c.l.b16 %v3096
        %v3161 = vunpack.c.l.b16 %v3097
        %v3162 = vunpack.c.l.b16 %v3098
        %v3163 = vunpack.c.l.b16 %v3099
        %v3164 = vunpack.c.l.b16 %v3100
        %v3165 = vunpack.c.l.b16 %v3101
        %v3166 = vunpack.c.l.b16 %v3102
        %v3167 = vunpack.c.l.b16 %v3103
        %v3168 = vunpack.c.l.b16 %v3104
        %v3169 = vunpack.c.l.b16 %v3105
        %v3170 = vunpack.c.l.b16 %v3106
        %v3171 = vunpack.c.l.b16 %v3107
        %v3172 = vunpack.c.l.b16 %v3108
        %v3173 = vunpack.c.l.b16 %v3109
        %v3174 = vunpack.c.l.b16 %v3110
        %v3175 = vunpack.c.l.b16 %v3111
        %v3176 = vunpack.c.l.b16 %v3112
        %v3177 = vunpack.c.l.b16 %v3113
        %v3178 = vunpack.c.l.b16 %v3114
        %v3179 = vunpack.c.l.b16 %v3115
        %v3180 = vunpack.c.l.b16 %v3116
        %v3181 = vunpack.c.l.b16 %v3117
        %v3182 = vunpack.c.l.b16 %v3118
        %v3183 = vunpack.c.l.b16 %v3119
        %v3184 = vunpack.c.l.b16 %v3120
        %v3185 = vunpack.c.l.b16 %v3121
        %v3186 = vunpack.c.l.b16 %v3122
        %v3187 = vunpack.c.l.b16 %v3123
        %v3188 = vpack.c.b16 %v3157, %v3156
        %v3189 = vpack.c.b16 %v3159, %v3158
        %v3190 = vpack.c.b16 %v3161, %v3160
        %v3191 = vpack.c.b16 %v3163, %v3162
        %v3192 = vpack.c.b16 %v3165, %v3164
        %v3193 = vpack.c.b16 %v3167, %v3166
        %v3194 = vpack.c.b16 %v3169, %v3168
        %v3195 = vpack.c.b16 %v3171, %v3170
        %v3196 = vpack.c.b16 %v3173, %v3172
        %v3197 = vpack.c.b16 %v3175, %v3174
        %v3198 = vpack.c.b16 %v3177, %v3176
        %v3199 = vpack.c.b16 %v3179, %v3178
        %v3200 = vpack.c.b16 %v3181, %v3180
        %v3201 = vpack.c.b16 %v3183, %v3182
        %v3202 = vpack.c.b16 %v3185, %v3184
        %v3203 = vpack.c.b16 %v3187, %v3186
        %3220 = vmatprep.subr.bf16.mxu0 0
        %3221 = vmatpush1.bf16.msra.mxu0 %v3188
        %3222 = vmatprep.subr.bf16.mxu0 0
        %3223 = vmatpush1.bf16.msra.mxu0 %v3189
        %3224 = vmatprep.subr.bf16.mxu0 0
        %3225 = vmatpush1.bf16.msra.mxu0 %v3190
        %3226 = vmatprep.subr.bf16.mxu0 0
        %3227 = vmatpush1.bf16.msra.mxu0 %v3191
        %3228 = vmatprep.subr.bf16.mxu0 0
        %3229 = vmatpush1.bf16.msra.mxu0 %v3192
        %3230 = vmatprep.subr.bf16.mxu0 0
        %3231 = vmatpush1.bf16.msra.mxu0 %v3193
        %3232 = vmatprep.subr.bf16.mxu0 0
        %3233 = vmatpush1.bf16.msra.mxu0 %v3194
        %3234 = vmatprep.subr.bf16.mxu0 0
        %3235 = vmatpush1.bf16.msra.mxu0 %v3195
        %3236 = vmatprep.subr.bf16.mxu0 0
        %3237 = vmatpush1.bf16.msra.mxu0 %v3196
        %3238 = vmatprep.subr.bf16.mxu0 0
        %3239 = vmatpush1.bf16.msra.mxu0 %v3197
        %3240 = vmatprep.subr.bf16.mxu0 0
        %3241 = vmatpush1.bf16.msra.mxu0 %v3198
        %3242 = vmatprep.subr.bf16.mxu0 0
        %3243 = vmatpush1.bf16.msra.mxu0 %v3199
        %3244 = vmatprep.subr.bf16.mxu0 0
        %3245 = vmatpush1.bf16.msra.mxu0 %v3200
        %3246 = vmatprep.subr.bf16.mxu0 0
        %3247 = vmatpush1.bf16.msra.mxu0 %v3201
        %3248 = vmatprep.subr.bf16.mxu0 0
        %3249 = vmatpush1.bf16.msra.mxu0 %v3202
        %3250 = vmatprep.subr.bf16.mxu0 0
        %3251 = vmatpush1.bf16.msra.mxu0 %v3203
        %3252 = vmatprep.mubr.bf16.mxu0 %v3086
        %3253 = vmatmul.mubr.bf16.gmra.mrb[0].mxu0 %v3085
        %v3254 = vpop.f32.mrb[0].mxu0
        %v3255 = vpop.f32.mrb[0].mxu0
        %v3256 = vpop.f32.mrb[0].mxu0
        %v3257 = vadd.f32 0.0, %v3256
        %v3258 = vpop.f32.mrb[0].mxu0
        %3259 = vmatprep.mubr.bf16.mxu0 %v3088
        %3260 = vmatmul.mubr.bf16.gmra.mrb[0].mxu0 %v3087
        %v3261 = vpop.f32.mrb[0].mxu0
        %v3262 = vadd.f32 0.0, %v3261
        %v3263 = vpop.f32.mrb[0].mxu0
        %v3264 = vpop.f32.mrb[0].mxu0
        %v3265 = vadd.f32 0.0, %v3264
        %v3266 = vpop.f32.mrb[0].mxu0
        %3267 = vmatprep.mubr.bf16.mxu0 %v3090
        %3268 = vmatmul.mubr.bf16.gmra.mrb[0].mxu0 %v3089
        %v3269 = vpop.f32.mrb[0].mxu0
        %v3270 = vadd.f32 0.0, %v3269
        %v3271 = vpop.f32.mrb[0].mxu0
        %v3272 = vpop.f32.mrb[0].mxu0
        %v3273 = vadd.f32 0.0, %v3272
        %v3274 = vpop.f32.mrb[0].mxu0
        %3275 = vdwg.mxu0
        %v3308 = vunpack.c.l.b16 %v3051
        %v3309 = vunpack.c.l.b16 %v3052
        %v3310 = vunpack.c.l.b16 %v3053
        %v3311 = vunpack.c.l.b16 %v3054
        %v3312 = vunpack.c.l.b16 %v3055
        %v3313 = vunpack.c.l.b16 %v3056
        %v3314 = vunpack.c.l.b16 %v3057
        %v3315 = vunpack.c.l.b16 %v3058
        %v3316 = vunpack.c.l.b16 %v3059
        %v3317 = vunpack.c.l.b16 %v3060
        %v3318 = vunpack.c.l.b16 %v3061
        %v3319 = vunpack.c.l.b16 %v3062
        %v3320 = vunpack.c.l.b16 %v3063
        %v3321 = vunpack.c.l.b16 %v3064
        %v3322 = vunpack.c.l.b16 %v3065
        %v3323 = vunpack.c.l.b16 %v3066
        %v3324 = vunpack.c.l.b16 %v3067
        %v3325 = vunpack.c.l.b16 %v3068
        %v3326 = vunpack.c.l.b16 %v3069
        %v3327 = vunpack.c.l.b16 %v3070
        %v3328 = vunpack.c.l.b16 %v3071
        %v3329 = vunpack.c.l.b16 %v3072
        %v3330 = vunpack.c.l.b16 %v3073
        %v3331 = vunpack.c.l.b16 %v3074
        %v3332 = vunpack.c.l.b16 %v3075
        %v3333 = vunpack.c.l.b16 %v3076
        %v3334 = vunpack.c.l.b16 %v3077
        %v3335 = vunpack.c.l.b16 %v3078
        %v3336 = vunpack.c.l.b16 %v3079
        %v3337 = vunpack.c.l.b16 %v3080
        %v3338 = vunpack.c.l.b16 %v3081
        %v3339 = vunpack.c.l.b16 %v3082
        %v3340 = vpack.c.b16 %v3309, %v3308
        %v3341 = vpack.c.b16 %v3311, %v3310
        %v3342 = vpack.c.b16 %v3313, %v3312
        %v3343 = vpack.c.b16 %v3315, %v3314
        %v3344 = vpack.c.b16 %v3317, %v3316
        %v3345 = vpack.c.b16 %v3319, %v3318
        %v3346 = vpack.c.b16 %v3321, %v3320
        %v3347 = vpack.c.b16 %v3323, %v3322
        %v3348 = vpack.c.b16 %v3325, %v3324
        %v3349 = vpack.c.b16 %v3327, %v3326
        %v3350 = vpack.c.b16 %v3329, %v3328
        %v3351 = vpack.c.b16 %v3331, %v3330
        %v3352 = vpack.c.b16 %v3333, %v3332
        %v3353 = vpack.c.b16 %v3335, %v3334
        %v3354 = vpack.c.b16 %v3337, %v3336
        %v3355 = vpack.c.b16 %v3339, %v3338
        %3372 = vmatprep.subr.bf16.mxu0 0
        %3373 = vmatpush1.bf16.msra.mxu0 %v3340
        %3374 = vmatprep.subr.bf16.mxu0 0
        %3375 = vmatpush1.bf16.msra.mxu0 %v3341
        %3376 = vmatprep.subr.bf16.mxu0 0
        %3377 = vmatpush1.bf16.msra.mxu0 %v3342
        %3378 = vmatprep.subr.bf16.mxu0 0
        %3379 = vmatpush1.bf16.msra.mxu0 %v3343
        %3380 = vmatprep.subr.bf16.mxu0 0
        %3381 = vmatpush1.bf16.msra.mxu0 %v3344
        %3382 = vmatprep.subr.bf16.mxu0 0
        %3383 = vmatpush1.bf16.msra.mxu0 %v3345
        %3384 = vmatprep.subr.bf16.mxu0 0
        %3385 = vmatpush1.bf16.msra.mxu0 %v3346
        %3386 = vmatprep.subr.bf16.mxu0 0
        %3387 = vmatpush1.bf16.msra.mxu0 %v3347
        %3388 = vmatprep.subr.bf16.mxu0 0
        %3389 = vmatpush1.bf16.msra.mxu0 %v3348
        %3390 = vmatprep.subr.bf16.mxu0 0
        %3391 = vmatpush1.bf16.msra.mxu0 %v3349
        %3392 = vmatprep.subr.bf16.mxu0 0
        %3393 = vmatpush1.bf16.msra.mxu0 %v3350
        %3394 = vmatprep.subr.bf16.mxu0 0
        %3395 = vmatpush1.bf16.msra.mxu0 %v3351
        %3396 = vmatprep.subr.bf16.mxu0 0
        %3397 = vmatpush1.bf16.msra.mxu0 %v3352
        %3398 = vmatprep.subr.bf16.mxu0 0
        %3399 = vmatpush1.bf16.msra.mxu0 %v3353
        %3400 = vmatprep.subr.bf16.mxu0 0
        %3401 = vmatpush1.bf16.msra.mxu0 %v3354
        %3402 = vmatprep.subr.bf16.mxu0 0
        %3403 = vmatpush1.bf16.msra.mxu0 %v3355
        %3404 = vmatprep.mubr.bf16.mxu0 %v3046
        %3405 = vmatmul.mubr.bf16.gmra.mrb[0].mxu0 %v3045
        %v3406 = vpop.f32.mrb[0].mxu0
        %v3407 = vpop.f32.mrb[0].mxu0
        %v3408 = vpop.f32.mrb[0].mxu0
        %v3409 = vadd.f32 %v3257, %v3408
        %v3410 = vpop.f32.mrb[0].mxu0
        %3411 = vmatprep.mubr.bf16.mxu0 %v3048
        %3412 = vmatmul.mubr.bf16.gmra.mrb[0].mxu0 %v3047
        %v3413 = vpop.f32.mrb[0].mxu0
        %v3414 = vadd.f32 %v3262, %v3413
        %v3415 = vpop.f32.mrb[0].mxu0
        %v3416 = vpop.f32.mrb[0].mxu0
        %v3417 = vadd.f32 %v3265, %v3416
        %v3418 = vpop.f32.mrb[0].mxu0
        %3419 = vmatprep.mubr.bf16.mxu0 %v3050
        %3420 = vmatmul.mubr.bf16.gmra.mrb[0].mxu0 %v3049
        %v3421 = vpop.f32.mrb[0].mxu0
        %v3422 = vadd.f32 %v3270, %v3421
        %v3423 = vpop.f32.mrb[0].mxu0
        %v3424 = vpop.f32.mrb[0].mxu0
        %v3425 = vadd.f32 %v3273, %v3424
        %v3426 = vpop.f32.mrb[0].mxu0
        %3427 = vdwg.mxu0
        %v3428 = vld [vmem:[#allocation3 + $0x20] sm:$0xff]
        %v3429 = vld [vmem:[#allocation3 + $0x28] sm:$0xff]
        %v3430 = vld [vmem:[#allocation3 + $0x30] sm:$0xff]
        %v3431 = vld [vmem:[#allocation3 + $0x38] sm:$0xff]
        %v3432 = vld [vmem:[#allocation3 + $0x40] sm:$0xff]
        %v3433 = vld [vmem:[#allocation3 + $0x48] sm:$0xff]
        %v3434 = vld [vmem:[#allocation3 + $0x50] sm:$0xff]
        %v3435 = vld [vmem:[#allocation3 + $0x58] sm:$0xff]
        %v3436 = vld [vmem:[#allocation3 + $0x60] sm:$0xff]
        %v3437 = vld [vmem:[#allocation3 + $0x68] sm:$0xff]
        %v3438 = vld [vmem:[#allocation3 + $0x70] sm:$0xff]
        %v3439 = vld [vmem:[#allocation3 + $0x78] sm:$0xff]
        %v3440 = vpack.c.bf16 %v3430, %v3428
        %v3441 = vpack.c.bf16 %v3431, %v3429
        %v3442 = vpack.c.bf16 %v3434, %v3432
        %v3443 = vpack.c.bf16 %v3435, %v3433
        %v3444 = vpack.c.bf16 %v3438, %v3436
        %v3445 = vpack.c.bf16 %v3439, %v3437
        %s3446 = scalar_lea.vmem %s3, 256
        %v3447 = vld [vmem:[%s3446] sm:$0xf]
        %v3448 = vld [vmem:[%s3446 + $0x4] sm:$0xf]
        %v3449 = vld [vmem:[%s3446 + $0x8] sm:$0xf]
        %v3450 = vld [vmem:[%s3446 + $0xc] sm:$0xf]
        %v3451 = vld [vmem:[%s3446 + $0x10] sm:$0xf]
        %v3452 = vld [vmem:[%s3446 + $0x14] sm:$0xf]
        %v3453 = vld [vmem:[%s3446 + $0x18] sm:$0xf]
        %v3454 = vld [vmem:[%s3446 + $0x1c] sm:$0xf]
        %v3455 = vld [vmem:[%s3446 + $0x20] sm:$0xf]
        %v3456 = vld [vmem:[%s3446 + $0x24] sm:$0xf]
        %v3457 = vld [vmem:[%s3446 + $0x28] sm:$0xf]
        %v3458 = vld [vmem:[%s3446 + $0x2c] sm:$0xf]
        %v3459 = vld [vmem:[%s3446 + $0x30] sm:$0xf]
        %v3460 = vld [vmem:[%s3446 + $0x34] sm:$0xf]
        %v3461 = vld [vmem:[%s3446 + $0x38] sm:$0xf]
        %v3462 = vld [vmem:[%s3446 + $0x3c] sm:$0xf]
        %v3463 = vld [vmem:[%s3446 + $0x40] sm:$0xf]
        %v3464 = vld [vmem:[%s3446 + $0x44] sm:$0xf]
        %v3465 = vld [vmem:[%s3446 + $0x48] sm:$0xf]
        %v3466 = vld [vmem:[%s3446 + $0x4c] sm:$0xf]
        %v3467 = vld [vmem:[%s3446 + $0x50] sm:$0xf]
        %v3468 = vld [vmem:[%s3446 + $0x54] sm:$0xf]
        %v3469 = vld [vmem:[%s3446 + $0x58] sm:$0xf]
        %v3470 = vld [vmem:[%s3446 + $0x5c] sm:$0xf]
        %v3471 = vld [vmem:[%s3446 + $0x60] sm:$0xf]
        %v3472 = vld [vmem:[%s3446 + $0x64] sm:$0xf]
        %v3473 = vld [vmem:[%s3446 + $0x68] sm:$0xf]
        %v3474 = vld [vmem:[%s3446 + $0x6c] sm:$0xf]
        %v3475 = vld [vmem:[%s3446 + $0x70] sm:$0xf]
        %v3476 = vld [vmem:[%s3446 + $0x74] sm:$0xf]
        %v3477 = vld [vmem:[%s3446 + $0x78] sm:$0xf]
        %v3478 = vld [vmem:[%s3446 + $0x7c] sm:$0xf]
        %v3511 = vunpack.c.l.b16 %v3447
        %v3512 = vunpack.c.l.b16 %v3448
        %v3513 = vunpack.c.l.b16 %v3449
        %v3514 = vunpack.c.l.b16 %v3450
        %v3515 = vunpack.c.l.b16 %v3451
        %v3516 = vunpack.c.l.b16 %v3452
        %v3517 = vunpack.c.l.b16 %v3453
        %v3518 = vunpack.c.l.b16 %v3454
        %v3519 = vunpack.c.l.b16 %v3455
        %v3520 = vunpack.c.l.b16 %v3456
        %v3521 = vunpack.c.l.b16 %v3457
        %v3522 = vunpack.c.l.b16 %v3458
        %v3523 = vunpack.c.l.b16 %v3459
        %v3524 = vunpack.c.l.b16 %v3460
        %v3525 = vunpack.c.l.b16 %v3461
        %v3526 = vunpack.c.l.b16 %v3462
        %v3527 = vunpack.c.l.b16 %v3463
        %v3528 = vunpack.c.l.b16 %v3464
        %v3529 = vunpack.c.l.b16 %v3465
        %v3530 = vunpack.c.l.b16 %v3466
        %v3531 = vunpack.c.l.b16 %v3467
        %v3532 = vunpack.c.l.b16 %v3468
        %v3533 = vunpack.c.l.b16 %v3469
        %v3534 = vunpack.c.l.b16 %v3470
        %v3535 = vunpack.c.l.b16 %v3471
        %v3536 = vunpack.c.l.b16 %v3472
        %v3537 = vunpack.c.l.b16 %v3473
        %v3538 = vunpack.c.l.b16 %v3474
        %v3539 = vunpack.c.l.b16 %v3475
        %v3540 = vunpack.c.l.b16 %v3476
        %v3541 = vunpack.c.l.b16 %v3477
        %v3542 = vunpack.c.l.b16 %v3478
        %v3543 = vpack.c.b16 %v3512, %v3511
        %v3544 = vpack.c.b16 %v3514, %v3513
        %v3545 = vpack.c.b16 %v3516, %v3515
        %v3546 = vpack.c.b16 %v3518, %v3517
        %v3547 = vpack.c.b16 %v3520, %v3519
        %v3548 = vpack.c.b16 %v3522, %v3521
        %v3549 = vpack.c.b16 %v3524, %v3523
        %v3550 = vpack.c.b16 %v3526, %v3525
        %v3551 = vpack.c.b16 %v3528, %v3527
        %v3552 = vpack.c.b16 %v3530, %v3529
        %v3553 = vpack.c.b16 %v3532, %v3531
        %v3554 = vpack.c.b16 %v3534, %v3533
        %v3555 = vpack.c.b16 %v3536, %v3535
        %v3556 = vpack.c.b16 %v3538, %v3537
        %v3557 = vpack.c.b16 %v3540, %v3539
        %v3558 = vpack.c.b16 %v3542, %v3541
        %3575 = vmatprep.subr.bf16.mxu0 0
        %3576 = vmatpush1.bf16.msra.mxu0 %v3543
        %3577 = vmatprep.subr.bf16.mxu0 0
        %3578 = vmatpush1.bf16.msra.mxu0 %v3544
        %3579 = vmatprep.subr.bf16.mxu0 0
        %3580 = vmatpush1.bf16.msra.mxu0 %v3545
        %3581 = vmatprep.subr.bf16.mxu0 0
        %3582 = vmatpush1.bf16.msra.mxu0 %v3546
        %3583 = vmatprep.subr.bf16.mxu0 0
        %3584 = vmatpush1.bf16.msra.mxu0 %v3547
        %3585 = vmatprep.subr.bf16.mxu0 0
        %3586 = vmatpush1.bf16.msra.mxu0 %v3548
        %3587 = vmatprep.subr.bf16.mxu0 0
        %3588 = vmatpush1.bf16.msra.mxu0 %v3549
        %3589 = vmatprep.subr.bf16.mxu0 0
        %3590 = vmatpush1.bf16.msra.mxu0 %v3550
        %3591 = vmatprep.subr.bf16.mxu0 0
        %3592 = vmatpush1.bf16.msra.mxu0 %v3551
        %3593 = vmatprep.subr.bf16.mxu0 0
        %3594 = vmatpush1.bf16.msra.mxu0 %v3552
        %3595 = vmatprep.subr.bf16.mxu0 0
        %3596 = vmatpush1.bf16.msra.mxu0 %v3553
        %3597 = vmatprep.subr.bf16.mxu0 0
        %3598 = vmatpush1.bf16.msra.mxu0 %v3554
        %3599 = vmatprep.subr.bf16.mxu0 0
        %3600 = vmatpush1.bf16.msra.mxu0 %v3555
        %3601 = vmatprep.subr.bf16.mxu0 0
        %3602 = vmatpush1.bf16.msra.mxu0 %v3556
        %3603 = vmatprep.subr.bf16.mxu0 0
        %3604 = vmatpush1.bf16.msra.mxu0 %v3557
        %3605 = vmatprep.subr.bf16.mxu0 0
        %3606 = vmatpush1.bf16.msra.mxu0 %v3558
        %3607 = vmatprep.mubr.bf16.mxu0 %v3441
        %3608 = vmatmul.mubr.bf16.gmra.mrb[0].mxu0 %v3440
        %v3609 = vpop.f32.mrb[0].mxu0
        %v3610 = vpop.f32.mrb[0].mxu0
        %v3611 = vpop.f32.mrb[0].mxu0
        %v3612 = vadd.f32 0.0, %v3611
        %v3613 = vpop.f32.mrb[0].mxu0
        %3614 = vmatprep.mubr.bf16.mxu0 %v3443
        %3615 = vmatmul.mubr.bf16.gmra.mrb[0].mxu0 %v3442
        %v3616 = vpop.f32.mrb[0].mxu0
        %v3617 = vadd.f32 0.0, %v3616
        %v3618 = vpop.f32.mrb[0].mxu0
        %v3619 = vpop.f32.mrb[0].mxu0
        %v3620 = vadd.f32 0.0, %v3619
        %v3621 = vpop.f32.mrb[0].mxu0
        %3622 = vmatprep.mubr.bf16.mxu0 %v3445
        %3623 = vmatmul.mubr.bf16.gmra.mrb[0].mxu0 %v3444
        %v3624 = vpop.f32.mrb[0].mxu0
        %v3625 = vadd.f32 0.0, %v3624
        %v3626 = vpop.f32.mrb[0].mxu0
        %v3627 = vpop.f32.mrb[0].mxu0
        %v3628 = vadd.f32 0.0, %v3627
        %v3629 = vpop.f32.mrb[0].mxu0
        %3630 = vdwg.mxu0
        %v3631 = vadd.f32 %v3409, %v3612
        %v3632 = vadd.f32 %v3414, %v3617
        %v3633 = vadd.f32 %v3417, %v3620
        %v3634 = vadd.f32 %v3422, %v3625
        %v3635 = vadd.f32 %v3425, %v3628
        %v3637 = vlaneseq
        %v3638 = vshrl.u32 %v3637, 7
        %v3639 = vsub.s32 0, %v3638
        %v3640 = vrot.slane %v3032, %v3639
        %v3642 = vadd.f32 %v3631, %v3640
        %v3643 = vadd.f32 %v3632, %v3640
        %v3644 = vadd.f32 %v3633, %v3640
        %v3645 = vadd.f32 %v3634, %v3640
        %v3646 = vadd.f32 %v3635, %v3640
        %v3647 = vmax.f32 %v3642, 0.0
        %v3648 = vmax.f32 %v3643, 0.0
        %v3649 = vmax.f32 %v3644, 0.0
        %v3650 = vmax.f32 %v3645, 0.0
        %v3651 = vmax.f32 %v3646, 0.0
        %v3657 = vrot.slane %v3647, 1
        %v3658 = vrot.slane %v3648, 1
        %v3659 = vsel %vm1104, %v3657, %v3658
        %v3660 = vrot.slane %v3649, 1
        %v3661 = vsel %vm1104, %v3658, %v3660
        %v3662 = vrot.slane %v3650, 1
        %v3663 = vsel %vm1104, %v3660, %v3662
        %v3664 = vrot.slane %v3651, 1
        %v3665 = vsel %vm1104, %v3662, %v3664
        %v3670 = vmax.f32 %v3647, %v3659
        %v3671 = vmax.f32 %v3648, %v3661
        %v3672 = vmax.f32 %v3649, %v3663
        %v3673 = vmax.f32 %v3650, %v3665
        %v3674 = vmax.f32 %v3670, %v3671
        %v3675 = vld [vmem:[%s7] sm:$0x1]
        %v3676 = vpack.c.bf16 %v3674, %v3674
        %vm3677 = vcmask 64512
        %v3679 = vsel %vm3677, %v3675, 0
        %v3682 = vsel %vm1308, %v3676, 0
        %3684 = vmatprep.subr.bf16.mxu0 0
        %3685 = vmatpush1.bf16.msra.mxu0 %v3682
        %3686 = vmatprep.subr.bf16.mxu0 0
        %3687 = vmatpush1.bf16.msra.mxu0 0
        %3688 = vmatprep.subr.bf16.mxu0 0
        %3689 = vmatpush1.bf16.msra.mxu0 0
        %3690 = vmatprep.subr.bf16.mxu0 0
        %3691 = vmatpush1.bf16.msra.mxu0 0
        %3692 = vmatprep.subr.bf16.mxu0 0
        %3693 = vmatpush1.bf16.msra.mxu0 0
        %3694 = vmatprep.subr.bf16.mxu0 0
        %3695 = vmatpush1.bf16.msra.mxu0 0
        %3696 = vmatprep.subr.bf16.mxu0 0
        %3697 = vmatpush1.bf16.msra.mxu0 0
        %3698 = vmatprep.subr.bf16.mxu0 0
        %3699 = vmatpush1.bf16.msra.mxu0 0
        %3700 = vmatprep.subr.bf16.mxu0 0
        %3701 = vmatpush1.bf16.msra.mxu0 0
        %3702 = vmatprep.subr.bf16.mxu0 0
        %3703 = vmatpush1.bf16.msra.mxu0 0
        %3704 = vmatprep.subr.bf16.mxu0 0
        %3705 = vmatpush1.bf16.msra.mxu0 0
        %3706 = vmatprep.subr.bf16.mxu0 0
        %3707 = vmatpush1.bf16.msra.mxu0 0
        %3708 = vmatprep.subr.bf16.mxu0 0
        %3709 = vmatpush1.bf16.msra.mxu0 0
        %3710 = vmatprep.subr.bf16.mxu0 0
        %3711 = vmatpush1.bf16.msra.mxu0 0
        %3712 = vmatprep.subr.bf16.mxu0 0
        %3713 = vmatpush1.bf16.msra.mxu0 0
        %3714 = vmatprep.subr.bf16.mxu0 0
        %3715 = vmatpush1.bf16.msra.mxu0 0
        %3716 = vmatprep.mubr.bf16.mxu0 0
        %3717 = vmatmul.mubr.bf16.gmra.mrb[0].mxu0 %v3679
        %v3718 = vpop.f32.mrb[0].mxu0
        %v3719 = vadd.f32 0.0, %v3718
        %v3720 = vpop.f32.mrb[0].mxu0
        %v3721 = vpop.f32.mrb[0].mxu0
        %v3722 = vpop.f32.mrb[0].mxu0
        %3723 = vdwg.mxu0
        %v3724 = vpack.c.bf16 %v3719, %v3719
        %v3725 = vld [vmem:[%s8] sm:$0xf]
        %v3726 = vld [vmem:[%s8 + $0x4] sm:$0xf]
        %v3727 = vld [vmem:[%s8 + $0x8] sm:$0xf]
        %v3728 = vld [vmem:[%s8 + $0xc] sm:$0xf]
        %v3729 = vld [vmem:[%s8 + $0x10] sm:$0xf]
        %v3730 = vld [vmem:[%s8 + $0x14] sm:$0xf]
        %v3731 = vld [vmem:[%s8 + $0x18] sm:$0xf]
        %v3732 = vld [vmem:[%s8 + $0x1c] sm:$0xf]
        %v3733 = vmax.f32 %v3672, %v3673
        %v3734 = vpack.c.bf16 %v3733, %v3733
        %v3736 = vsel %vm1308, %v3734, 0
        %3738 = vmatprep.subr.bf16.mxu0 0
        %3739 = vmatpush1.bf16.msra.mxu0 %v3736
        %3740 = vmatprep.subr.bf16.mxu0 0
        %3741 = vmatpush1.bf16.msra.mxu0 0
        %3742 = vmatprep.subr.bf16.mxu0 0
        %3743 = vmatpush1.bf16.msra.mxu0 0
        %3744 = vmatprep.subr.bf16.mxu0 0
        %3745 = vmatpush1.bf16.msra.mxu0 0
        %3746 = vmatprep.subr.bf16.mxu0 0
        %3747 = vmatpush1.bf16.msra.mxu0 0
        %3748 = vmatprep.subr.bf16.mxu0 0
        %3749 = vmatpush1.bf16.msra.mxu0 0
        %3750 = vmatprep.subr.bf16.mxu0 0
        %3751 = vmatpush1.bf16.msra.mxu0 0
        %3752 = vmatprep.subr.bf16.mxu0 0
        %3753 = vmatpush1.bf16.msra.mxu0 0
        %3754 = vmatprep.subr.bf16.mxu0 0
        %3755 = vmatpush1.bf16.msra.mxu0 0
        %3756 = vmatprep.subr.bf16.mxu0 0
        %3757 = vmatpush1.bf16.msra.mxu0 0
        %3758 = vmatprep.subr.bf16.mxu0 0
        %3759 = vmatpush1.bf16.msra.mxu0 0
        %3760 = vmatprep.subr.bf16.mxu0 0
        %3761 = vmatpush1.bf16.msra.mxu0 0
        %3762 = vmatprep.subr.bf16.mxu0 0
        %3763 = vmatpush1.bf16.msra.mxu0 0
        %3764 = vmatprep.subr.bf16.mxu0 0
        %3765 = vmatpush1.bf16.msra.mxu0 0
        %3766 = vmatprep.subr.bf16.mxu0 0
        %3767 = vmatpush1.bf16.msra.mxu0 0
        %3768 = vmatprep.subr.bf16.mxu0 0
        %3769 = vmatpush1.bf16.msra.mxu0 0
        %3770 = vmatprep.mubr.bf16.mxu0 0
        %3771 = vmatmul.mubr.bf16.gmra.mrb[0].mxu0 %v3679
        %v3772 = vpop.f32.mrb[0].mxu0
        %v3773 = vadd.f32 0.0, %v3772
        %v3774 = vpop.f32.mrb[0].mxu0
        %v3775 = vpop.f32.mrb[0].mxu0
        %v3776 = vpop.f32.mrb[0].mxu0
        %3777 = vdwg.mxu0
        %v3778 = vpack.c.bf16 %v3773, %v3773
        %v3779 = vld [vmem:[%s8 + $0x20] sm:$0xf]
        %v3780 = vld [vmem:[%s8 + $0x24] sm:$0xf]
        %v3781 = vld [vmem:[%s8 + $0x28] sm:$0xf]
        %v3782 = vld [vmem:[%s8 + $0x2c] sm:$0xf]
        %v3783 = vld [vmem:[%s8 + $0x30] sm:$0xf]
        %v3784 = vld [vmem:[%s8 + $0x34] sm:$0xf]
        %v3785 = vld [vmem:[%s8 + $0x38] sm:$0xf]
        %v3786 = vld [vmem:[%s8 + $0x3c] sm:$0xf]
        %v3795 = vunpack.c.l.b16 %v3779
        %v3796 = vunpack.c.l.b16 %v3780
        %v3797 = vunpack.c.l.b16 %v3781
        %v3798 = vunpack.c.l.b16 %v3782
        %v3799 = vunpack.c.l.b16 %v3783
        %v3800 = vunpack.c.l.b16 %v3784
        %v3801 = vunpack.c.l.b16 %v3785
        %v3802 = vunpack.c.l.b16 %v3786
        %v3803 = vpack.c.b16 %v3796, %v3795
        %v3804 = vpack.c.b16 %v3798, %v3797
        %v3805 = vpack.c.b16 %v3800, %v3799
        %v3806 = vpack.c.b16 %v3802, %v3801
        %v3812 = vsel %vm1367, %v3778, 0
        %3814 = vmatprep.subr.bf16.mxu0 0
        %3815 = vmatpush1.bf16.msra.mxu0 %v3803
        %3816 = vmatprep.subr.bf16.mxu0 0
        %3817 = vmatpush1.bf16.msra.mxu0 %v3804
        %3818 = vmatprep.subr.bf16.mxu0 0
        %3819 = vmatpush1.bf16.msra.mxu0 %v3805
        %3820 = vmatprep.subr.bf16.mxu0 0
        %3821 = vmatpush1.bf16.msra.mxu0 %v3806
        %3822 = vmatprep.subr.bf16.mxu0 0
        %3823 = vmatpush1.bf16.msra.mxu0 0
        %3824 = vmatprep.subr.bf16.mxu0 0
        %3825 = vmatpush1.bf16.msra.mxu0 0
        %3826 = vmatprep.subr.bf16.mxu0 0
        %3827 = vmatpush1.bf16.msra.mxu0 0
        %3828 = vmatprep.subr.bf16.mxu0 0
        %3829 = vmatpush1.bf16.msra.mxu0 0
        %3830 = vmatprep.subr.bf16.mxu0 0
        %3831 = vmatpush1.bf16.msra.mxu0 0
        %3832 = vmatprep.subr.bf16.mxu0 0
        %3833 = vmatpush1.bf16.msra.mxu0 0
        %3834 = vmatprep.subr.bf16.mxu0 0
        %3835 = vmatpush1.bf16.msra.mxu0 0
        %3836 = vmatprep.subr.bf16.mxu0 0
        %3837 = vmatpush1.bf16.msra.mxu0 0
        %3838 = vmatprep.subr.bf16.mxu0 0
        %3839 = vmatpush1.bf16.msra.mxu0 0
        %3840 = vmatprep.subr.bf16.mxu0 0
        %3841 = vmatpush1.bf16.msra.mxu0 0
        %3842 = vmatprep.subr.bf16.mxu0 0
        %3843 = vmatpush1.bf16.msra.mxu0 0
        %3844 = vmatprep.subr.bf16.mxu0 0
        %3845 = vmatpush1.bf16.msra.mxu0 0
        %3846 = vmatprep.mubr.bf16.mxu0 0
        %3847 = vmatmul.mubr.bf16.gmra.mrb[0].mxu0 %v3812
        %v3848 = vpop.f32.mrb[0].mxu0
        %v3849 = vadd.f32 0.0, %v3848
        %v3850 = vpop.f32.mrb[0].mxu0
        %v3851 = vpop.f32.mrb[0].mxu0
        %v3852 = vpop.f32.mrb[0].mxu0
        %3853 = vdwg.mxu0
        %v3862 = vunpack.c.l.b16 %v3725
        %v3863 = vunpack.c.l.b16 %v3726
        %v3864 = vunpack.c.l.b16 %v3727
        %v3865 = vunpack.c.l.b16 %v3728
        %v3866 = vunpack.c.l.b16 %v3729
        %v3867 = vunpack.c.l.b16 %v3730
        %v3868 = vunpack.c.l.b16 %v3731
        %v3869 = vunpack.c.l.b16 %v3732
        %v3870 = vpack.c.b16 %v3863, %v3862
        %v3871 = vpack.c.b16 %v3865, %v3864
        %v3872 = vpack.c.b16 %v3867, %v3866
        %v3873 = vpack.c.b16 %v3869, %v3868
        %v3879 = vsel %vm1367, %v3724, 0
        %3881 = vmatprep.subr.bf16.mxu0 0
        %3882 = vmatpush1.bf16.msra.mxu0 %v3870
        %3883 = vmatprep.subr.bf16.mxu0 0
        %3884 = vmatpush1.bf16.msra.mxu0 %v3871
        %3885 = vmatprep.subr.bf16.mxu0 0
        %3886 = vmatpush1.bf16.msra.mxu0 %v3872
        %3887 = vmatprep.subr.bf16.mxu0 0
        %3888 = vmatpush1.bf16.msra.mxu0 %v3873
        %3889 = vmatprep.subr.bf16.mxu0 0
        %3890 = vmatpush1.bf16.msra.mxu0 0
        %3891 = vmatprep.subr.bf16.mxu0 0
        %3892 = vmatpush1.bf16.msra.mxu0 0
        %3893 = vmatprep.subr.bf16.mxu0 0
        %3894 = vmatpush1.bf16.msra.mxu0 0
        %3895 = vmatprep.subr.bf16.mxu0 0
        %3896 = vmatpush1.bf16.msra.mxu0 0
        %3897 = vmatprep.subr.bf16.mxu0 0
        %3898 = vmatpush1.bf16.msra.mxu0 0
        %3899 = vmatprep.subr.bf16.mxu0 0
        %3900 = vmatpush1.bf16.msra.mxu0 0
        %3901 = vmatprep.subr.bf16.mxu0 0
        %3902 = vmatpush1.bf16.msra.mxu0 0
        %3903 = vmatprep.subr.bf16.mxu0 0
        %3904 = vmatpush1.bf16.msra.mxu0 0
        %3905 = vmatprep.subr.bf16.mxu0 0
        %3906 = vmatpush1.bf16.msra.mxu0 0
        %3907 = vmatprep.subr.bf16.mxu0 0
        %3908 = vmatpush1.bf16.msra.mxu0 0
        %3909 = vmatprep.subr.bf16.mxu0 0
        %3910 = vmatpush1.bf16.msra.mxu0 0
        %3911 = vmatprep.subr.bf16.mxu0 0
        %3912 = vmatpush1.bf16.msra.mxu0 0
        %3913 = vmatprep.mubr.bf16.mxu0 0
        %3914 = vmatmul.mubr.bf16.gmra.mrb[0].mxu0 %v3879
        %v3915 = vpop.f32.mrb[0].mxu0
        %v3916 = vadd.f32 %v3849, %v3915
        %v3917 = vpop.f32.mrb[0].mxu0
        %v3918 = vpop.f32.mrb[0].mxu0
        %v3919 = vpop.f32.mrb[0].mxu0
        %3920 = vdwg.mxu0
        %v3921 = vld [vmem:[%s9] sm:$0x1]
        %v3923 = vlaneseq
        %v3924 = vshrl.u32 %v3923, 7
        %v3925 = vsub.s32 0, %v3924
        %v3926 = vrot.slane %v3921, %v3925
        %v3928 = vadd.f32 %v3916, %v3926
        %v3929 = vmax.f32 %v3928, 0.0
        %v3930 = vpack.c.bf16 %v3929, %v3929
        %v3931 = vld [vmem:[%s10] sm:$0xf]
        %v3932 = vld [vmem:[%s10 + $0x4] sm:$0xf]
        %v3933 = vld [vmem:[%s10 + $0x8] sm:$0xf]
        %v3934 = vld [vmem:[%s10 + $0xc] sm:$0xf]
        %v3935 = vld [vmem:[%s10 + $0x10] sm:$0xf]
        %v3936 = vld [vmem:[%s10 + $0x14] sm:$0xf]
        %v3937 = vld [vmem:[%s10 + $0x18] sm:$0xf]
        %v3938 = vld [vmem:[%s10 + $0x1c] sm:$0xf]
        %v3939 = vld [vmem:[%s11] sm:$0x1]
        %v3941 = vlaneseq
        %v3942 = vshrl.u32 %v3941, 7
        %v3943 = vsub.s32 0, %v3942
        %v3944 = vrot.slane %v3939, %v3943
        %v3954 = vunpack.c.l.b16 %v3931
        %v3955 = vunpack.c.l.b16 %v3932
        %v3956 = vunpack.c.l.b16 %v3933
        %v3957 = vunpack.c.l.b16 %v3934
        %v3958 = vunpack.c.l.b16 %v3935
        %v3959 = vunpack.c.l.b16 %v3936
        %v3960 = vunpack.c.l.b16 %v3937
        %v3961 = vunpack.c.l.b16 %v3938
        %v3962 = vpack.c.b16 %v3955, %v3954
        %v3963 = vpack.c.b16 %v3957, %v3956
        %v3964 = vpack.c.b16 %v3959, %v3958
        %v3965 = vpack.c.b16 %v3961, %v3960
        %v3971 = vsel %vm1367, %v3930, 0
        %3973 = vmatprep.subr.bf16.mxu0 0
        %3974 = vmatpush1.bf16.msra.mxu0 %v3962
        %3975 = vmatprep.subr.bf16.mxu0 0
        %3976 = vmatpush1.bf16.msra.mxu0 %v3963
        %3977 = vmatprep.subr.bf16.mxu0 0
        %3978 = vmatpush1.bf16.msra.mxu0 %v3964
        %3979 = vmatprep.subr.bf16.mxu0 0
        %3980 = vmatpush1.bf16.msra.mxu0 %v3965
        %3981 = vmatprep.subr.bf16.mxu0 0
        %3982 = vmatpush1.bf16.msra.mxu0 0
        %3983 = vmatprep.subr.bf16.mxu0 0
        %3984 = vmatpush1.bf16.msra.mxu0 0
        %3985 = vmatprep.subr.bf16.mxu0 0
        %3986 = vmatpush1.bf16.msra.mxu0 0
        %3987 = vmatprep.subr.bf16.mxu0 0
        %3988 = vmatpush1.bf16.msra.mxu0 0
        %3989 = vmatprep.subr.bf16.mxu0 0
        %3990 = vmatpush1.bf16.msra.mxu0 0
        %3991 = vmatprep.subr.bf16.mxu0 0
        %3992 = vmatpush1.bf16.msra.mxu0 0
        %3993 = vmatprep.subr.bf16.mxu0 0
        %3994 = vmatpush1.bf16.msra.mxu0 0
        %3995 = vmatprep.subr.bf16.mxu0 0
        %3996 = vmatpush1.bf16.msra.mxu0 0
        %3997 = vmatprep.subr.bf16.mxu0 0
        %3998 = vmatpush1.bf16.msra.mxu0 0
        %3999 = vmatprep.subr.bf16.mxu0 0
        %4000 = vmatpush1.bf16.msra.mxu0 0
        %4001 = vmatprep.subr.bf16.mxu0 0
        %4002 = vmatpush1.bf16.msra.mxu0 0
        %4003 = vmatprep.subr.bf16.mxu0 0
        %4004 = vmatpush1.bf16.msra.mxu0 0
        %4005 = vmatprep.mubr.bf16.mxu0 0
        %4006 = vmatmul.mubr.bf16.gmra.mrb[0].mxu0 %v3971
        %v4007 = vpop.f32.mrb[0].mxu0
        %v4008 = vadd.f32 %v3944, %v4007
        %v4009 = vpop.f32.mrb[0].mxu0
        %v4010 = vpop.f32.mrb[0].mxu0
        %v4011 = vpop.f32.mrb[0].mxu0
        %4012 = vdwg.mxu0
        %v4013 = vmax.f32 %v4008, 0.0
        %v4014 = vsel %vm1357, %v4013, -inf
        %v4015 = vrot.slane %v4014, 4
        %v4016 = vmax.f32 %v4014, %v4015
        %v4017 = vrot.slane %v4016, 2
        %v4018 = vmax.f32 %v4016, %v4017
        %v4019 = vrot.slane %v4018, 1
        %v4020 = vmax.f32 %v4018, %v4019
        %v4021 = vsel %vm1357, %v4013, 0.0
        %v4022 = vrot.slane %v4021, 4
        %v4023 = vadd.f32 %v4021, %v4022
        %v4024 = vrot.slane %v4023, 2
        %v4025 = vadd.f32 %v4023, %v4024
        %v4026 = vrot.slane %v4025, 1
        %v4027 = vadd.f32 %v4025, %v4026
        %v4028 = vrcp.pop 2.0
        %v4029 = vmul.f32 %v4027, %v4028
        %v4030 = vadd.f32 %v4020, %v4029
        %vm4031 = vcmask 516096
        %4032 = vst.msk [vmem:[%s405] sm:$0x1] %vm4031, %v4030
        %s4033 = sand.u32 %s291, 1
        %s4034 = scalar_lea.sflag [#allocation5], %s4033
        %s4035 = sand.u32 %s291, 1
        %s4036 = scalar_lea.vmem [#allocation4], %s4035
        // Predicated region
        $region69: #{forward.1} parent=67 // pred_check
          %p4037 = pneg %p301
        $region70: #{forward.1} parent=67 // pred_check_branch
          %4039 = sbr.rel (%p4037) target = $region72
        $region71: #{forward.1} parent=67 // pred_region
          %s4041 = ssub.s32 16, 16
          %4042 = vsyncadd %s4034, %s4041
          %s4043 = smul.addr %s26, 16
          %s4044 = scalar_lea.hbm %s12, %s4043
          %s4046 = sshll.u32 %s4036, 4
          %s4047 = int_to_ptr.vmem [resolvable:$true] %s4046
          %4049 = dma.vmem_to_hbm [thread:$0]  %s4047, 16, %s4044, %s4034
        $region72: #{forward.1} parent=67 // pred_fallthru
          _
      $region68: #{forward.1} parent=5 // pred_fallthru
        _
      %p4050 = scmp.le.s32.totalorder 2, %s21
      // Predicated region
      $region73: #{forward.1} parent=5 // pred_check
        %p4051 = pneg %p4050
      $region74: #{forward.1} parent=5 // pred_check_branch
        %4053 = sbr.rel (%p4051) target = $region76
      $region75: #{forward.1} parent=5 // pred_region
        %s4054 = ssub.s32 %s21, 2
        // Predicated region
        $region77: #{forward.1} parent=75 // pred_check
          %p4055 = pneg %p307
        $region78: #{forward.1} parent=75 // pred_check_branch
          %4057 = sbr.rel (%p4055) target = $region80
        $region79: #{forward.1} parent=75 // pred_region
          %s4058 = sand.u32 %s292, 1
          %s4059 = scalar_lea.sflag [#allocation5], %s4058
          %s4060 = sand.u32 %s292, 1
          %s4061 = scalar_lea.vmem [#allocation4], %s4060
          %4062 = dma.done %s4059, 16
        $region80: #{forward.1} parent=75 // pred_fallthru
          _
      $region76: #{forward.1} parent=5 // pred_fallthru
        _
    $region6: #{forward.1} parent=1 // loop_footer
      %s25 = sadd.s32 1, %s21
    $region7: #{forward.1} parent=1 // loop_footer_branch
      %20 = sbr.rel target = $region3
    $region8: #{forward.1} parent=1 // loop_exit
      _
    %4063 = vsyncpa [#allocation5], 1
    %s4064 = scalar_lea.sflag [#allocation5], 1
    %4065 = vsyncpa %s4064, 1

</llo_original>
